<compile_context>
chip_gen: v7x
topology: tpu7x:2x2x1
jax: 0.10.0
libtpu: 0.0.40
codegen_flags: <defaults>
</compile_context>

<pallas_src>
import functools

import jax
import jax.numpy as jnp
from jax.experimental import pallas as pl
from jax.experimental.pallas import tpu as pltpu

EPS = 1e-6  # matches LayerNorm eps in the PyTorch module


def transformer_block_kernel(
    x_ref,
    ln1_g_ref, ln1_b_ref,
    wqkv_ref,
    proj_w_ref, proj_b_ref,
    ln2_g_ref, ln2_b_ref,
    ff_w1_ref, ff_b1_ref, ff_w2_ref, ff_b2_ref,
    out_ref,
    attn_slab_ref,
    *, num_heads, compute_dtype):
    bt, T, E = x_ref.shape
    N = bt * T
    hs = E // num_heads

    def mm(a, b):
        # MXU matmul with configurable input precision, f32 accumulation.
        return jnp.dot(a.astype(compute_dtype), b.astype(compute_dtype),
                       preferred_element_type=jnp.float32)

    def layernorm(v, g, b):
        # Reproduce the custom LayerNorm exactly:
        #   mean = x.mean(-1); std = x.std(-1)  (torch std is UNBIASED, /(E-1))
        #   xhat = (x - mean) / sqrt(std + eps)      <-- sqrt of (std + eps)!
        # rsqrt goes to the EUP slot instead of a VALU divide.
        mean = jnp.sum(v, axis=-1, keepdims=True) * (1.0 / E)
        c = v - mean
        var = jnp.sum(c * c, axis=-1, keepdims=True) * (1.0 / (E - 1))
        std = jnp.sqrt(var)
        return g * (c * jax.lax.rsqrt(std + EPS)) + b

    x = x_ref[...].reshape(N, E)                         # (N, E), N = bt*T

    # ---- x + proj(MHA(ln1(x))) ----
    h1 = layernorm(x, ln1_g_ref[...], ln1_b_ref[...])

    qkv = mm(h1, wqkv_ref[...])                          # (N, 3E); Q pre-scaled
    q3 = qkv[:, 0 * E:1 * E].reshape(bt, T, E)
    k3 = qkv[:, 1 * E:2 * E].reshape(bt, T, E)
    v3 = qkv[:, 2 * E:3 * E].reshape(bt, T, E)

    # Causal mask, built once per grid step and hoisted out of the head loop
    # (JAX does not CSE broadcast_in_dim, so hoist the broadcast explicitly).
    row = jax.lax.broadcasted_iota(jnp.int32, (T, T), 0)
    col = jax.lax.broadcasted_iota(jnp.int32, (T, T), 1)
    keep = jnp.broadcast_to((col <= row)[None, :, :], (bt, T, T))

    # Short static head loop; each matmul is batched over the b_tile rows and
    # contracts the head_size axis directly (no k transpose, no concat).
    for h in range(num_heads):
        lo = h * hs
        q_h = q3[:, :, lo:lo + hs].astype(compute_dtype)   # (bt, T, hs)
        k_h = k3[:, :, lo:lo + hs].astype(compute_dtype)
        v_h = v3[:, :, lo:lo + hs].astype(compute_dtype)
        s = jax.lax.dot_general(q_h, k_h, (((2,), (2,)), ((0,), (0,))),
                                preferred_element_type=jnp.float32)  # (bt,T,T)
        # Exactly the module's masked_fill(mask==0, -1e9) + stable softmax.
        s = jnp.where(keep, s, -1e9)
        s = s - jnp.max(s, axis=-1, keepdims=True)
        p = jnp.exp(s)
        p = p * pl.reciprocal(jnp.sum(p, axis=-1, keepdims=True), approx=True)
        o_h = jax.lax.dot_general(p.astype(compute_dtype), v_h,
                                  (((2,), (1,)), ((0,), (0,))),
                                  preferred_element_type=jnp.float32)  # (bt,T,hs)
        # Write into this head's column slice of the VMEM slab (no concat).
        attn_slab_ref[:, :, lo:lo + hs] = o_h

    attn = attn_slab_ref[...].reshape(N, E)
    attn = mm(attn, proj_w_ref[...]) + proj_b_ref[...]
    x2 = x + attn

    # ---- x2 + feed_forward(ln2(x2)) ----
    h2 = layernorm(x2, ln2_g_ref[...], ln2_b_ref[...])
    ff = jnp.maximum(mm(h2, ff_w1_ref[...]) + ff_b1_ref[...], 0.0)
    ff = mm(ff, ff_w2_ref[...]) + ff_b2_ref[...]

    out_ref[...] = (x2 + ff).reshape(bt, T, E).astype(out_ref.dtype)


def _pick_b_tile(B):
    # Fold several batch rows per grid step (amortizes per-step overhead and
    # raises every matmul's M dim) while keeping >= 2 parallel steps when
    # B >= 2 so both v7x TensorCores get work.
    for cand in (8, 4, 2):
        if B % cand == 0 and B // cand >= 2:
            return cand
    return 1


def transformer_block(x, params, *, num_heads, b_tile=None,
                      compute_dtype=jnp.float32):
    (ln1_g, ln1_b, wq, wk, wv, proj_w, proj_b,
     ln2_g, ln2_b, ff_w1, ff_b1, ff_w2, ff_b2) = params
    B, T, E = x.shape
    H4 = ff_w1.shape[1]

    if b_tile is None:
        b_tile = _pick_b_tile(B)
    assert B % b_tile == 0, "b_tile must divide batch"
    grid = (B // b_tile,)

    # Fuse Q/K/V into one (E, 3E) weight and fold the module's embed_dim**-0.5
    # softmax scale into the Q columns (host-side, one-time).
    scale = float(E) ** -0.5
    wqkv = jnp.concatenate([wq * scale, wk, wv], axis=1)

    kernel = functools.partial(transformer_block_kernel,
                               num_heads=num_heads,
                               compute_dtype=compute_dtype)

    def _run(weight_pipeline_mode):
        def const_spec(shape):
            idx = lambda i: (0,) * len(shape)
            if weight_pipeline_mode is None:
                return pl.BlockSpec(shape, idx)
            # Weights never change across the batch grid: single-buffer them so
            # the pipeline does not double their VMEM footprint.
            return pl.BlockSpec(shape, idx, pipeline_mode=weight_pipeline_mode)

        in_specs = [
            pl.BlockSpec((b_tile, T, E), lambda i: (i, 0, 0)),  # x
            const_spec((1, E)), const_spec((1, E)),             # ln1 gamma/beta
            const_spec((E, 3 * E)),                             # fused Wqkv
            const_spec((E, E)), const_spec((1, E)),             # proj W, b
            const_spec((1, E)), const_spec((1, E)),             # ln2 gamma/beta
            const_spec((E, H4)), const_spec((1, H4)),           # ff W1, b1
            const_spec((H4, E)), const_spec((1, E)),            # ff W2, b2
        ]
        out_spec = pl.BlockSpec((b_tile, T, E), lambda i: (i, 0, 0))

        return pl.pallas_call(
            kernel,
            out_shape=jax.ShapeDtypeStruct((B, T, E), x.dtype),
            grid_spec=pltpu.PrefetchScalarGridSpec(
                num_scalar_prefetch=0,
                grid=grid,
                in_specs=in_specs,
                out_specs=out_spec,
                scratch_shapes=[pltpu.VMEM((b_tile, T, E), jnp.float32)],
            ),
            compiler_params=pltpu.CompilerParams(
                dimension_semantics=("parallel",),
                vmem_limit_bytes=32 * 1024 * 1024,
            ),
        )(x, ln1_g, ln1_b, wqkv, proj_w, proj_b, ln2_g, ln2_b,
          ff_w1, ff_b1, ff_w2, ff_b2)

    try:
        return _run(pl.Buffered(1))
    except Exception:
        # Fallback if single-buffered pipeline_mode is unsupported in this
        # JAX build — correctness is identical, only VMEM footprint differs.
        return _run(None)


# ---------------------------------------------------------------------------
# Pure-JAX reference (same math as the PyTorch module) for correctness checks.
# ---------------------------------------------------------------------------
def reference_forward(x, params, *, num_heads):
    (ln1_g, ln1_b, wq, wk, wv, proj_w, proj_b,
     ln2_g, ln2_b, ff_w1, ff_b1, ff_w2, ff_b2) = params
    B, T, E = x.shape
    Hs = E // num_heads

    def layernorm(v, g, b):
        mean = jnp.mean(v, axis=-1, keepdims=True)
        var = jnp.sum((v - mean) ** 2, axis=-1, keepdims=True) / (E - 1)
        std = jnp.sqrt(var)
        return g * (v - mean) / jnp.sqrt(std + EPS) + b

    h1 = layernorm(x, ln1_g, ln1_b)
    q = h1 @ wq; k = h1 @ wk; v = h1 @ wv
    q = q.reshape(B, T, num_heads, Hs).transpose(0, 2, 1, 3)
    k = k.reshape(B, T, num_heads, Hs).transpose(0, 2, 1, 3)
    v = v.reshape(B, T, num_heads, Hs).transpose(0, 2, 1, 3)
    wei = jnp.einsum("bhqd,bhkd->bhqk", q, k) * E ** (-0.5)
    mask = jnp.tril(jnp.ones((T, T), bool))
    wei = jnp.where(mask, wei, -1e9)
    wei = jax.nn.softmax(wei, axis=-1)
    attn = jnp.einsum("bhqk,bhkd->bhqd", wei, v)
    attn = attn.transpose(0, 2, 1, 3).reshape(B, T, E)
    attn = attn @ proj_w + proj_b
    x2 = x + attn
    h2 = layernorm(x2, ln2_g, ln2_b)
    ff = jnp.maximum(h2 @ ff_w1 + ff_b1, 0.0) @ ff_w2 + ff_b2
    return x2 + ff


if __name__ == "__main__":
    B, T, E, num_heads = 2, 8, 32, 4   # batch, block_size (seq), embed_dim, heads
    H4 = 4 * E

    key = jax.random.PRNGKey(0)
    keys = jax.random.split(key, 10)

    x = jax.random.normal(keys[0], (B, T, E), jnp.float32)

    # Deterministic synthetic parameters (shapes per the module __init__).
    # Per-head Linear(E, head_size, bias=False) weights are concatenated along
    # the output axis so a single (E, E) block holds all heads of Q/K/V.
    scale = 0.02
    wq = scale * jax.random.normal(keys[1], (E, E), jnp.float32)
    wk = scale * jax.random.normal(keys[2], (E, E), jnp.float32)
    wv = scale * jax.random.normal(keys[3], (E, E), jnp.float32)
    proj_w = scale * jax.random.normal(keys[4], (E, E), jnp.float32)
    proj_b = scale * jax.random.normal(keys[5], (1, E), jnp.float32)
    ff_w1 = scale * jax.random.normal(keys[6], (E, H4), jnp.float32)
    ff_b1 = scale * jax.random.normal(keys[7], (1, H4), jnp.float32)
    ff_w2 = scale * jax.random.normal(keys[8], (H4, E), jnp.float32)
    ff_b2 = scale * jax.random.normal(keys[9], (1, E), jnp.float32)
    ln1_g = jnp.ones((1, E), jnp.float32)
    ln1_b = jnp.zeros((1, E), jnp.float32)
    ln2_g = jnp.ones((1, E), jnp.float32)
    ln2_b = jnp.zeros((1, E), jnp.float32)

    params = (ln1_g, ln1_b, wq, wk, wv, proj_w, proj_b,
              ln2_g, ln2_b, ff_w1, ff_b1, ff_w2, ff_b2)

    ref = reference_forward(x, params, num_heads=num_heads)

    # f32 MXU path. Tolerance 1e-3 covers the EUP approx-reciprocal / rsqrt
    # normalization paths (actual error is far below this).
    out = transformer_block(x, params, num_heads=num_heads)
    out = jax.block_until_ready(out)
    assert out.shape == (B, T, E)
    assert jnp.allclose(out, ref, atol=1e-3, rtol=1e-3), "f32 mismatch vs reference"

    # bf16 MXU inputs (f32 accumulation, f32 LN/softmax) — looser tolerance for
    # bf16 rounding of activations/weights at the matmul inputs.
    out_bf16 = jax.block_until_ready(
        transformer_block(x, params, num_heads=num_heads,
                          compute_dtype=jnp.bfloat16))
    assert jnp.allclose(out_bf16, ref, atol=1e-2, rtol=1e-2), "bf16 mismatch vs reference"

    print("KERNEL_OK")
</pallas_src>

<mosaic_0001>
module attributes {stable_mosaic.version = 11 : i64} {
  func.func @transformer_block_kernel(%arg0: i32, %arg1: memref<1x8x32xf32, #tpu.memory_space<vmem>>, %arg2: memref<1x32xf32, #tpu.memory_space<vmem>>, %arg3: memref<1x32xf32, #tpu.memory_space<vmem>>, %arg4: memref<32x96xf32, #tpu.memory_space<vmem>>, %arg5: memref<32x32xf32, #tpu.memory_space<vmem>>, %arg6: memref<1x32xf32, #tpu.memory_space<vmem>>, %arg7: memref<1x32xf32, #tpu.memory_space<vmem>>, %arg8: memref<1x32xf32, #tpu.memory_space<vmem>>, %arg9: memref<32x128xf32, #tpu.memory_space<vmem>>, %arg10: memref<1x128xf32, #tpu.memory_space<vmem>>, %arg11: memref<128x32xf32, #tpu.memory_space<vmem>>, %arg12: memref<1x32xf32, #tpu.memory_space<vmem>>, %arg13: memref<1x8x32xf32, #tpu.memory_space<vmem>>, %arg14: memref<1x8x32xf32, #tpu.memory_space<vmem>>) attributes {dimension_semantics = [#tpu.dimension_semantics<parallel>], iteration_bounds = array<i64: 2>, scalar_prefetch = 0 : i64, scratch_operands = 1 : i64, tpu.core_type = #tpu.core_type<tc>, window_params = [{transform_indices = @transform_0, window_bounds = array<i64: 1, 8, 32>}, {pipeline_mode = #tpu.pipeline_mode<synchronous>, transform_indices = @transform_1, window_bounds = array<i64: 1, 32>}, {pipeline_mode = #tpu.pipeline_mode<synchronous>, transform_indices = @transform_2, window_bounds = array<i64: 1, 32>}, {pipeline_mode = #tpu.pipeline_mode<synchronous>, transform_indices = @transform_3, window_bounds = array<i64: 32, 96>}, {pipeline_mode = #tpu.pipeline_mode<synchronous>, transform_indices = @transform_4, window_bounds = array<i64: 32, 32>}, {pipeline_mode = #tpu.pipeline_mode<synchronous>, transform_indices = @transform_5, window_bounds = array<i64: 1, 32>}, {pipeline_mode = #tpu.pipeline_mode<synchronous>, transform_indices = @transform_6, window_bounds = array<i64: 1, 32>}, {pipeline_mode = #tpu.pipeline_mode<synchronous>, transform_indices = @transform_7, window_bounds = array<i64: 1, 32>}, {pipeline_mode = #tpu.pipeline_mode<synchronous>, transform_indices = @transform_8, window_bounds = array<i64: 32, 128>}, {pipeline_mode = #tpu.pipeline_mode<synchronous>, transform_indices = @transform_9, window_bounds = array<i64: 1, 128>}, {pipeline_mode = #tpu.pipeline_mode<synchronous>, transform_indices = @transform_10, window_bounds = array<i64: 128, 32>}, {pipeline_mode = #tpu.pipeline_mode<synchronous>, transform_indices = @transform_11, window_bounds = array<i64: 1, 32>}, {transform_indices = @transform_12, window_bounds = array<i64: 1, 8, 32>}]} {
    %c0 = arith.constant 0 : index
    %c0_0 = arith.constant 0 : index
    %c0_1 = arith.constant 0 : index
    %0 = vector.load %arg1[%c0, %c0_0, %c0_1] : memref<1x8x32xf32, #tpu.memory_space<vmem>>, vector<1x8x32xf32>
    %1 = vector.shape_cast %0 : vector<1x8x32xf32> to vector<8x32xf32>
    %c0_2 = arith.constant 0 : index
    %c0_3 = arith.constant 0 : index
    %2 = vector.load %arg2[%c0_2, %c0_3] : memref<1x32xf32, #tpu.memory_space<vmem>>, vector<1x32xf32>
    %c0_4 = arith.constant 0 : index
    %c0_5 = arith.constant 0 : index
    %3 = vector.load %arg3[%c0_4, %c0_5] : memref<1x32xf32, #tpu.memory_space<vmem>>, vector<1x32xf32>
    %cst = arith.constant dense<0.000000e+00> : vector<8xf32>
    %4 = vector.multi_reduction <add>, %1, %cst [1] : vector<8x32xf32> to vector<8xf32>
    %5 = vector.shape_cast %4 : vector<8xf32> to vector<8x1xf32>
    %cst_6 = arith.constant 3.125000e-02 : f32
    %6 = vector.broadcast %cst_6 : f32 to vector<8x1xf32>
    %7 = arith.mulf %5, %6 : vector<8x1xf32>
    %8 = vector.broadcast %7 : vector<8x1xf32> to vector<8x32xf32>
    %9 = arith.subf %1, %8 : vector<8x32xf32>
    %10 = arith.mulf %9, %9 : vector<8x32xf32>
    %cst_7 = arith.constant dense<0.000000e+00> : vector<8xf32>
    %11 = vector.multi_reduction <add>, %10, %cst_7 [1] : vector<8x32xf32> to vector<8xf32>
    %12 = vector.shape_cast %11 : vector<8xf32> to vector<8x1xf32>
    %cst_8 = arith.constant 0.0322580636 : f32
    %13 = vector.broadcast %cst_8 : f32 to vector<8x1xf32>
    %14 = arith.mulf %12, %13 : vector<8x1xf32>
    %15 = math.sqrt %14 : vector<8x1xf32>
    %cst_9 = arith.constant 9.99999997E-7 : f32
    %16 = vector.broadcast %cst_9 : f32 to vector<8x1xf32>
    %17 = arith.addf %15, %16 : vector<8x1xf32>
    %18 = math.rsqrt %17 : vector<8x1xf32>
    %19 = vector.broadcast %18 : vector<8x1xf32> to vector<8x32xf32>
    %20 = arith.mulf %9, %19 : vector<8x32xf32>
    %21 = vector.broadcast %2 : vector<1x32xf32> to vector<8x32xf32>
    %22 = arith.mulf %21, %20 : vector<8x32xf32>
    %23 = vector.broadcast %3 : vector<1x32xf32> to vector<8x32xf32>
    %24 = arith.addf %22, %23 : vector<8x32xf32>
    %c0_10 = arith.constant 0 : index
    %c0_11 = arith.constant 0 : index
    %25 = vector.load %arg4[%c0_10, %c0_11] : memref<32x96xf32, #tpu.memory_space<vmem>>, vector<32x96xf32>
    %cst_12 = arith.constant dense<0.000000e+00> : vector<8x96xf32>
    %26 = tpu.matmul %24, %25, %cst_12 {dimension_numbers = #tpu.dot_dimension_numbers<[1], [0], [0], [1], [0, 0, 1, 1], [], []>} : vector<8x32xf32>, vector<32x96xf32>, vector<8x96xf32> -> vector<8x96xf32>
    %27 = vector.extract_strided_slice %26 {offsets = [0, 0], sizes = [8, 32], strides = [1, 1]} : vector<8x96xf32> to vector<8x32xf32>
    %28 = vector.shape_cast %27 : vector<8x32xf32> to vector<1x8x32xf32>
    %29 = vector.extract_strided_slice %26 {offsets = [0, 32], sizes = [8, 32], strides = [1, 1]} : vector<8x96xf32> to vector<8x32xf32>
    %30 = vector.shape_cast %29 : vector<8x32xf32> to vector<1x8x32xf32>
    %31 = vector.extract_strided_slice %26 {offsets = [0, 64], sizes = [8, 32], strides = [1, 1]} : vector<8x96xf32> to vector<8x32xf32>
    %32 = vector.shape_cast %31 : vector<8x32xf32> to vector<1x8x32xf32>
    %33 = tpu.iota {dimensions = array<i32: 0>} : vector<8x8xi32>
    %34 = tpu.iota {dimensions = array<i32: 1>} : vector<8x8xi32>
    %35 = arith.cmpi sle, %34, %33 : vector<8x8xi32>
    %36 = vector.shape_cast %35 : vector<8x8xi1> to vector<1x8x8xi1>
    %37 = vector.extract_strided_slice %28 {offsets = [0, 0, 0], sizes = [1, 8, 8], strides = [1, 1, 1]} : vector<1x8x32xf32> to vector<1x8x8xf32>
    %38 = vector.extract_strided_slice %30 {offsets = [0, 0, 0], sizes = [1, 8, 8], strides = [1, 1, 1]} : vector<1x8x32xf32> to vector<1x8x8xf32>
    %39 = vector.extract_strided_slice %32 {offsets = [0, 0, 0], sizes = [1, 8, 8], strides = [1, 1, 1]} : vector<1x8x32xf32> to vector<1x8x8xf32>
    %cst_13 = arith.constant dense<0.000000e+00> : vector<1x8x8xf32>
    %40 = tpu.matmul %37, %38, %cst_13 {dimension_numbers = #tpu.dot_dimension_numbers<[2], [2], [1], [1], [0, 0, 0, 1, 1, 1], [0], [0]>} : vector<1x8x8xf32>, vector<1x8x8xf32>, vector<1x8x8xf32> -> vector<1x8x8xf32>
    %cst_14 = arith.constant -1.000000e+09 : f32
    %41 = vector.broadcast %cst_14 : f32 to vector<1x8x8xf32>
    %42 = arith.select %36, %40, %41 : vector<1x8x8xi1>, vector<1x8x8xf32>
    %cst_15 = arith.constant dense<0xFF800000> : vector<1x8xf32>
    %43 = vector.multi_reduction <maximumf>, %42, %cst_15 [2] : vector<1x8x8xf32> to vector<1x8xf32>
    %44 = vector.shape_cast %43 : vector<1x8xf32> to vector<1x8x1xf32>
    %45 = vector.broadcast %44 : vector<1x8x1xf32> to vector<1x8x8xf32>
    %46 = arith.subf %42, %45 : vector<1x8x8xf32>
    %47 = math.exp %46 : vector<1x8x8xf32>
    %cst_16 = arith.constant dense<0.000000e+00> : vector<1x8xf32>
    %48 = vector.multi_reduction <add>, %47, %cst_16 [2] : vector<1x8x8xf32> to vector<1x8xf32>
    %49 = vector.shape_cast %48 : vector<1x8xf32> to vector<1x8x1xf32>
    %50 = tpu.reciprocal %49 {approx = true} : vector<1x8x1xf32> -> vector<1x8x1xf32>
    %51 = vector.broadcast %50 : vector<1x8x1xf32> to vector<1x8x8xf32>
    %52 = arith.mulf %47, %51 : vector<1x8x8xf32>
    %cst_17 = arith.constant dense<0.000000e+00> : vector<1x8x8xf32>
    %53 = tpu.matmul %52, %39, %cst_17 {dimension_numbers = #tpu.dot_dimension_numbers<[2], [1], [1], [2], [0, 0, 0, 1, 1, 2], [0], [0]>} : vector<1x8x8xf32>, vector<1x8x8xf32>, vector<1x8x8xf32> -> vector<1x8x8xf32>
    %c0_18 = arith.constant 0 : index
    %c0_19 = arith.constant 0 : index
    %c0_20 = arith.constant 0 : index
    %54 = vector.load %arg14[%c0_18, %c0_19, %c0_20] : memref<1x8x32xf32, #tpu.memory_space<vmem>>, vector<1x8x8xf32>
    tpu.vector_store %arg14[%c0_18, %c0_19, %c0_20], %53 {strides = array<i32>} : memref<1x8x32xf32, #tpu.memory_space<vmem>>, vector<1x8x8xf32>,
    %55 = vector.extract_strided_slice %28 {offsets = [0, 0, 8], sizes = [1, 8, 8], strides = [1, 1, 1]} : vector<1x8x32xf32> to vector<1x8x8xf32>
    %56 = vector.extract_strided_slice %30 {offsets = [0, 0, 8], sizes = [1, 8, 8], strides = [1, 1, 1]} : vector<1x8x32xf32> to vector<1x8x8xf32>
    %57 = vector.extract_strided_slice %32 {offsets = [0, 0, 8], sizes = [1, 8, 8], strides = [1, 1, 1]} : vector<1x8x32xf32> to vector<1x8x8xf32>
    %cst_21 = arith.constant dense<0.000000e+00> : vector<1x8x8xf32>
    %58 = tpu.matmul %55, %56, %cst_21 {dimension_numbers = #tpu.dot_dimension_numbers<[2], [2], [1], [1], [0, 0, 0, 1, 1, 1], [0], [0]>} : vector<1x8x8xf32>, vector<1x8x8xf32>, vector<1x8x8xf32> -> vector<1x8x8xf32>
    %cst_22 = arith.constant -1.000000e+09 : f32
    %59 = vector.broadcast %cst_22 : f32 to vector<1x8x8xf32>
    %60 = arith.select %36, %58, %59 : vector<1x8x8xi1>, vector<1x8x8xf32>
    %cst_23 = arith.constant dense<0xFF800000> : vector<1x8xf32>
    %61 = vector.multi_reduction <maximumf>, %60, %cst_23 [2] : vector<1x8x8xf32> to vector<1x8xf32>
    %62 = vector.shape_cast %61 : vector<1x8xf32> to vector<1x8x1xf32>
    %63 = vector.broadcast %62 : vector<1x8x1xf32> to vector<1x8x8xf32>
    %64 = arith.subf %60, %63 : vector<1x8x8xf32>
    %65 = math.exp %64 : vector<1x8x8xf32>
    %cst_24 = arith.constant dense<0.000000e+00> : vector<1x8xf32>
    %66 = vector.multi_reduction <add>, %65, %cst_24 [2] : vector<1x8x8xf32> to vector<1x8xf32>
    %67 = vector.shape_cast %66 : vector<1x8xf32> to vector<1x8x1xf32>
    %68 = tpu.reciprocal %67 {approx = true} : vector<1x8x1xf32> -> vector<1x8x1xf32>
    %69 = vector.broadcast %68 : vector<1x8x1xf32> to vector<1x8x8xf32>
    %70 = arith.mulf %65, %69 : vector<1x8x8xf32>
    %cst_25 = arith.constant dense<0.000000e+00> : vector<1x8x8xf32>
    %71 = tpu.matmul %70, %57, %cst_25 {dimension_numbers = #tpu.dot_dimension_numbers<[2], [1], [1], [2], [0, 0, 0, 1, 1, 2], [0], [0]>} : vector<1x8x8xf32>, vector<1x8x8xf32>, vector<1x8x8xf32> -> vector<1x8x8xf32>
    %c0_26 = arith.constant 0 : index
    %c0_27 = arith.constant 0 : index
    %c8 = arith.constant 8 : index
    %72 = vector.load %arg14[%c0_26, %c0_27, %c8] : memref<1x8x32xf32, #tpu.memory_space<vmem>>, vector<1x8x8xf32>
    tpu.vector_store %arg14[%c0_26, %c0_27, %c8], %71 {strides = array<i32>} : memref<1x8x32xf32, #tpu.memory_space<vmem>>, vector<1x8x8xf32>,
    %73 = vector.extract_strided_slice %28 {offsets = [0, 0, 16], sizes = [1, 8, 8], strides = [1, 1, 1]} : vector<1x8x32xf32> to vector<1x8x8xf32>
    %74 = vector.extract_strided_slice %30 {offsets = [0, 0, 16], sizes = [1, 8, 8], strides = [1, 1, 1]} : vector<1x8x32xf32> to vector<1x8x8xf32>
    %75 = vector.extract_strided_slice %32 {offsets = [0, 0, 16], sizes = [1, 8, 8], strides = [1, 1, 1]} : vector<1x8x32xf32> to vector<1x8x8xf32>
    %cst_28 = arith.constant dense<0.000000e+00> : vector<1x8x8xf32>
    %76 = tpu.matmul %73, %74, %cst_28 {dimension_numbers = #tpu.dot_dimension_numbers<[2], [2], [1], [1], [0, 0, 0, 1, 1, 1], [0], [0]>} : vector<1x8x8xf32>, vector<1x8x8xf32>, vector<1x8x8xf32> -> vector<1x8x8xf32>
    %cst_29 = arith.constant -1.000000e+09 : f32
    %77 = vector.broadcast %cst_29 : f32 to vector<1x8x8xf32>
    %78 = arith.select %36, %76, %77 : vector<1x8x8xi1>, vector<1x8x8xf32>
    %cst_30 = arith.constant dense<0xFF800000> : vector<1x8xf32>
    %79 = vector.multi_reduction <maximumf>, %78, %cst_30 [2] : vector<1x8x8xf32> to vector<1x8xf32>
    %80 = vector.shape_cast %79 : vector<1x8xf32> to vector<1x8x1xf32>
    %81 = vector.broadcast %80 : vector<1x8x1xf32> to vector<1x8x8xf32>
    %82 = arith.subf %78, %81 : vector<1x8x8xf32>
    %83 = math.exp %82 : vector<1x8x8xf32>
    %cst_31 = arith.constant dense<0.000000e+00> : vector<1x8xf32>
    %84 = vector.multi_reduction <add>, %83, %cst_31 [2] : vector<1x8x8xf32> to vector<1x8xf32>
    %85 = vector.shape_cast %84 : vector<1x8xf32> to vector<1x8x1xf32>
    %86 = tpu.reciprocal %85 {approx = true} : vector<1x8x1xf32> -> vector<1x8x1xf32>
    %87 = vector.broadcast %86 : vector<1x8x1xf32> to vector<1x8x8xf32>
    %88 = arith.mulf %83, %87 : vector<1x8x8xf32>
    %cst_32 = arith.constant dense<0.000000e+00> : vector<1x8x8xf32>
    %89 = tpu.matmul %88, %75, %cst_32 {dimension_numbers = #tpu.dot_dimension_numbers<[2], [1], [1], [2], [0, 0, 0, 1, 1, 2], [0], [0]>} : vector<1x8x8xf32>, vector<1x8x8xf32>, vector<1x8x8xf32> -> vector<1x8x8xf32>
    %c0_33 = arith.constant 0 : index
    %c0_34 = arith.constant 0 : index
    %c16 = arith.constant 16 : index
    %90 = vector.load %arg14[%c0_33, %c0_34, %c16] : memref<1x8x32xf32, #tpu.memory_space<vmem>>, vector<1x8x8xf32>
    tpu.vector_store %arg14[%c0_33, %c0_34, %c16], %89 {strides = array<i32>} : memref<1x8x32xf32, #tpu.memory_space<vmem>>, vector<1x8x8xf32>,
    %91 = vector.extract_strided_slice %28 {offsets = [0, 0, 24], sizes = [1, 8, 8], strides = [1, 1, 1]} : vector<1x8x32xf32> to vector<1x8x8xf32>
    %92 = vector.extract_strided_slice %30 {offsets = [0, 0, 24], sizes = [1, 8, 8], strides = [1, 1, 1]} : vector<1x8x32xf32> to vector<1x8x8xf32>
    %93 = vector.extract_strided_slice %32 {offsets = [0, 0, 24], sizes = [1, 8, 8], strides = [1, 1, 1]} : vector<1x8x32xf32> to vector<1x8x8xf32>
    %cst_35 = arith.constant dense<0.000000e+00> : vector<1x8x8xf32>
    %94 = tpu.matmul %91, %92, %cst_35 {dimension_numbers = #tpu.dot_dimension_numbers<[2], [2], [1], [1], [0, 0, 0, 1, 1, 1], [0], [0]>} : vector<1x8x8xf32>, vector<1x8x8xf32>, vector<1x8x8xf32> -> vector<1x8x8xf32>
    %cst_36 = arith.constant -1.000000e+09 : f32
    %95 = vector.broadcast %cst_36 : f32 to vector<1x8x8xf32>
    %96 = arith.select %36, %94, %95 : vector<1x8x8xi1>, vector<1x8x8xf32>
    %cst_37 = arith.constant dense<0xFF800000> : vector<1x8xf32>
    %97 = vector.multi_reduction <maximumf>, %96, %cst_37 [2] : vector<1x8x8xf32> to vector<1x8xf32>
    %98 = vector.shape_cast %97 : vector<1x8xf32> to vector<1x8x1xf32>
    %99 = vector.broadcast %98 : vector<1x8x1xf32> to vector<1x8x8xf32>
    %100 = arith.subf %96, %99 : vector<1x8x8xf32>
    %101 = math.exp %100 : vector<1x8x8xf32>
    %cst_38 = arith.constant dense<0.000000e+00> : vector<1x8xf32>
    %102 = vector.multi_reduction <add>, %101, %cst_38 [2] : vector<1x8x8xf32> to vector<1x8xf32>
    %103 = vector.shape_cast %102 : vector<1x8xf32> to vector<1x8x1xf32>
    %104 = tpu.reciprocal %103 {approx = true} : vector<1x8x1xf32> -> vector<1x8x1xf32>
    %105 = vector.broadcast %104 : vector<1x8x1xf32> to vector<1x8x8xf32>
    %106 = arith.mulf %101, %105 : vector<1x8x8xf32>
    %cst_39 = arith.constant dense<0.000000e+00> : vector<1x8x8xf32>
    %107 = tpu.matmul %106, %93, %cst_39 {dimension_numbers = #tpu.dot_dimension_numbers<[2], [1], [1], [2], [0, 0, 0, 1, 1, 2], [0], [0]>} : vector<1x8x8xf32>, vector<1x8x8xf32>, vector<1x8x8xf32> -> vector<1x8x8xf32>
    %c0_40 = arith.constant 0 : index
    %c0_41 = arith.constant 0 : index
    %c24 = arith.constant 24 : index
    %108 = vector.load %arg14[%c0_40, %c0_41, %c24] : memref<1x8x32xf32, #tpu.memory_space<vmem>>, vector<1x8x8xf32>
    tpu.vector_store %arg14[%c0_40, %c0_41, %c24], %107 {strides = array<i32>} : memref<1x8x32xf32, #tpu.memory_space<vmem>>, vector<1x8x8xf32>,
    %c0_42 = arith.constant 0 : index
    %c0_43 = arith.constant 0 : index
    %c0_44 = arith.constant 0 : index
    %109 = vector.load %arg14[%c0_42, %c0_43, %c0_44] : memref<1x8x32xf32, #tpu.memory_space<vmem>>, vector<1x8x32xf32>
    %110 = vector.shape_cast %109 : vector<1x8x32xf32> to vector<8x32xf32>
    %c0_45 = arith.constant 0 : index
    %c0_46 = arith.constant 0 : index
    %111 = vector.load %arg5[%c0_45, %c0_46] : memref<32x32xf32, #tpu.memory_space<vmem>>, vector<32x32xf32>
    %cst_47 = arith.constant dense<0.000000e+00> : vector<8x32xf32>
    %112 = tpu.matmul %110, %111, %cst_47 {dimension_numbers = #tpu.dot_dimension_numbers<[1], [0], [0], [1], [0, 0, 1, 1], [], []>} : vector<8x32xf32>, vector<32x32xf32>, vector<8x32xf32> -> vector<8x32xf32>
    %c0_48 = arith.constant 0 : index
    %c0_49 = arith.constant 0 : index
    %113 = vector.load %arg6[%c0_48, %c0_49] : memref<1x32xf32, #tpu.memory_space<vmem>>, vector<1x32xf32>
    %114 = vector.broadcast %113 : vector<1x32xf32> to vector<8x32xf32>
    %115 = arith.addf %112, %114 : vector<8x32xf32>
    %116 = arith.addf %1, %115 : vector<8x32xf32>
    %c0_50 = arith.constant 0 : index
    %c0_51 = arith.constant 0 : index
    %117 = vector.load %arg7[%c0_50, %c0_51] : memref<1x32xf32, #tpu.memory_space<vmem>>, vector<1x32xf32>
    %c0_52 = arith.constant 0 : index
    %c0_53 = arith.constant 0 : index
    %118 = vector.load %arg8[%c0_52, %c0_53] : memref<1x32xf32, #tpu.memory_space<vmem>>, vector<1x32xf32>
    %cst_54 = arith.constant dense<0.000000e+00> : vector<8xf32>
    %119 = vector.multi_reduction <add>, %116, %cst_54 [1] : vector<8x32xf32> to vector<8xf32>
    %120 = vector.shape_cast %119 : vector<8xf32> to vector<8x1xf32>
    %cst_55 = arith.constant 3.125000e-02 : f32
    %121 = vector.broadcast %cst_55 : f32 to vector<8x1xf32>
    %122 = arith.mulf %120, %121 : vector<8x1xf32>
    %123 = vector.broadcast %122 : vector<8x1xf32> to vector<8x32xf32>
    %124 = arith.subf %116, %123 : vector<8x32xf32>
    %125 = arith.mulf %124, %124 : vector<8x32xf32>
    %cst_56 = arith.constant dense<0.000000e+00> : vector<8xf32>
    %126 = vector.multi_reduction <add>, %125, %cst_56 [1] : vector<8x32xf32> to vector<8xf32>
    %127 = vector.shape_cast %126 : vector<8xf32> to vector<8x1xf32>
    %cst_57 = arith.constant 0.0322580636 : f32
    %128 = vector.broadcast %cst_57 : f32 to vector<8x1xf32>
    %129 = arith.mulf %127, %128 : vector<8x1xf32>
    %130 = math.sqrt %129 : vector<8x1xf32>
    %cst_58 = arith.constant 9.99999997E-7 : f32
    %131 = vector.broadcast %cst_58 : f32 to vector<8x1xf32>
    %132 = arith.addf %130, %131 : vector<8x1xf32>
    %133 = math.rsqrt %132 : vector<8x1xf32>
    %134 = vector.broadcast %133 : vector<8x1xf32> to vector<8x32xf32>
    %135 = arith.mulf %124, %134 : vector<8x32xf32>
    %136 = vector.broadcast %117 : vector<1x32xf32> to vector<8x32xf32>
    %137 = arith.mulf %136, %135 : vector<8x32xf32>
    %138 = vector.broadcast %118 : vector<1x32xf32> to vector<8x32xf32>
    %139 = arith.addf %137, %138 : vector<8x32xf32>
    %c0_59 = arith.constant 0 : index
    %c0_60 = arith.constant 0 : index
    %140 = vector.load %arg9[%c0_59, %c0_60] : memref<32x128xf32, #tpu.memory_space<vmem>>, vector<32x128xf32>
    %cst_61 = arith.constant dense<0.000000e+00> : vector<8x128xf32>
    %141 = tpu.matmul %139, %140, %cst_61 {dimension_numbers = #tpu.dot_dimension_numbers<[1], [0], [0], [1], [0, 0, 1, 1], [], []>} : vector<8x32xf32>, vector<32x128xf32>, vector<8x128xf32> -> vector<8x128xf32>
    %c0_62 = arith.constant 0 : index
    %c0_63 = arith.constant 0 : index
    %142 = vector.load %arg10[%c0_62, %c0_63] : memref<1x128xf32, #tpu.memory_space<vmem>>, vector<1x128xf32>
    %143 = vector.broadcast %142 : vector<1x128xf32> to vector<8x128xf32>
    %144 = arith.addf %141, %143 : vector<8x128xf32>
    %cst_64 = arith.constant 0.000000e+00 : f32
    %145 = vector.broadcast %cst_64 : f32 to vector<8x128xf32>
    %146 = arith.maximumf %144, %145 : vector<8x128xf32>
    %c0_65 = arith.constant 0 : index
    %c0_66 = arith.constant 0 : index
    %147 = vector.load %arg11[%c0_65, %c0_66] : memref<128x32xf32, #tpu.memory_space<vmem>>, vector<128x32xf32>
    %cst_67 = arith.constant dense<0.000000e+00> : vector<8x32xf32>
    %148 = tpu.matmul %146, %147, %cst_67 {dimension_numbers = #tpu.dot_dimension_numbers<[1], [0], [0], [1], [0, 0, 1, 1], [], []>} : vector<8x128xf32>, vector<128x32xf32>, vector<8x32xf32> -> vector<8x32xf32>
    %c0_68 = arith.constant 0 : index
    %c0_69 = arith.constant 0 : index
    %149 = vector.load %arg12[%c0_68, %c0_69] : memref<1x32xf32, #tpu.memory_space<vmem>>, vector<1x32xf32>
    %150 = vector.broadcast %149 : vector<1x32xf32> to vector<8x32xf32>
    %151 = arith.addf %148, %150 : vector<8x32xf32>
    %152 = arith.addf %116, %151 : vector<8x32xf32>
    %153 = vector.shape_cast %152 : vector<8x32xf32> to vector<1x8x32xf32>
    %c0_70 = arith.constant 0 : index
    %c0_71 = arith.constant 0 : index
    %c0_72 = arith.constant 0 : index
    %154 = vector.load %arg13[%c0_70, %c0_71, %c0_72] : memref<1x8x32xf32, #tpu.memory_space<vmem>>, vector<1x8x32xf32>
    tpu.vector_store %arg13[%c0_70, %c0_71, %c0_72], %153 {strides = array<i32>} : memref<1x8x32xf32, #tpu.memory_space<vmem>>, vector<1x8x32xf32>,
    return
  }
  func.func @transform_0(%arg0: i32) -> (i32, i32, i32) {
    %c0_i32 = arith.constant 0 : i32
    %c0_i32_0 = arith.constant 0 : i32
    %c0_i32_1 = arith.constant 0 : i32
    return %arg0, %c0_i32, %c0_i32_0 : i32, i32, i32
  }
  func.func @transform_1(%arg0: i32) -> (i32, i32) {
    %c0_i32 = arith.constant 0 : i32
    %c0_i32_0 = arith.constant 0 : i32
    %c0_i32_1 = arith.constant 0 : i32
    return %c0_i32, %c0_i32_0 : i32, i32
  }
  func.func @transform_2(%arg0: i32) -> (i32, i32) {
    %c0_i32 = arith.constant 0 : i32
    %c0_i32_0 = arith.constant 0 : i32
    %c0_i32_1 = arith.constant 0 : i32
    return %c0_i32, %c0_i32_0 : i32, i32
  }
  func.func @transform_3(%arg0: i32) -> (i32, i32) {
    %c0_i32 = arith.constant 0 : i32
    %c0_i32_0 = arith.constant 0 : i32
    %c0_i32_1 = arith.constant 0 : i32
    return %c0_i32, %c0_i32_0 : i32, i32
  }
  func.func @transform_4(%arg0: i32) -> (i32, i32) {
    %c0_i32 = arith.constant 0 : i32
    %c0_i32_0 = arith.constant 0 : i32
    %c0_i32_1 = arith.constant 0 : i32
    return %c0_i32, %c0_i32_0 : i32, i32
  }
  func.func @transform_5(%arg0: i32) -> (i32, i32) {
    %c0_i32 = arith.constant 0 : i32
    %c0_i32_0 = arith.constant 0 : i32
    %c0_i32_1 = arith.constant 0 : i32
    return %c0_i32, %c0_i32_0 : i32, i32
  }
  func.func @transform_6(%arg0: i32) -> (i32, i32) {
    %c0_i32 = arith.constant 0 : i32
    %c0_i32_0 = arith.constant 0 : i32
    %c0_i32_1 = arith.constant 0 : i32
    return %c0_i32, %c0_i32_0 : i32, i32
  }
  func.func @transform_7(%arg0: i32) -> (i32, i32) {
    %c0_i32 = arith.constant 0 : i32
    %c0_i32_0 = arith.constant 0 : i32
    %c0_i32_1 = arith.constant 0 : i32
    return %c0_i32, %c0_i32_0 : i32, i32
  }
  func.func @transform_8(%arg0: i32) -> (i32, i32) {
    %c0_i32 = arith.constant 0 : i32
    %c0_i32_0 = arith.constant 0 : i32
    %c0_i32_1 = arith.constant 0 : i32
    return %c0_i32, %c0_i32_0 : i32, i32
  }
  func.func @transform_9(%arg0: i32) -> (i32, i32) {
    %c0_i32 = arith.constant 0 : i32
    %c0_i32_0 = arith.constant 0 : i32
    %c0_i32_1 = arith.constant 0 : i32
    return %c0_i32, %c0_i32_0 : i32, i32
  }
  func.func @transform_10(%arg0: i32) -> (i32, i32) {
    %c0_i32 = arith.constant 0 : i32
    %c0_i32_0 = arith.constant 0 : i32
    %c0_i32_1 = arith.constant 0 : i32
    return %c0_i32, %c0_i32_0 : i32, i32
  }
  func.func @transform_11(%arg0: i32) -> (i32, i32) {
    %c0_i32 = arith.constant 0 : i32
    %c0_i32_0 = arith.constant 0 : i32
    %c0_i32_1 = arith.constant 0 : i32
    return %c0_i32, %c0_i32_0 : i32, i32
  }
  func.func @transform_12(%arg0: i32) -> (i32, i32, i32) {
    %c0_i32 = arith.constant 0 : i32
    %c0_i32_0 = arith.constant 0 : i32
    %c0_i32_1 = arith.constant 0 : i32
    return %arg0, %c0_i32, %c0_i32_0 : i32, i32, i32
  }
}

module attributes {stable_mosaic.version = 11 : i64} {
  func.func @transformer_block_kernel(%arg0: i32, %arg1: memref<1x8x32xf32, #tpu.memory_space<vmem>>, %arg2: memref<1x32xf32, #tpu.memory_space<vmem>>, %arg3: memref<1x32xf32, #tpu.memory_space<vmem>>, %arg4: memref<32x96xf32, #tpu.memory_space<vmem>>, %arg5: memref<32x32xf32, #tpu.memory_space<vmem>>, %arg6: memref<1x32xf32, #tpu.memory_space<vmem>>, %arg7: memref<1x32xf32, #tpu.memory_space<vmem>>, %arg8: memref<1x32xf32, #tpu.memory_space<vmem>>, %arg9: memref<32x128xf32, #tpu.memory_space<vmem>>, %arg10: memref<1x128xf32, #tpu.memory_space<vmem>>, %arg11: memref<128x32xf32, #tpu.memory_space<vmem>>, %arg12: memref<1x32xf32, #tpu.memory_space<vmem>>, %arg13: memref<1x8x32xf32, #tpu.memory_space<vmem>>, %arg14: memref<1x8x32xf32, #tpu.memory_space<vmem>>) attributes {dimension_semantics = [#tpu.dimension_semantics<parallel>], iteration_bounds = array<i64: 2>, scalar_prefetch = 0 : i64, scratch_operands = 1 : i64, tpu.core_type = #tpu.core_type<tc>, window_params = [{transform_indices = @transform_0, window_bounds = array<i64: 1, 8, 32>}, {pipeline_mode = #tpu.pipeline_mode<synchronous>, transform_indices = @transform_1, window_bounds = array<i64: 1, 32>}, {pipeline_mode = #tpu.pipeline_mode<synchronous>, transform_indices = @transform_2, window_bounds = array<i64: 1, 32>}, {pipeline_mode = #tpu.pipeline_mode<synchronous>, transform_indices = @transform_3, window_bounds = array<i64: 32, 96>}, {pipeline_mode = #tpu.pipeline_mode<synchronous>, transform_indices = @transform_4, window_bounds = array<i64: 32, 32>}, {pipeline_mode = #tpu.pipeline_mode<synchronous>, transform_indices = @transform_5, window_bounds = array<i64: 1, 32>}, {pipeline_mode = #tpu.pipeline_mode<synchronous>, transform_indices = @transform_6, window_bounds = array<i64: 1, 32>}, {pipeline_mode = #tpu.pipeline_mode<synchronous>, transform_indices = @transform_7, window_bounds = array<i64: 1, 32>}, {pipeline_mode = #tpu.pipeline_mode<synchronous>, transform_indices = @transform_8, window_bounds = array<i64: 32, 128>}, {pipeline_mode = #tpu.pipeline_mode<synchronous>, transform_indices = @transform_9, window_bounds = array<i64: 1, 128>}, {pipeline_mode = #tpu.pipeline_mode<synchronous>, transform_indices = @transform_10, window_bounds = array<i64: 128, 32>}, {pipeline_mode = #tpu.pipeline_mode<synchronous>, transform_indices = @transform_11, window_bounds = array<i64: 1, 32>}, {transform_indices = @transform_12, window_bounds = array<i64: 1, 8, 32>}]} {
    %c0 = arith.constant 0 : index
    %c0_0 = arith.constant 0 : index
    %c0_1 = arith.constant 0 : index
    %0 = vector.load %arg1[%c0, %c0_0, %c0_1] : memref<1x8x32xf32, #tpu.memory_space<vmem>>, vector<1x8x32xf32>
    %1 = vector.shape_cast %0 : vector<1x8x32xf32> to vector<8x32xf32>
    %c0_2 = arith.constant 0 : index
    %c0_3 = arith.constant 0 : index
    %2 = vector.load %arg2[%c0_2, %c0_3] : memref<1x32xf32, #tpu.memory_space<vmem>>, vector<1x32xf32>
    %c0_4 = arith.constant 0 : index
    %c0_5 = arith.constant 0 : index
    %3 = vector.load %arg3[%c0_4, %c0_5] : memref<1x32xf32, #tpu.memory_space<vmem>>, vector<1x32xf32>
    %cst = arith.constant dense<0.000000e+00> : vector<8xf32>
    %4 = vector.multi_reduction <add>, %1, %cst [1] : vector<8x32xf32> to vector<8xf32>
    %5 = vector.shape_cast %4 : vector<8xf32> to vector<8x1xf32>
    %cst_6 = arith.constant 3.125000e-02 : f32
    %6 = vector.broadcast %cst_6 : f32 to vector<8x1xf32>
    %7 = arith.mulf %5, %6 : vector<8x1xf32>
    %8 = vector.broadcast %7 : vector<8x1xf32> to vector<8x32xf32>
    %9 = arith.subf %1, %8 : vector<8x32xf32>
    %10 = arith.mulf %9, %9 : vector<8x32xf32>
    %cst_7 = arith.constant dense<0.000000e+00> : vector<8xf32>
    %11 = vector.multi_reduction <add>, %10, %cst_7 [1] : vector<8x32xf32> to vector<8xf32>
    %12 = vector.shape_cast %11 : vector<8xf32> to vector<8x1xf32>
    %cst_8 = arith.constant 0.0322580636 : f32
    %13 = vector.broadcast %cst_8 : f32 to vector<8x1xf32>
    %14 = arith.mulf %12, %13 : vector<8x1xf32>
    %15 = math.sqrt %14 : vector<8x1xf32>
    %cst_9 = arith.constant 9.99999997E-7 : f32
    %16 = vector.broadcast %cst_9 : f32 to vector<8x1xf32>
    %17 = arith.addf %15, %16 : vector<8x1xf32>
    %18 = math.rsqrt %17 : vector<8x1xf32>
    %19 = vector.broadcast %18 : vector<8x1xf32> to vector<8x32xf32>
    %20 = arith.mulf %9, %19 : vector<8x32xf32>
    %21 = vector.broadcast %2 : vector<1x32xf32> to vector<8x32xf32>
    %22 = arith.mulf %21, %20 : vector<8x32xf32>
    %23 = vector.broadcast %3 : vector<1x32xf32> to vector<8x32xf32>
    %24 = arith.addf %22, %23 : vector<8x32xf32>
    %c0_10 = arith.constant 0 : index
    %c0_11 = arith.constant 0 : index
    %25 = vector.load %arg4[%c0_10, %c0_11] : memref<32x96xf32, #tpu.memory_space<vmem>>, vector<32x96xf32>
    %cst_12 = arith.constant dense<0.000000e+00> : vector<8x96xf32>
    %26 = tpu.matmul %24, %25, %cst_12 {dimension_numbers = #tpu.dot_dimension_numbers<[1], [0], [0], [1], [0, 0, 1, 1], [], []>} : vector<8x32xf32>, vector<32x96xf32>, vector<8x96xf32> -> vector<8x96xf32>
    %27 = vector.extract_strided_slice %26 {offsets = [0, 0], sizes = [8, 32], strides = [1, 1]} : vector<8x96xf32> to vector<8x32xf32>
    %28 = vector.shape_cast %27 : vector<8x32xf32> to vector<1x8x32xf32>
    %29 = vector.extract_strided_slice %26 {offsets = [0, 32], sizes = [8, 32], strides = [1, 1]} : vector<8x96xf32> to vector<8x32xf32>
    %30 = vector.shape_cast %29 : vector<8x32xf32> to vector<1x8x32xf32>
    %31 = vector.extract_strided_slice %26 {offsets = [0, 64], sizes = [8, 32], strides = [1, 1]} : vector<8x96xf32> to vector<8x32xf32>
    %32 = vector.shape_cast %31 : vector<8x32xf32> to vector<1x8x32xf32>
    %33 = tpu.iota {dimensions = array<i32: 0>} : vector<8x8xi32>
    %34 = tpu.iota {dimensions = array<i32: 1>} : vector<8x8xi32>
    %35 = arith.cmpi sle, %34, %33 : vector<8x8xi32>
    %36 = vector.shape_cast %35 : vector<8x8xi1> to vector<1x8x8xi1>
    %37 = vector.extract_strided_slice %28 {offsets = [0, 0, 0], sizes = [1, 8, 8], strides = [1, 1, 1]} : vector<1x8x32xf32> to vector<1x8x8xf32>
    %38 = vector.extract_strided_slice %30 {offsets = [0, 0, 0], sizes = [1, 8, 8], strides = [1, 1, 1]} : vector<1x8x32xf32> to vector<1x8x8xf32>
    %39 = vector.extract_strided_slice %32 {offsets = [0, 0, 0], sizes = [1, 8, 8], strides = [1, 1, 1]} : vector<1x8x32xf32> to vector<1x8x8xf32>
    %cst_13 = arith.constant dense<0.000000e+00> : vector<1x8x8xf32>
    %40 = tpu.matmul %37, %38, %cst_13 {dimension_numbers = #tpu.dot_dimension_numbers<[2], [2], [1], [1], [0, 0, 0, 1, 1, 1], [0], [0]>} : vector<1x8x8xf32>, vector<1x8x8xf32>, vector<1x8x8xf32> -> vector<1x8x8xf32>
    %cst_14 = arith.constant -1.000000e+09 : f32
    %41 = vector.broadcast %cst_14 : f32 to vector<1x8x8xf32>
    %42 = arith.select %36, %40, %41 : vector<1x8x8xi1>, vector<1x8x8xf32>
    %cst_15 = arith.constant dense<0xFF800000> : vector<1x8xf32>
    %43 = vector.multi_reduction <maximumf>, %42, %cst_15 [2] : vector<1x8x8xf32> to vector<1x8xf32>
    %44 = vector.shape_cast %43 : vector<1x8xf32> to vector<1x8x1xf32>
    %45 = vector.broadcast %44 : vector<1x8x1xf32> to vector<1x8x8xf32>
    %46 = arith.subf %42, %45 : vector<1x8x8xf32>
    %47 = math.exp %46 : vector<1x8x8xf32>
    %cst_16 = arith.constant dense<0.000000e+00> : vector<1x8xf32>
    %48 = vector.multi_reduction <add>, %47, %cst_16 [2] : vector<1x8x8xf32> to vector<1x8xf32>
    %49 = vector.shape_cast %48 : vector<1x8xf32> to vector<1x8x1xf32>
    %50 = tpu.reciprocal %49 {approx = true} : vector<1x8x1xf32> -> vector<1x8x1xf32>
    %51 = vector.broadcast %50 : vector<1x8x1xf32> to vector<1x8x8xf32>
    %52 = arith.mulf %47, %51 : vector<1x8x8xf32>
    %cst_17 = arith.constant dense<0.000000e+00> : vector<1x8x8xf32>
    %53 = tpu.matmul %52, %39, %cst_17 {dimension_numbers = #tpu.dot_dimension_numbers<[2], [1], [1], [2], [0, 0, 0, 1, 1, 2], [0], [0]>} : vector<1x8x8xf32>, vector<1x8x8xf32>, vector<1x8x8xf32> -> vector<1x8x8xf32>
    %c0_18 = arith.constant 0 : index
    %c0_19 = arith.constant 0 : index
    %c0_20 = arith.constant 0 : index
    %54 = vector.load %arg14[%c0_18, %c0_19, %c0_20] : memref<1x8x32xf32, #tpu.memory_space<vmem>>, vector<1x8x8xf32>
    tpu.vector_store %arg14[%c0_18, %c0_19, %c0_20], %53 {strides = array<i32>} : memref<1x8x32xf32, #tpu.memory_space<vmem>>, vector<1x8x8xf32>,
    %55 = vector.extract_strided_slice %28 {offsets = [0, 0, 8], sizes = [1, 8, 8], strides = [1, 1, 1]} : vector<1x8x32xf32> to vector<1x8x8xf32>
    %56 = vector.extract_strided_slice %30 {offsets = [0, 0, 8], sizes = [1, 8, 8], strides = [1, 1, 1]} : vector<1x8x32xf32> to vector<1x8x8xf32>
    %57 = vector.extract_strided_slice %32 {offsets = [0, 0, 8], sizes = [1, 8, 8], strides = [1, 1, 1]} : vector<1x8x32xf32> to vector<1x8x8xf32>
    %cst_21 = arith.constant dense<0.000000e+00> : vector<1x8x8xf32>
    %58 = tpu.matmul %55, %56, %cst_21 {dimension_numbers = #tpu.dot_dimension_numbers<[2], [2], [1], [1], [0, 0, 0, 1, 1, 1], [0], [0]>} : vector<1x8x8xf32>, vector<1x8x8xf32>, vector<1x8x8xf32> -> vector<1x8x8xf32>
    %cst_22 = arith.constant -1.000000e+09 : f32
    %59 = vector.broadcast %cst_22 : f32 to vector<1x8x8xf32>
    %60 = arith.select %36, %58, %59 : vector<1x8x8xi1>, vector<1x8x8xf32>
    %cst_23 = arith.constant dense<0xFF800000> : vector<1x8xf32>
    %61 = vector.multi_reduction <maximumf>, %60, %cst_23 [2] : vector<1x8x8xf32> to vector<1x8xf32>
    %62 = vector.shape_cast %61 : vector<1x8xf32> to vector<1x8x1xf32>
    %63 = vector.broadcast %62 : vector<1x8x1xf32> to vector<1x8x8xf32>
    %64 = arith.subf %60, %63 : vector<1x8x8xf32>
    %65 = math.exp %64 : vector<1x8x8xf32>
    %cst_24 = arith.constant dense<0.000000e+00> : vector<1x8xf32>
    %66 = vector.multi_reduction <add>, %65, %cst_24 [2] : vector<1x8x8xf32> to vector<1x8xf32>
    %67 = vector.shape_cast %66 : vector<1x8xf32> to vector<1x8x1xf32>
    %68 = tpu.reciprocal %67 {approx = true} : vector<1x8x1xf32> -> vector<1x8x1xf32>
    %69 = vector.broadcast %68 : vector<1x8x1xf32> to vector<1x8x8xf32>
    %70 = arith.mulf %65, %69 : vector<1x8x8xf32>
    %cst_25 = arith.constant dense<0.000000e+00> : vector<1x8x8xf32>
    %71 = tpu.matmul %70, %57, %cst_25 {dimension_numbers = #tpu.dot_dimension_numbers<[2], [1], [1], [2], [0, 0, 0, 1, 1, 2], [0], [0]>} : vector<1x8x8xf32>, vector<1x8x8xf32>, vector<1x8x8xf32> -> vector<1x8x8xf32>
    %c0_26 = arith.constant 0 : index
    %c0_27 = arith.constant 0 : index
    %c8 = arith.constant 8 : index
    %72 = vector.load %arg14[%c0_26, %c0_27, %c8] : memref<1x8x32xf32, #tpu.memory_space<vmem>>, vector<1x8x8xf32>
    tpu.vector_store %arg14[%c0_26, %c0_27, %c8], %71 {strides = array<i32>} : memref<1x8x32xf32, #tpu.memory_space<vmem>>, vector<1x8x8xf32>,
    %73 = vector.extract_strided_slice %28 {offsets = [0, 0, 16], sizes = [1, 8, 8], strides = [1, 1, 1]} : vector<1x8x32xf32> to vector<1x8x8xf32>
    %74 = vector.extract_strided_slice %30 {offsets = [0, 0, 16], sizes = [1, 8, 8], strides = [1, 1, 1]} : vector<1x8x32xf32> to vector<1x8x8xf32>
    %75 = vector.extract_strided_slice %32 {offsets = [0, 0, 16], sizes = [1, 8, 8], strides = [1, 1, 1]} : vector<1x8x32xf32> to vector<1x8x8xf32>
    %cst_28 = arith.constant dense<0.000000e+00> : vector<1x8x8xf32>
    %76 = tpu.matmul %73, %74, %cst_28 {dimension_numbers = #tpu.dot_dimension_numbers<[2], [2], [1], [1], [0, 0, 0, 1, 1, 1], [0], [0]>} : vector<1x8x8xf32>, vector<1x8x8xf32>, vector<1x8x8xf32> -> vector<1x8x8xf32>
    %cst_29 = arith.constant -1.000000e+09 : f32
    %77 = vector.broadcast %cst_29 : f32 to vector<1x8x8xf32>
    %78 = arith.select %36, %76, %77 : vector<1x8x8xi1>, vector<1x8x8xf32>
    %cst_30 = arith.constant dense<0xFF800000> : vector<1x8xf32>
    %79 = vector.multi_reduction <maximumf>, %78, %cst_30 [2] : vector<1x8x8xf32> to vector<1x8xf32>
    %80 = vector.shape_cast %79 : vector<1x8xf32> to vector<1x8x1xf32>
    %81 = vector.broadcast %80 : vector<1x8x1xf32> to vector<1x8x8xf32>
    %82 = arith.subf %78, %81 : vector<1x8x8xf32>
    %83 = math.exp %82 : vector<1x8x8xf32>
    %cst_31 = arith.constant dense<0.000000e+00> : vector<1x8xf32>
    %84 = vector.multi_reduction <add>, %83, %cst_31 [2] : vector<1x8x8xf32> to vector<1x8xf32>
    %85 = vector.shape_cast %84 : vector<1x8xf32> to vector<1x8x1xf32>
    %86 = tpu.reciprocal %85 {approx = true} : vector<1x8x1xf32> -> vector<1x8x1xf32>
    %87 = vector.broadcast %86 : vector<1x8x1xf32> to vector<1x8x8xf32>
    %88 = arith.mulf %83, %87 : vector<1x8x8xf32>
    %cst_32 = arith.constant dense<0.000000e+00> : vector<1x8x8xf32>
    %89 = tpu.matmul %88, %75, %cst_32 {dimension_numbers = #tpu.dot_dimension_numbers<[2], [1], [1], [2], [0, 0, 0, 1, 1, 2], [0], [0]>} : vector<1x8x8xf32>, vector<1x8x8xf32>, vector<1x8x8xf32> -> vector<1x8x8xf32>
    %c0_33 = arith.constant 0 : index
    %c0_34 = arith.constant 0 : index
    %c16 = arith.constant 16 : index
    %90 = vector.load %arg14[%c0_33, %c0_34, %c16] : memref<1x8x32xf32, #tpu.memory_space<vmem>>, vector<1x8x8xf32>
    tpu.vector_store %arg14[%c0_33, %c0_34, %c16], %89 {strides = array<i32>} : memref<1x8x32xf32, #tpu.memory_space<vmem>>, vector<1x8x8xf32>,
    %91 = vector.extract_strided_slice %28 {offsets = [0, 0, 24], sizes = [1, 8, 8], strides = [1, 1, 1]} : vector<1x8x32xf32> to vector<1x8x8xf32>
    %92 = vector.extract_strided_slice %30 {offsets = [0, 0, 24], sizes = [1, 8, 8], strides = [1, 1, 1]} : vector<1x8x32xf32> to vector<1x8x8xf32>
    %93 = vector.extract_strided_slice %32 {offsets = [0, 0, 24], sizes = [1, 8, 8], strides = [1, 1, 1]} : vector<1x8x32xf32> to vector<1x8x8xf32>
    %cst_35 = arith.constant dense<0.000000e+00> : vector<1x8x8xf32>
    %94 = tpu.matmul %91, %92, %cst_35 {dimension_numbers = #tpu.dot_dimension_numbers<[2], [2], [1], [1], [0, 0, 0, 1, 1, 1], [0], [0]>} : vector<1x8x8xf32>, vector<1x8x8xf32>, vector<1x8x8xf32> -> vector<1x8x8xf32>
    %cst_36 = arith.constant -1.000000e+09 : f32
    %95 = vector.broadcast %cst_36 : f32 to vector<1x8x8xf32>
    %96 = arith.select %36, %94, %95 : vector<1x8x8xi1>, vector<1x8x8xf32>
    %cst_37 = arith.constant dense<0xFF800000> : vector<1x8xf32>
    %97 = vector.multi_reduction <maximumf>, %96, %cst_37 [2] : vector<1x8x8xf32> to vector<1x8xf32>
    %98 = vector.shape_cast %97 : vector<1x8xf32> to vector<1x8x1xf32>
    %99 = vector.broadcast %98 : vector<1x8x1xf32> to vector<1x8x8xf32>
    %100 = arith.subf %96, %99 : vector<1x8x8xf32>
    %101 = math.exp %100 : vector<1x8x8xf32>
    %cst_38 = arith.constant dense<0.000000e+00> : vector<1x8xf32>
    %102 = vector.multi_reduction <add>, %101, %cst_38 [2] : vector<1x8x8xf32> to vector<1x8xf32>
    %103 = vector.shape_cast %102 : vector<1x8xf32> to vector<1x8x1xf32>
    %104 = tpu.reciprocal %103 {approx = true} : vector<1x8x1xf32> -> vector<1x8x1xf32>
    %105 = vector.broadcast %104 : vector<1x8x1xf32> to vector<1x8x8xf32>
    %106 = arith.mulf %101, %105 : vector<1x8x8xf32>
    %cst_39 = arith.constant dense<0.000000e+00> : vector<1x8x8xf32>
    %107 = tpu.matmul %106, %93, %cst_39 {dimension_numbers = #tpu.dot_dimension_numbers<[2], [1], [1], [2], [0, 0, 0, 1, 1, 2], [0], [0]>} : vector<1x8x8xf32>, vector<1x8x8xf32>, vector<1x8x8xf32> -> vector<1x8x8xf32>
    %c0_40 = arith.constant 0 : index
    %c0_41 = arith.constant 0 : index
    %c24 = arith.constant 24 : index
    %108 = vector.load %arg14[%c0_40, %c0_41, %c24] : memref<1x8x32xf32, #tpu.memory_space<vmem>>, vector<1x8x8xf32>
    tpu.vector_store %arg14[%c0_40, %c0_41, %c24], %107 {strides = array<i32>} : memref<1x8x32xf32, #tpu.memory_space<vmem>>, vector<1x8x8xf32>,
    %c0_42 = arith.constant 0 : index
    %c0_43 = arith.constant 0 : index
    %c0_44 = arith.constant 0 : index
    %109 = vector.load %arg14[%c0_42, %c0_43, %c0_44] : memref<1x8x32xf32, #tpu.memory_space<vmem>>, vector<1x8x32xf32>
    %110 = vector.shape_cast %109 : vector<1x8x32xf32> to vector<8x32xf32>
    %c0_45 = arith.constant 0 : index
    %c0_46 = arith.constant 0 : index
    %111 = vector.load %arg5[%c0_45, %c0_46] : memref<32x32xf32, #tpu.memory_space<vmem>>, vector<32x32xf32>
    %cst_47 = arith.constant dense<0.000000e+00> : vector<8x32xf32>
    %112 = tpu.matmul %110, %111, %cst_47 {dimension_numbers = #tpu.dot_dimension_numbers<[1], [0], [0], [1], [0, 0, 1, 1], [], []>} : vector<8x32xf32>, vector<32x32xf32>, vector<8x32xf32> -> vector<8x32xf32>
    %c0_48 = arith.constant 0 : index
    %c0_49 = arith.constant 0 : index
    %113 = vector.load %arg6[%c0_48, %c0_49] : memref<1x32xf32, #tpu.memory_space<vmem>>, vector<1x32xf32>
    %114 = vector.broadcast %113 : vector<1x32xf32> to vector<8x32xf32>
    %115 = arith.addf %112, %114 : vector<8x32xf32>
    %116 = arith.addf %1, %115 : vector<8x32xf32>
    %c0_50 = arith.constant 0 : index
    %c0_51 = arith.constant 0 : index
    %117 = vector.load %arg7[%c0_50, %c0_51] : memref<1x32xf32, #tpu.memory_space<vmem>>, vector<1x32xf32>
    %c0_52 = arith.constant 0 : index
    %c0_53 = arith.constant 0 : index
    %118 = vector.load %arg8[%c0_52, %c0_53] : memref<1x32xf32, #tpu.memory_space<vmem>>, vector<1x32xf32>
    %cst_54 = arith.constant dense<0.000000e+00> : vector<8xf32>
    %119 = vector.multi_reduction <add>, %116, %cst_54 [1] : vector<8x32xf32> to vector<8xf32>
    %120 = vector.shape_cast %119 : vector<8xf32> to vector<8x1xf32>
    %cst_55 = arith.constant 3.125000e-02 : f32
    %121 = vector.broadcast %cst_55 : f32 to vector<8x1xf32>
    %122 = arith.mulf %120, %121 : vector<8x1xf32>
    %123 = vector.broadcast %122 : vector<8x1xf32> to vector<8x32xf32>
    %124 = arith.subf %116, %123 : vector<8x32xf32>
    %125 = arith.mulf %124, %124 : vector<8x32xf32>
    %cst_56 = arith.constant dense<0.000000e+00> : vector<8xf32>
    %126 = vector.multi_reduction <add>, %125, %cst_56 [1] : vector<8x32xf32> to vector<8xf32>
    %127 = vector.shape_cast %126 : vector<8xf32> to vector<8x1xf32>
    %cst_57 = arith.constant 0.0322580636 : f32
    %128 = vector.broadcast %cst_57 : f32 to vector<8x1xf32>
    %129 = arith.mulf %127, %128 : vector<8x1xf32>
    %130 = math.sqrt %129 : vector<8x1xf32>
    %cst_58 = arith.constant 9.99999997E-7 : f32
    %131 = vector.broadcast %cst_58 : f32 to vector<8x1xf32>
    %132 = arith.addf %130, %131 : vector<8x1xf32>
    %133 = math.rsqrt %132 : vector<8x1xf32>
    %134 = vector.broadcast %133 : vector<8x1xf32> to vector<8x32xf32>
    %135 = arith.mulf %124, %134 : vector<8x32xf32>
    %136 = vector.broadcast %117 : vector<1x32xf32> to vector<8x32xf32>
    %137 = arith.mulf %136, %135 : vector<8x32xf32>
    %138 = vector.broadcast %118 : vector<1x32xf32> to vector<8x32xf32>
    %139 = arith.addf %137, %138 : vector<8x32xf32>
    %c0_59 = arith.constant 0 : index
    %c0_60 = arith.constant 0 : index
    %140 = vector.load %arg9[%c0_59, %c0_60] : memref<32x128xf32, #tpu.memory_space<vmem>>, vector<32x128xf32>
    %cst_61 = arith.constant dense<0.000000e+00> : vector<8x128xf32>
    %141 = tpu.matmul %139, %140, %cst_61 {dimension_numbers = #tpu.dot_dimension_numbers<[1], [0], [0], [1], [0, 0, 1, 1], [], []>} : vector<8x32xf32>, vector<32x128xf32>, vector<8x128xf32> -> vector<8x128xf32>
    %c0_62 = arith.constant 0 : index
    %c0_63 = arith.constant 0 : index
    %142 = vector.load %arg10[%c0_62, %c0_63] : memref<1x128xf32, #tpu.memory_space<vmem>>, vector<1x128xf32>
    %143 = vector.broadcast %142 : vector<1x128xf32> to vector<8x128xf32>
    %144 = arith.addf %141, %143 : vector<8x128xf32>
    %cst_64 = arith.constant 0.000000e+00 : f32
    %145 = vector.broadcast %cst_64 : f32 to vector<8x128xf32>
    %146 = arith.maximumf %144, %145 : vector<8x128xf32>
    %c0_65 = arith.constant 0 : index
    %c0_66 = arith.constant 0 : index
    %147 = vector.load %arg11[%c0_65, %c0_66] : memref<128x32xf32, #tpu.memory_space<vmem>>, vector<128x32xf32>
    %cst_67 = arith.constant dense<0.000000e+00> : vector<8x32xf32>
    %148 = tpu.matmul %146, %147, %cst_67 {dimension_numbers = #tpu.dot_dimension_numbers<[1], [0], [0], [1], [0, 0, 1, 1], [], []>} : vector<8x128xf32>, vector<128x32xf32>, vector<8x32xf32> -> vector<8x32xf32>
    %c0_68 = arith.constant 0 : index
    %c0_69 = arith.constant 0 : index
    %149 = vector.load %arg12[%c0_68, %c0_69] : memref<1x32xf32, #tpu.memory_space<vmem>>, vector<1x32xf32>
    %150 = vector.broadcast %149 : vector<1x32xf32> to vector<8x32xf32>
    %151 = arith.addf %148, %150 : vector<8x32xf32>
    %152 = arith.addf %116, %151 : vector<8x32xf32>
    %153 = vector.shape_cast %152 : vector<8x32xf32> to vector<1x8x32xf32>
    %c0_70 = arith.constant 0 : index
    %c0_71 = arith.constant 0 : index
    %c0_72 = arith.constant 0 : index
    %154 = vector.load %arg13[%c0_70, %c0_71, %c0_72] : memref<1x8x32xf32, #tpu.memory_space<vmem>>, vector<1x8x32xf32>
    tpu.vector_store %arg13[%c0_70, %c0_71, %c0_72], %153 {strides = array<i32>} : memref<1x8x32xf32, #tpu.memory_space<vmem>>, vector<1x8x32xf32>,
    return
  }
  func.func @transform_0(%arg0: i32) -> (i32, i32, i32) {
    %c0_i32 = arith.constant 0 : i32
    %c0_i32_0 = arith.constant 0 : i32
    %c0_i32_1 = arith.constant 0 : i32
    return %arg0, %c0_i32, %c0_i32_0 : i32, i32, i32
  }
  func.func @transform_1(%arg0: i32) -> (i32, i32) {
    %c0_i32 = arith.constant 0 : i32
    %c0_i32_0 = arith.constant 0 : i32
    %c0_i32_1 = arith.constant 0 : i32
    return %c0_i32, %c0_i32_0 : i32, i32
  }
  func.func @transform_2(%arg0: i32) -> (i32, i32) {
    %c0_i32 = arith.constant 0 : i32
    %c0_i32_0 = arith.constant 0 : i32
    %c0_i32_1 = arith.constant 0 : i32
    return %c0_i32, %c0_i32_0 : i32, i32
  }
  func.func @transform_3(%arg0: i32) -> (i32, i32) {
    %c0_i32 = arith.constant 0 : i32
    %c0_i32_0 = arith.constant 0 : i32
    %c0_i32_1 = arith.constant 0 : i32
    return %c0_i32, %c0_i32_0 : i32, i32
  }
  func.func @transform_4(%arg0: i32) -> (i32, i32) {
    %c0_i32 = arith.constant 0 : i32
    %c0_i32_0 = arith.constant 0 : i32
    %c0_i32_1 = arith.constant 0 : i32
    return %c0_i32, %c0_i32_0 : i32, i32
  }
  func.func @transform_5(%arg0: i32) -> (i32, i32) {
    %c0_i32 = arith.constant 0 : i32
    %c0_i32_0 = arith.constant 0 : i32
    %c0_i32_1 = arith.constant 0 : i32
    return %c0_i32, %c0_i32_0 : i32, i32
  }
  func.func @transform_6(%arg0: i32) -> (i32, i32) {
    %c0_i32 = arith.constant 0 : i32
    %c0_i32_0 = arith.constant 0 : i32
    %c0_i32_1 = arith.constant 0 : i32
    return %c0_i32, %c0_i32_0 : i32, i32
  }
  func.func @transform_7(%arg0: i32) -> (i32, i32) {
    %c0_i32 = arith.constant 0 : i32
    %c0_i32_0 = arith.constant 0 : i32
    %c0_i32_1 = arith.constant 0 : i32
    return %c0_i32, %c0_i32_0 : i32, i32
  }
  func.func @transform_8(%arg0: i32) -> (i32, i32) {
    %c0_i32 = arith.constant 0 : i32
    %c0_i32_0 = arith.constant 0 : i32
    %c0_i32_1 = arith.constant 0 : i32
    return %c0_i32, %c0_i32_0 : i32, i32
  }
  func.func @transform_9(%arg0: i32) -> (i32, i32) {
    %c0_i32 = arith.constant 0 : i32
    %c0_i32_0 = arith.constant 0 : i32
    %c0_i32_1 = arith.constant 0 : i32
    return %c0_i32, %c0_i32_0 : i32, i32
  }
  func.func @transform_10(%arg0: i32) -> (i32, i32) {
    %c0_i32 = arith.constant 0 : i32
    %c0_i32_0 = arith.constant 0 : i32
    %c0_i32_1 = arith.constant 0 : i32
    return %c0_i32, %c0_i32_0 : i32, i32
  }
  func.func @transform_11(%arg0: i32) -> (i32, i32) {
    %c0_i32 = arith.constant 0 : i32
    %c0_i32_0 = arith.constant 0 : i32
    %c0_i32_1 = arith.constant 0 : i32
    return %c0_i32, %c0_i32_0 : i32, i32
  }
  func.func @transform_12(%arg0: i32) -> (i32, i32, i32) {
    %c0_i32 = arith.constant 0 : i32
    %c0_i32_0 = arith.constant 0 : i32
    %c0_i32_1 = arith.constant 0 : i32
    return %arg0, %c0_i32, %c0_i32_0 : i32, i32, i32
  }
}

</mosaic_0001>

<llo_original>
// kernel: tpu_custom_call.1
$region0: #{tpu_custom_call.1}
  #allocation0 [shape = 'u32[]', space=smem, size = 0x4, offset = 0x4, fixed_abs, tag = 'smem constant byte address 0x4 - core index']
  #allocation1 [shape = 'u32[144,128]{1,0:T(1,128)}', space=vmem, size = 0x12000, scoped, tag = 'internal scratch']
  #allocation2 [shape = 'f32[1,8,32]{2,1,0:T(8,128)}', space=vmem, size = 0x1000, scoped, tag = 'scratch operand']
  %s0 = inlined_call_operand.vmem [shape: f32[2,8,32], index: 0, kind: input, shape index: {}]
  %s1 = inlined_call_operand.vmem [shape: f32[1,32], index: 1, kind: input, shape index: {}]
  %s2 = inlined_call_operand.vmem [shape: f32[1,32], index: 2, kind: input, shape index: {}]
  %s3 = inlined_call_operand.vmem [shape: f32[32,96], index: 3, kind: input, shape index: {}]
  %s4 = inlined_call_operand.vmem [shape: f32[32,32], index: 4, kind: input, shape index: {}]
  %s5 = inlined_call_operand.vmem [shape: f32[1,32], index: 5, kind: input, shape index: {}]
  %s6 = inlined_call_operand.vmem [shape: f32[1,32], index: 6, kind: input, shape index: {}]
  %s7 = inlined_call_operand.vmem [shape: f32[1,32], index: 7, kind: input, shape index: {}]
  %s8 = inlined_call_operand.vmem [shape: f32[32,128], index: 8, kind: input, shape index: {}]
  %s9 = inlined_call_operand.vmem [shape: f32[1,128], index: 9, kind: input, shape index: {}]
  %s10 = inlined_call_operand.vmem [shape: f32[128,32], index: 10, kind: input, shape index: {}]
  %s11 = inlined_call_operand.vmem [shape: f32[1,32], index: 11, kind: input, shape index: {}]
  %s12 = inlined_call_operand.hbm [shape: f32[2,8,32], index: 12, kind: output, shape index: {}]
  %s13 = sld [smem:[#allocation0]]
  $region81: #{tpu_custom_call.1} parent=0
    _
  %s15 = ssub.s32 1, %s13
  %s16 = scalar_select 0, %s15, %s13
  $region1: #{tpu_custom_call.1} parent=0
    #allocation3 [shape = 'u8[8192]{0}', space=vmem, size = 0x2000, scoped, tag = 'output window, operand 0']
    #allocation4 [shape = 's32[2]{0}', space=sflag, size = 0x8, scoped, tag = 'scoped memory for tpu_custom_call.1']
    %17 = vsyncpa [#allocation4], 0
    %s18 = scalar_lea.sflag [#allocation4], 1
    %19 = vsyncpa %s18, 0
    loop: start=0, step=1, limit=4
    $region2: #{tpu_custom_call.1} parent=1 // loop_pre_header
      _
    $region3: #{tpu_custom_call.1} parent=1 // loop_header
      %s21 = sphi 0, %s25
      %p22 = scmp.ge.s32.totalorder %s21, 4
      %s31 = sphi 0, %s33
      %s34 = sphi 0, %s31
      %s35 = sphi 0, %s34
      %s51 = sphi 0, %s35
      %s55 = sphi 0, %s55
      %s57 = sphi 0, %s55
      %s58 = sphi 0, %s57
      %s72 = sphi 0, %s58
      %s76 = sphi 0, %s76
      %s78 = sphi 0, %s76
      %s79 = sphi 0, %s78
      %s93 = sphi 0, %s79
      %s97 = sphi 0, %s97
      %s99 = sphi 0, %s97
      %s100 = sphi 0, %s99
      %s114 = sphi 0, %s100
      %s118 = sphi 0, %s118
      %s120 = sphi 0, %s118
      %s121 = sphi 0, %s120
      %s135 = sphi 0, %s121
      %s139 = sphi 0, %s139
      %s141 = sphi 0, %s139
      %s142 = sphi 0, %s141
      %s156 = sphi 0, %s142
      %s160 = sphi 0, %s160
      %s162 = sphi 0, %s160
      %s163 = sphi 0, %s162
      %s177 = sphi 0, %s163
      %s181 = sphi 0, %s181
      %s183 = sphi 0, %s181
      %s184 = sphi 0, %s183
      %s198 = sphi 0, %s184
      %s202 = sphi 0, %s202
      %s204 = sphi 0, %s202
      %s205 = sphi 0, %s204
      %s219 = sphi 0, %s205
      %s223 = sphi 0, %s223
      %s225 = sphi 0, %s223
      %s226 = sphi 0, %s225
      %s240 = sphi 0, %s226
      %s244 = sphi 0, %s244
      %s246 = sphi 0, %s244
      %s247 = sphi 0, %s246
      %s261 = sphi 0, %s247
      %s265 = sphi 0, %s265
      %s267 = sphi 0, %s265
      %s268 = sphi 0, %s267
      %s282 = sphi 0, %s268
      %s288 = sphi 0, %s290
      %s291 = sphi 0, %s288
      %s292 = sphi 0, %s291
      %s308 = sphi 0, %s292
    $region4: #{tpu_custom_call.1} parent=1 // loop_header_branch
      %24 = sbr.rel (%p22) target = $region8
    $region5: #{tpu_custom_call.1} parent=1 // loop_body
      %s26 = ssub.s32 %s21, 1
      %s27 = ssub.s32 %s21, 2
      %s28 = sadd.s32 %s21, 1
      %s29 = ssub.s32 %s21, %s28
      %p30 = scmp.eq.s32.totalorder %s29, 0
      %s32 = sadd.s32 %s31, 1
      %s33 = scalar_select %p30, %s31, %s32
      %p36 = pneg %p30
      %p37 = scmp.eq.s32.totalorder %s21, 1
      %p38 = por %p36, %p37
      %p39 = scmp.ne.s32.totalorder %s31, %s34
      %p40 = scmp.eq.s32.totalorder %s21, 0
      %p41 = por %p39, %p40
      %p42 = scmp.ne.s32.totalorder %s31, %s34
      %p43 = scmp.eq.s32.totalorder %s26, 1
      %p44 = por %p42, %p43
      %p45 = scmp.ne.s32.totalorder %s34, %s35
      %p46 = scmp.eq.s32.totalorder %s26, 0
      %p47 = por %p45, %p46
      %p48 = scmp.ne.s32.totalorder %s34, %s35
      %p49 = scmp.eq.s32.totalorder %s27, 1
      %p50 = por %p48, %p49
      %p52 = scmp.ne.s32.totalorder %s35, %s51
      %p53 = scmp.eq.s32.totalorder %s27, 0
      %p54 = por %p52, %p53
      %s56 = sadd.s32 %s55, 1
      %p59 = scmp.eq.s32.totalorder %s21, 1
      %p60 = scmp.ne.s32.totalorder %s55, %s57
      %p61 = scmp.eq.s32.totalorder %s21, 0
      %p62 = por %p60, %p61
      %p63 = scmp.ne.s32.totalorder %s55, %s57
      %p64 = scmp.eq.s32.totalorder %s26, 1
      %p65 = por %p63, %p64
      %p66 = scmp.ne.s32.totalorder %s57, %s58
      %p67 = scmp.eq.s32.totalorder %s26, 0
      %p68 = por %p66, %p67
      %p69 = scmp.ne.s32.totalorder %s57, %s58
      %p70 = scmp.eq.s32.totalorder %s27, 1
      %p71 = por %p69, %p70
      %p73 = scmp.ne.s32.totalorder %s58, %s72
      %p74 = scmp.eq.s32.totalorder %s27, 0
      %p75 = por %p73, %p74
      %s77 = sadd.s32 %s76, 1
      %p80 = scmp.eq.s32.totalorder %s21, 1
      %p81 = scmp.ne.s32.totalorder %s76, %s78
      %p82 = scmp.eq.s32.totalorder %s21, 0
      %p83 = por %p81, %p82
      %p84 = scmp.ne.s32.totalorder %s76, %s78
      %p85 = scmp.eq.s32.totalorder %s26, 1
      %p86 = por %p84, %p85
      %p87 = scmp.ne.s32.totalorder %s78, %s79
      %p88 = scmp.eq.s32.totalorder %s26, 0
      %p89 = por %p87, %p88
      %p90 = scmp.ne.s32.totalorder %s78, %s79
      %p91 = scmp.eq.s32.totalorder %s27, 1
      %p92 = por %p90, %p91
      %p94 = scmp.ne.s32.totalorder %s79, %s93
      %p95 = scmp.eq.s32.totalorder %s27, 0
      %p96 = por %p94, %p95
      %s98 = sadd.s32 %s97, 1
      %p101 = scmp.eq.s32.totalorder %s21, 1
      %p102 = scmp.ne.s32.totalorder %s97, %s99
      %p103 = scmp.eq.s32.totalorder %s21, 0
      %p104 = por %p102, %p103
      %p105 = scmp.ne.s32.totalorder %s97, %s99
      %p106 = scmp.eq.s32.totalorder %s26, 1
      %p107 = por %p105, %p106
      %p108 = scmp.ne.s32.totalorder %s99, %s100
      %p109 = scmp.eq.s32.totalorder %s26, 0
      %p110 = por %p108, %p109
      %p111 = scmp.ne.s32.totalorder %s99, %s100
      %p112 = scmp.eq.s32.totalorder %s27, 1
      %p113 = por %p111, %p112
      %p115 = scmp.ne.s32.totalorder %s100, %s114
      %p116 = scmp.eq.s32.totalorder %s27, 0
      %p117 = por %p115, %p116
      %s119 = sadd.s32 %s118, 1
      %p122 = scmp.eq.s32.totalorder %s21, 1
      %p123 = scmp.ne.s32.totalorder %s118, %s120
      %p124 = scmp.eq.s32.totalorder %s21, 0
      %p125 = por %p123, %p124
      %p126 = scmp.ne.s32.totalorder %s118, %s120
      %p127 = scmp.eq.s32.totalorder %s26, 1
      %p128 = por %p126, %p127
      %p129 = scmp.ne.s32.totalorder %s120, %s121
      %p130 = scmp.eq.s32.totalorder %s26, 0
      %p131 = por %p129, %p130
      %p132 = scmp.ne.s32.totalorder %s120, %s121
      %p133 = scmp.eq.s32.totalorder %s27, 1
      %p134 = por %p132, %p133
      %p136 = scmp.ne.s32.totalorder %s121, %s135
      %p137 = scmp.eq.s32.totalorder %s27, 0
      %p138 = por %p136, %p137
      %s140 = sadd.s32 %s139, 1
      %p143 = scmp.eq.s32.totalorder %s21, 1
      %p144 = scmp.ne.s32.totalorder %s139, %s141
      %p145 = scmp.eq.s32.totalorder %s21, 0
      %p146 = por %p144, %p145
      %p147 = scmp.ne.s32.totalorder %s139, %s141
      %p148 = scmp.eq.s32.totalorder %s26, 1
      %p149 = por %p147, %p148
      %p150 = scmp.ne.s32.totalorder %s141, %s142
      %p151 = scmp.eq.s32.totalorder %s26, 0
      %p152 = por %p150, %p151
      %p153 = scmp.ne.s32.totalorder %s141, %s142
      %p154 = scmp.eq.s32.totalorder %s27, 1
      %p155 = por %p153, %p154
      %p157 = scmp.ne.s32.totalorder %s142, %s156
      %p158 = scmp.eq.s32.totalorder %s27, 0
      %p159 = por %p157, %p158
      %s161 = sadd.s32 %s160, 1
      %p164 = scmp.eq.s32.totalorder %s21, 1
      %p165 = scmp.ne.s32.totalorder %s160, %s162
      %p166 = scmp.eq.s32.totalorder %s21, 0
      %p167 = por %p165, %p166
      %p168 = scmp.ne.s32.totalorder %s160, %s162
      %p169 = scmp.eq.s32.totalorder %s26, 1
      %p170 = por %p168, %p169
      %p171 = scmp.ne.s32.totalorder %s162, %s163
      %p172 = scmp.eq.s32.totalorder %s26, 0
      %p173 = por %p171, %p172
      %p174 = scmp.ne.s32.totalorder %s162, %s163
      %p175 = scmp.eq.s32.totalorder %s27, 1
      %p176 = por %p174, %p175
      %p178 = scmp.ne.s32.totalorder %s163, %s177
      %p179 = scmp.eq.s32.totalorder %s27, 0
      %p180 = por %p178, %p179
      %s182 = sadd.s32 %s181, 1
      %p185 = scmp.eq.s32.totalorder %s21, 1
      %p186 = scmp.ne.s32.totalorder %s181, %s183
      %p187 = scmp.eq.s32.totalorder %s21, 0
      %p188 = por %p186, %p187
      %p189 = scmp.ne.s32.totalorder %s181, %s183
      %p190 = scmp.eq.s32.totalorder %s26, 1
      %p191 = por %p189, %p190
      %p192 = scmp.ne.s32.totalorder %s183, %s184
      %p193 = scmp.eq.s32.totalorder %s26, 0
      %p194 = por %p192, %p193
      %p195 = scmp.ne.s32.totalorder %s183, %s184
      %p196 = scmp.eq.s32.totalorder %s27, 1
      %p197 = por %p195, %p196
      %p199 = scmp.ne.s32.totalorder %s184, %s198
      %p200 = scmp.eq.s32.totalorder %s27, 0
      %p201 = por %p199, %p200
      %s203 = sadd.s32 %s202, 1
      %p206 = scmp.eq.s32.totalorder %s21, 1
      %p207 = scmp.ne.s32.totalorder %s202, %s204
      %p208 = scmp.eq.s32.totalorder %s21, 0
      %p209 = por %p207, %p208
      %p210 = scmp.ne.s32.totalorder %s202, %s204
      %p211 = scmp.eq.s32.totalorder %s26, 1
      %p212 = por %p210, %p211
      %p213 = scmp.ne.s32.totalorder %s204, %s205
      %p214 = scmp.eq.s32.totalorder %s26, 0
      %p215 = por %p213, %p214
      %p216 = scmp.ne.s32.totalorder %s204, %s205
      %p217 = scmp.eq.s32.totalorder %s27, 1
      %p218 = por %p216, %p217
      %p220 = scmp.ne.s32.totalorder %s205, %s219
      %p221 = scmp.eq.s32.totalorder %s27, 0
      %p222 = por %p220, %p221
      %s224 = sadd.s32 %s223, 1
      %p227 = scmp.eq.s32.totalorder %s21, 1
      %p228 = scmp.ne.s32.totalorder %s223, %s225
      %p229 = scmp.eq.s32.totalorder %s21, 0
      %p230 = por %p228, %p229
      %p231 = scmp.ne.s32.totalorder %s223, %s225
      %p232 = scmp.eq.s32.totalorder %s26, 1
      %p233 = por %p231, %p232
      %p234 = scmp.ne.s32.totalorder %s225, %s226
      %p235 = scmp.eq.s32.totalorder %s26, 0
      %p236 = por %p234, %p235
      %p237 = scmp.ne.s32.totalorder %s225, %s226
      %p238 = scmp.eq.s32.totalorder %s27, 1
      %p239 = por %p237, %p238
      %p241 = scmp.ne.s32.totalorder %s226, %s240
      %p242 = scmp.eq.s32.totalorder %s27, 0
      %p243 = por %p241, %p242
      %s245 = sadd.s32 %s244, 1
      %p248 = scmp.eq.s32.totalorder %s21, 1
      %p249 = scmp.ne.s32.totalorder %s244, %s246
      %p250 = scmp.eq.s32.totalorder %s21, 0
      %p251 = por %p249, %p250
      %p252 = scmp.ne.s32.totalorder %s244, %s246
      %p253 = scmp.eq.s32.totalorder %s26, 1
      %p254 = por %p252, %p253
      %p255 = scmp.ne.s32.totalorder %s246, %s247
      %p256 = scmp.eq.s32.totalorder %s26, 0
      %p257 = por %p255, %p256
      %p258 = scmp.ne.s32.totalorder %s246, %s247
      %p259 = scmp.eq.s32.totalorder %s27, 1
      %p260 = por %p258, %p259
      %p262 = scmp.ne.s32.totalorder %s247, %s261
      %p263 = scmp.eq.s32.totalorder %s27, 0
      %p264 = por %p262, %p263
      %s266 = sadd.s32 %s265, 1
      %p269 = scmp.eq.s32.totalorder %s21, 1
      %p270 = scmp.ne.s32.totalorder %s265, %s267
      %p271 = scmp.eq.s32.totalorder %s21, 0
      %p272 = por %p270, %p271
      %p273 = scmp.ne.s32.totalorder %s265, %s267
      %p274 = scmp.eq.s32.totalorder %s26, 1
      %p275 = por %p273, %p274
      %p276 = scmp.ne.s32.totalorder %s267, %s268
      %p277 = scmp.eq.s32.totalorder %s26, 0
      %p278 = por %p276, %p277
      %p279 = scmp.ne.s32.totalorder %s267, %s268
      %p280 = scmp.eq.s32.totalorder %s27, 1
      %p281 = por %p279, %p280
      %p283 = scmp.ne.s32.totalorder %s268, %s282
      %p284 = scmp.eq.s32.totalorder %s27, 0
      %p285 = por %p283, %p284
      %s286 = ssub.s32 %s21, %s28
      %p287 = scmp.eq.s32.totalorder %s286, 0
      %s289 = sadd.s32 %s288, 1
      %s290 = scalar_select %p287, %s288, %s289
      %p293 = pneg %p287
      %p294 = scmp.eq.s32.totalorder %s21, 1
      %p295 = por %p293, %p294
      %p296 = scmp.ne.s32.totalorder %s288, %s291
      %p297 = scmp.eq.s32.totalorder %s21, 0
      %p298 = por %p296, %p297
      %p299 = scmp.ne.s32.totalorder %s288, %s291
      %p300 = scmp.eq.s32.totalorder %s26, 1
      %p301 = por %p299, %p300
      %p302 = scmp.ne.s32.totalorder %s291, %s292
      %p303 = scmp.eq.s32.totalorder %s26, 0
      %p304 = por %p302, %p303
      %p305 = scmp.ne.s32.totalorder %s291, %s292
      %p306 = scmp.eq.s32.totalorder %s27, 1
      %p307 = por %p305, %p306
      %p309 = scmp.ne.s32.totalorder %s292, %s308
      %p310 = scmp.eq.s32.totalorder %s27, 0
      %p311 = por %p309, %p310
      %p312 = scmp.le.s32.totalorder 1, %s21
      %p313 = scmp.lt.s32.totalorder %s21, 3
      %p314 = pnand %p312, %p313
      %p315 = pneg %p314
      // Predicated region
      $region9: #{tpu_custom_call.1} parent=5 // pred_check
        _
      $region10: #{tpu_custom_call.1} parent=5 // pred_check_branch
        %317 = sbr.rel (%p314) target = $region12
      $region11: #{tpu_custom_call.1} parent=5 // pred_region
        %s318 = ssub.s32 %s21, 1
        // Predicated region
        $region13: #{tpu_custom_call.1} parent=11 // pred_check
          %p319 = pneg %p68
        $region14: #{tpu_custom_call.1} parent=11 // pred_check_branch
          %321 = sbr.rel (%p319) target = $region16
        $region15: #{tpu_custom_call.1} parent=11 // pred_region
          _
        $region16: #{tpu_custom_call.1} parent=11 // pred_fallthru
          _
        // Predicated region
        $region17: #{tpu_custom_call.1} parent=11 // pred_check
          %p322 = pneg %p89
        $region18: #{tpu_custom_call.1} parent=11 // pred_check_branch
          %324 = sbr.rel (%p322) target = $region20
        $region19: #{tpu_custom_call.1} parent=11 // pred_region
          _
        $region20: #{tpu_custom_call.1} parent=11 // pred_fallthru
          _
        // Predicated region
        $region21: #{tpu_custom_call.1} parent=11 // pred_check
          %p325 = pneg %p110
        $region22: #{tpu_custom_call.1} parent=11 // pred_check_branch
          %327 = sbr.rel (%p325) target = $region24
        $region23: #{tpu_custom_call.1} parent=11 // pred_region
          _
        $region24: #{tpu_custom_call.1} parent=11 // pred_fallthru
          _
        // Predicated region
        $region25: #{tpu_custom_call.1} parent=11 // pred_check
          %p328 = pneg %p131
        $region26: #{tpu_custom_call.1} parent=11 // pred_check_branch
          %330 = sbr.rel (%p328) target = $region28
        $region27: #{tpu_custom_call.1} parent=11 // pred_region
          _
        $region28: #{tpu_custom_call.1} parent=11 // pred_fallthru
          _
        // Predicated region
        $region29: #{tpu_custom_call.1} parent=11 // pred_check
          %p331 = pneg %p152
        $region30: #{tpu_custom_call.1} parent=11 // pred_check_branch
          %333 = sbr.rel (%p331) target = $region32
        $region31: #{tpu_custom_call.1} parent=11 // pred_region
          _
        $region32: #{tpu_custom_call.1} parent=11 // pred_fallthru
          _
        // Predicated region
        $region33: #{tpu_custom_call.1} parent=11 // pred_check
          %p334 = pneg %p173
        $region34: #{tpu_custom_call.1} parent=11 // pred_check_branch
          %336 = sbr.rel (%p334) target = $region36
        $region35: #{tpu_custom_call.1} parent=11 // pred_region
          _
        $region36: #{tpu_custom_call.1} parent=11 // pred_fallthru
          _
        // Predicated region
        $region37: #{tpu_custom_call.1} parent=11 // pred_check
          %p337 = pneg %p194
        $region38: #{tpu_custom_call.1} parent=11 // pred_check_branch
          %339 = sbr.rel (%p337) target = $region40
        $region39: #{tpu_custom_call.1} parent=11 // pred_region
          _
        $region40: #{tpu_custom_call.1} parent=11 // pred_fallthru
          _
        // Predicated region
        $region41: #{tpu_custom_call.1} parent=11 // pred_check
          %p340 = pneg %p215
        $region42: #{tpu_custom_call.1} parent=11 // pred_check_branch
          %342 = sbr.rel (%p340) target = $region44
        $region43: #{tpu_custom_call.1} parent=11 // pred_region
          _
        $region44: #{tpu_custom_call.1} parent=11 // pred_fallthru
          _
        // Predicated region
        $region45: #{tpu_custom_call.1} parent=11 // pred_check
          %p343 = pneg %p236
        $region46: #{tpu_custom_call.1} parent=11 // pred_check_branch
          %345 = sbr.rel (%p343) target = $region48
        $region47: #{tpu_custom_call.1} parent=11 // pred_region
          _
        $region48: #{tpu_custom_call.1} parent=11 // pred_fallthru
          _
        // Predicated region
        $region49: #{tpu_custom_call.1} parent=11 // pred_check
          %p346 = pneg %p257
        $region50: #{tpu_custom_call.1} parent=11 // pred_check_branch
          %348 = sbr.rel (%p346) target = $region52
        $region51: #{tpu_custom_call.1} parent=11 // pred_region
          _
        $region52: #{tpu_custom_call.1} parent=11 // pred_fallthru
          _
        // Predicated region
        $region53: #{tpu_custom_call.1} parent=11 // pred_check
          %p349 = pneg %p278
        $region54: #{tpu_custom_call.1} parent=11 // pred_check_branch
          %351 = sbr.rel (%p349) target = $region56
        $region55: #{tpu_custom_call.1} parent=11 // pred_region
          _
        $region56: #{tpu_custom_call.1} parent=11 // pred_fallthru
          _
      $region12: #{tpu_custom_call.1} parent=5 // pred_fallthru
        _
      %p352 = scmp.lt.s32.totalorder %s21, 2
      // Predicated region
      $region57: #{tpu_custom_call.1} parent=5 // pred_check
        %p353 = pneg %p352
      $region58: #{tpu_custom_call.1} parent=5 // pred_check_branch
        %355 = sbr.rel (%p353) target = $region60
      $region59: #{tpu_custom_call.1} parent=5 // pred_region
        // Predicated region
        $region61: #{tpu_custom_call.1} parent=59 // pred_check
          %p356 = pneg %p41
        $region62: #{tpu_custom_call.1} parent=59 // pred_check_branch
          %358 = sbr.rel (%p356) target = $region64
        $region63: #{tpu_custom_call.1} parent=59 // pred_region
          %p359 = scmp.lt.s32.totalorder %s21, 1
          %s360 = scalar_select %p359, %s21, 1
          %s361 = smul.addr %s360, 8
          %s362 = scalar_lea.vmem %s0, %s361
        $region64: #{tpu_custom_call.1} parent=59 // pred_fallthru
          _
      $region60: #{tpu_custom_call.1} parent=5 // pred_fallthru
        _
      %p363 = scmp.le.s32.totalorder 1, %s21
      %p364 = scmp.lt.s32.totalorder %s21, 3
      %p365 = pnand %p363, %p364
      %p366 = pneg %p365
      // Predicated region
      $region65: #{tpu_custom_call.1} parent=5 // pred_check
        _
      $region66: #{tpu_custom_call.1} parent=5 // pred_check_branch
        %368 = sbr.rel (%p365) target = $region68
      $region67: #{tpu_custom_call.1} parent=5 // pred_region
        %s369 = ssub.s32 %s21, 1
        %p370 = scmp.lt.s32.totalorder %s26, 1
        %s371 = scalar_select %p370, %s26, 1
        %s372 = smul.addr %s371, 8
        %s373 = scalar_lea.vmem %s0, %s372
        %p374 = pneg %p47
        %p375 = pneg %p44
        %p376 = pneg %p68
        %p377 = pneg %p65
        %p378 = pneg %p89
        %p379 = pneg %p86
        %p380 = pneg %p110
        %p381 = pneg %p107
        %p382 = pneg %p131
        %p383 = pneg %p128
        %p384 = pneg %p152
        %p385 = pneg %p149
        %p386 = pneg %p173
        %p387 = pneg %p170
        %p388 = pneg %p194
        %p389 = pneg %p191
        %p390 = pneg %p215
        %p391 = pneg %p212
        %p392 = pneg %p236
        %p393 = pneg %p233
        %p394 = pneg %p257
        %p395 = pneg %p254
        %p396 = pneg %p278
        %p397 = pneg %p275
        %p398 = pneg %p304
        %p399 = pneg %p301
        %s400 = sand.u32 %s291, 1
        %s401 = scalar_lea.sflag [#allocation4], %s400
        %s402 = sand.u32 %s291, 1
        %s403 = smul.addr %s402, 8
        %s404 = scalar_lea.vmem [#allocation3], %s403
        %p405 = scmp.lt.s32.totalorder %s26, 1
        %s406 = scalar_select %p405, %s26, 1
        %s407 = smul.addr %s406, 8
        %s408 = scalar_lea.vmem %s0, %s407
        %v409 = vld [vmem:[%s408] sm:$0xff]
        %v410 = vld [vmem:[%s1] sm:$0x1]
        %v411 = vld [vmem:[%s2] sm:$0x1]
        %vm412 = vcmask 261120
        %v413 = vsel %vm412, %v409, 0.0
        %414 = vadd.xlane.f32.xlu0 %v413
        %v415 = vpop.xlane.xlu0 %414
        %v416 = vmul.f32 %v415, 0.03125
        %v417 = vsub.f32 %v409, %v416
        %v418 = vmul.f32 %v417, %v417
        %v419 = vsel %vm412, %v418, 0.0
        %420 = vadd.xlane.f32.xlu0 %v419
        %v421 = vpop.xlane.xlu0 %420
        %v422 = vmul.f32 %v421, 0.032258064
        %v423 = vrsqrt.pop %v422
        %v424 = vmul.f32 %v422, %v423
        %vm425 = vcmp.eq.f32.partialorder %v422, inf
        %v426 = vsel %vm425, %v422, %v424
        %vm427 = vcmp.eq.f32.partialorder %v422, 0.0
        %v428 = vand.u32 %v422, 2147483648
        %v429 = vsel %vm427, %v428, %v426
        %v430 = vadd.f32 %v429, 1e-06
        %v431 = vrsqrt.pop %v430
        %v432 = vmul.f32 %v417, %v431
        %v434 = vlaneseq
        %v435 = vshrl.u32 %v434, 7
        %v436 = vsub.s32 0, %v435
        %v437 = vrot.slane %v410, %v436
        %v439 = vmul.f32 %v437, %v432
        %v441 = vlaneseq
        %v442 = vshrl.u32 %v441, 7
        %v443 = vsub.s32 0, %v442
        %v444 = vrot.slane %v411, %v443
        %v446 = vadd.f32 %v439, %v444
        %v447 = vld [vmem:[%s3] sm:$0xff]
        %v448 = vld [vmem:[%s3 + $0x8] sm:$0xff]
        %v449 = vld [vmem:[%s3 + $0x10] sm:$0xff]
        %v450 = vld [vmem:[%s3 + $0x18] sm:$0xff]
        %v452 = vsel %vm412, %v446, 0
        %454 = vmatprep.subr.mxu0 0.0
        %455 = vmatpush1.msra.mxu0 %v447
        %456 = vmatprep.subr.mxu0 0.0
        %457 = vmatpush1.msra.mxu0 %v448
        %458 = vmatprep.subr.mxu0 0.0
        %459 = vmatpush1.msra.mxu0 %v449
        %460 = vmatprep.subr.mxu0 0.0
        %461 = vmatpush1.msra.mxu0 %v450
        %462 = vmatprep.subr.mxu0 0.0
        %463 = vmatpush1.msra.mxu0 0.0
        %464 = vmatprep.subr.mxu0 0.0
        %465 = vmatpush1.msra.mxu0 0.0
        %466 = vmatprep.subr.mxu0 0.0
        %467 = vmatpush1.msra.mxu0 0.0
        %468 = vmatprep.subr.mxu0 0.0
        %469 = vmatpush1.msra.mxu0 0.0
        %470 = vmatprep.subr.mxu0 0.0
        %471 = vmatpush1.msra.mxu0 0.0
        %472 = vmatprep.subr.mxu0 0.0
        %473 = vmatpush1.msra.mxu0 0.0
        %474 = vmatprep.subr.mxu0 0.0
        %475 = vmatpush1.msra.mxu0 0.0
        %476 = vmatprep.subr.mxu0 0.0
        %477 = vmatpush1.msra.mxu0 0.0
        %478 = vmatprep.subr.mxu0 0.0
        %479 = vmatpush1.msra.mxu0 0.0
        %480 = vmatprep.subr.mxu0 0.0
        %481 = vmatpush1.msra.mxu0 0.0
        %482 = vmatprep.subr.mxu0 0.0
        %483 = vmatpush1.msra.mxu0 0.0
        %484 = vmatprep.subr.mxu0 0.0
        %485 = vmatpush1.msra.mxu0 0.0
        %486 = vmatprep.subr.mxu0 0.0
        %487 = vmatpush1.msra.mxu0 0.0
        %488 = vmatprep.subr.mxu0 0.0
        %489 = vmatpush1.msra.mxu0 0.0
        %490 = vmatprep.subr.mxu0 0.0
        %491 = vmatpush1.msra.mxu0 0.0
        %492 = vmatprep.subr.mxu0 0.0
        %493 = vmatpush1.msra.mxu0 0.0
        %494 = vmatprep.subr.mxu0 0.0
        %495 = vmatpush1.msra.mxu0 0.0
        %496 = vmatprep.subr.mxu0 0.0
        %497 = vmatpush1.msra.mxu0 0.0
        %498 = vmatprep.subr.mxu0 0.0
        %499 = vmatpush1.msra.mxu0 0.0
        %500 = vmatprep.subr.mxu0 0.0
        %501 = vmatpush1.msra.mxu0 0.0
        %502 = vmatprep.subr.mxu0 0.0
        %503 = vmatpush1.msra.mxu0 0.0
        %504 = vmatprep.subr.mxu0 0.0
        %505 = vmatpush1.msra.mxu0 0.0
        %506 = vmatprep.subr.mxu0 0.0
        %507 = vmatpush1.msra.mxu0 0.0
        %508 = vmatprep.subr.mxu0 0.0
        %509 = vmatpush1.msra.mxu0 0.0
        %510 = vmatprep.subr.mxu0 0.0
        %511 = vmatpush1.msra.mxu0 0.0
        %512 = vmatprep.subr.mxu0 0.0
        %513 = vmatpush1.msra.mxu0 0.0
        %514 = vmatprep.subr.mxu0 0.0
        %515 = vmatpush1.msra.mxu0 0.0
        %516 = vmatprep.subr.mxu0 0.0
        %517 = vmatpush1.msra.mxu0 0.0
        %518 = vmatprep.mubr.f32.mxu0 0.0
        %519 = vmatmul.mubr.f32.gmra.mrb[0].mxu0 %v452
        %v520 = vpop.f32.mrb[0].mxu0
        %v521 = vadd.f32 0.0, %v520
        %v522 = vpop.f32.mrb[0].mxu0
        %523 = vdwg.mxu0
        %v524 = vlaneseq
        %v525 = vshrl.u32 %v524, 7
        %v526 = vlaneseq
        %v527 = vand.u32 %v526, 127
        %vm528 = vcmp.le.s32.totalorder %v527, %v525
        %530 = vrot.lane.b32.xlu0 %v521, 96
        %v531 = vpop.permute.xlu0 %530
        %vm532 = vcmask 64512
        %v533 = vsel %vm532, %v521, 0
        %v535 = vsel %vm532, %v531, 0
        %537 = vmatprep.subr.mxu0 0.0
        %538 = vmatpush1.xpose.msra.mxu0 %v535
        %539 = vmatprep.subr.mxu0 0.0
        %540 = vmatpush1.xpose.msra.mxu0 0.0
        %541 = vmatprep.subr.mxu0 0.0
        %542 = vmatpush1.xpose.msra.mxu0 0.0
        %543 = vmatprep.subr.mxu0 0.0
        %544 = vmatpush1.xpose.msra.mxu0 0.0
        %545 = vmatprep.subr.mxu0 0.0
        %546 = vmatpush1.xpose.msra.mxu0 0.0
        %547 = vmatprep.subr.mxu0 0.0
        %548 = vmatpush1.xpose.msra.mxu0 0.0
        %549 = vmatprep.subr.mxu0 0.0
        %550 = vmatpush1.xpose.msra.mxu0 0.0
        %551 = vmatprep.subr.mxu0 0.0
        %552 = vmatpush1.xpose.msra.mxu0 0.0
        %553 = vmatprep.subr.mxu0 0.0
        %554 = vmatpush1.xpose.msra.mxu0 0.0
        %555 = vmatprep.subr.mxu0 0.0
        %556 = vmatpush1.xpose.msra.mxu0 0.0
        %557 = vmatprep.subr.mxu0 0.0
        %558 = vmatpush1.xpose.msra.mxu0 0.0
        %559 = vmatprep.subr.mxu0 0.0
        %560 = vmatpush1.xpose.msra.mxu0 0.0
        %561 = vmatprep.subr.mxu0 0.0
        %562 = vmatpush1.xpose.msra.mxu0 0.0
        %563 = vmatprep.subr.mxu0 0.0
        %564 = vmatpush1.xpose.msra.mxu0 0.0
        %565 = vmatprep.subr.mxu0 0.0
        %566 = vmatpush1.xpose.msra.mxu0 0.0
        %567 = vmatprep.subr.mxu0 0.0
        %568 = vmatpush1.xpose.msra.mxu0 0.0
        %569 = vmatprep.subr.mxu0 0.0
        %570 = vmatpush1.xpose.msra.mxu0 0.0
        %571 = vmatprep.subr.mxu0 0.0
        %572 = vmatpush1.xpose.msra.mxu0 0.0
        %573 = vmatprep.subr.mxu0 0.0
        %574 = vmatpush1.xpose.msra.mxu0 0.0
        %575 = vmatprep.subr.mxu0 0.0
        %576 = vmatpush1.xpose.msra.mxu0 0.0
        %577 = vmatprep.subr.mxu0 0.0
        %578 = vmatpush1.xpose.msra.mxu0 0.0
        %579 = vmatprep.subr.mxu0 0.0
        %580 = vmatpush1.xpose.msra.mxu0 0.0
        %581 = vmatprep.subr.mxu0 0.0
        %582 = vmatpush1.xpose.msra.mxu0 0.0
        %583 = vmatprep.subr.mxu0 0.0
        %584 = vmatpush1.xpose.msra.mxu0 0.0
        %585 = vmatprep.subr.mxu0 0.0
        %586 = vmatpush1.xpose.msra.mxu0 0.0
        %587 = vmatprep.subr.mxu0 0.0
        %588 = vmatpush1.xpose.msra.mxu0 0.0
        %589 = vmatprep.subr.mxu0 0.0
        %590 = vmatpush1.xpose.msra.mxu0 0.0
        %591 = vmatprep.subr.mxu0 0.0
        %592 = vmatpush1.xpose.msra.mxu0 0.0
        %593 = vmatprep.subr.mxu0 0.0
        %594 = vmatpush1.xpose.msra.mxu0 0.0
        %595 = vmatprep.subr.mxu0 0.0
        %596 = vmatpush1.xpose.msra.mxu0 0.0
        %597 = vmatprep.subr.mxu0 0.0
        %598 = vmatpush1.xpose.msra.mxu0 0.0
        %599 = vmatprep.subr.mxu0 0.0
        %600 = vmatpush1.xpose.msra.mxu0 0.0
        %601 = vmatprep.mubr.f32.mxu0 0.0
        %602 = vmatmul.mubr.f32.gmra.mrb[0].mxu0 %v533
        %v603 = vpop.f32.mrb[0].mxu0
        %v604 = vadd.f32 0.0, %v603
        %v605 = vpop.f32.mrb[0].mxu0
        %606 = vdwg.mxu0
        %v607 = vsel %vm528, %v604, -1e+09
        %v608 = vsel %vm532, %v607, -inf
        %609 = vmax.xlane.f32.xlu0 %v608
        %v610 = vpop.xlane.xlu0 %609
        %v611 = vsub.f32 %v607, %v610
        %v612 = vmul.f32 %v611, 1.442695
        %v613 = vpow.pop %v612
        %v614 = vsel %vm532, %v613, 0.0
        %615 = vadd.xlane.f32.xlu0 %v614
        %v616 = vpop.xlane.xlu0 %615
        %v617 = vrcp.pop %v616
        %v618 = vmul.f32 %v613, %v617
        %619 = vrot.lane.b32.xlu0 %v521, 64
        %v620 = vpop.permute.xlu0 %619
        %v623 = vsel %vm532, %v618, 0
        %625 = vmatprep.subr.mxu0 0.0
        %626 = vmatpush1.msra.mxu0 %v620
        %627 = vmatprep.subr.mxu0 0.0
        %628 = vmatpush1.msra.mxu0 0.0
        %629 = vmatprep.subr.mxu0 0.0
        %630 = vmatpush1.msra.mxu0 0.0
        %631 = vmatprep.subr.mxu0 0.0
        %632 = vmatpush1.msra.mxu0 0.0
        %633 = vmatprep.subr.mxu0 0.0
        %634 = vmatpush1.msra.mxu0 0.0
        %635 = vmatprep.subr.mxu0 0.0
        %636 = vmatpush1.msra.mxu0 0.0
        %637 = vmatprep.subr.mxu0 0.0
        %638 = vmatpush1.msra.mxu0 0.0
        %639 = vmatprep.subr.mxu0 0.0
        %640 = vmatpush1.msra.mxu0 0.0
        %641 = vmatprep.subr.mxu0 0.0
        %642 = vmatpush1.msra.mxu0 0.0
        %643 = vmatprep.subr.mxu0 0.0
        %644 = vmatpush1.msra.mxu0 0.0
        %645 = vmatprep.subr.mxu0 0.0
        %646 = vmatpush1.msra.mxu0 0.0
        %647 = vmatprep.subr.mxu0 0.0
        %648 = vmatpush1.msra.mxu0 0.0
        %649 = vmatprep.subr.mxu0 0.0
        %650 = vmatpush1.msra.mxu0 0.0
        %651 = vmatprep.subr.mxu0 0.0
        %652 = vmatpush1.msra.mxu0 0.0
        %653 = vmatprep.subr.mxu0 0.0
        %654 = vmatpush1.msra.mxu0 0.0
        %655 = vmatprep.subr.mxu0 0.0
        %656 = vmatpush1.msra.mxu0 0.0
        %657 = vmatprep.subr.mxu0 0.0
        %658 = vmatpush1.msra.mxu0 0.0
        %659 = vmatprep.subr.mxu0 0.0
        %660 = vmatpush1.msra.mxu0 0.0
        %661 = vmatprep.subr.mxu0 0.0
        %662 = vmatpush1.msra.mxu0 0.0
        %663 = vmatprep.subr.mxu0 0.0
        %664 = vmatpush1.msra.mxu0 0.0
        %665 = vmatprep.subr.mxu0 0.0
        %666 = vmatpush1.msra.mxu0 0.0
        %667 = vmatprep.subr.mxu0 0.0
        %668 = vmatpush1.msra.mxu0 0.0
        %669 = vmatprep.subr.mxu0 0.0
        %670 = vmatpush1.msra.mxu0 0.0
        %671 = vmatprep.subr.mxu0 0.0
        %672 = vmatpush1.msra.mxu0 0.0
        %673 = vmatprep.subr.mxu0 0.0
        %674 = vmatpush1.msra.mxu0 0.0
        %675 = vmatprep.subr.mxu0 0.0
        %676 = vmatpush1.msra.mxu0 0.0
        %677 = vmatprep.subr.mxu0 0.0
        %678 = vmatpush1.msra.mxu0 0.0
        %679 = vmatprep.subr.mxu0 0.0
        %680 = vmatpush1.msra.mxu0 0.0
        %681 = vmatprep.subr.mxu0 0.0
        %682 = vmatpush1.msra.mxu0 0.0
        %683 = vmatprep.subr.mxu0 0.0
        %684 = vmatpush1.msra.mxu0 0.0
        %685 = vmatprep.subr.mxu0 0.0
        %686 = vmatpush1.msra.mxu0 0.0
        %687 = vmatprep.subr.mxu0 0.0
        %688 = vmatpush1.msra.mxu0 0.0
        %689 = vmatprep.mubr.f32.mxu0 0.0
        %690 = vmatmul.mubr.f32.gmra.mrb[0].mxu0 %v623
        %v691 = vpop.f32.mrb[0].mxu0
        %v692 = vadd.f32 0.0, %v691
        %v693 = vpop.f32.mrb[0].mxu0
        %694 = vdwg.mxu0
        %695 = vst.msk [vmem:[#allocation2] sm:$0xff] %vm532, %v692
        %696 = vrot.lane.b32.xlu0 %v521, 120
        %v697 = vpop.permute.xlu0 %696
        %698 = vrot.lane.b32.xlu0 %v521, 88
        %v699 = vpop.permute.xlu0 %698
        %v700 = vsel %vm532, %v697, 0
        %v702 = vsel %vm532, %v699, 0
        %704 = vmatprep.subr.mxu0 0.0
        %705 = vmatpush1.xpose.msra.mxu0 %v702
        %706 = vmatprep.subr.mxu0 0.0
        %707 = vmatpush1.xpose.msra.mxu0 0.0
        %708 = vmatprep.subr.mxu0 0.0
        %709 = vmatpush1.xpose.msra.mxu0 0.0
        %710 = vmatprep.subr.mxu0 0.0
        %711 = vmatpush1.xpose.msra.mxu0 0.0
        %712 = vmatprep.subr.mxu0 0.0
        %713 = vmatpush1.xpose.msra.mxu0 0.0
        %714 = vmatprep.subr.mxu0 0.0
        %715 = vmatpush1.xpose.msra.mxu0 0.0
        %716 = vmatprep.subr.mxu0 0.0
        %717 = vmatpush1.xpose.msra.mxu0 0.0
        %718 = vmatprep.subr.mxu0 0.0
        %719 = vmatpush1.xpose.msra.mxu0 0.0
        %720 = vmatprep.subr.mxu0 0.0
        %721 = vmatpush1.xpose.msra.mxu0 0.0
        %722 = vmatprep.subr.mxu0 0.0
        %723 = vmatpush1.xpose.msra.mxu0 0.0
        %724 = vmatprep.subr.mxu0 0.0
        %725 = vmatpush1.xpose.msra.mxu0 0.0
        %726 = vmatprep.subr.mxu0 0.0
        %727 = vmatpush1.xpose.msra.mxu0 0.0
        %728 = vmatprep.subr.mxu0 0.0
        %729 = vmatpush1.xpose.msra.mxu0 0.0
        %730 = vmatprep.subr.mxu0 0.0
        %731 = vmatpush1.xpose.msra.mxu0 0.0
        %732 = vmatprep.subr.mxu0 0.0
        %733 = vmatpush1.xpose.msra.mxu0 0.0
        %734 = vmatprep.subr.mxu0 0.0
        %735 = vmatpush1.xpose.msra.mxu0 0.0
        %736 = vmatprep.subr.mxu0 0.0
        %737 = vmatpush1.xpose.msra.mxu0 0.0
        %738 = vmatprep.subr.mxu0 0.0
        %739 = vmatpush1.xpose.msra.mxu0 0.0
        %740 = vmatprep.subr.mxu0 0.0
        %741 = vmatpush1.xpose.msra.mxu0 0.0
        %742 = vmatprep.subr.mxu0 0.0
        %743 = vmatpush1.xpose.msra.mxu0 0.0
        %744 = vmatprep.subr.mxu0 0.0
        %745 = vmatpush1.xpose.msra.mxu0 0.0
        %746 = vmatprep.subr.mxu0 0.0
        %747 = vmatpush1.xpose.msra.mxu0 0.0
        %748 = vmatprep.subr.mxu0 0.0
        %749 = vmatpush1.xpose.msra.mxu0 0.0
        %750 = vmatprep.subr.mxu0 0.0
        %751 = vmatpush1.xpose.msra.mxu0 0.0
        %752 = vmatprep.subr.mxu0 0.0
        %753 = vmatpush1.xpose.msra.mxu0 0.0
        %754 = vmatprep.subr.mxu0 0.0
        %755 = vmatpush1.xpose.msra.mxu0 0.0
        %756 = vmatprep.subr.mxu0 0.0
        %757 = vmatpush1.xpose.msra.mxu0 0.0
        %758 = vmatprep.subr.mxu0 0.0
        %759 = vmatpush1.xpose.msra.mxu0 0.0
        %760 = vmatprep.subr.mxu0 0.0
        %761 = vmatpush1.xpose.msra.mxu0 0.0
        %762 = vmatprep.subr.mxu0 0.0
        %763 = vmatpush1.xpose.msra.mxu0 0.0
        %764 = vmatprep.subr.mxu0 0.0
        %765 = vmatpush1.xpose.msra.mxu0 0.0
        %766 = vmatprep.subr.mxu0 0.0
        %767 = vmatpush1.xpose.msra.mxu0 0.0
        %768 = vmatprep.mubr.f32.mxu0 0.0
        %769 = vmatmul.mubr.f32.gmra.mrb[0].mxu0 %v700
        %v770 = vpop.f32.mrb[0].mxu0
        %v771 = vadd.f32 0.0, %v770
        %v772 = vpop.f32.mrb[0].mxu0
        %773 = vdwg.mxu0
        %v774 = vsel %vm528, %v771, -1e+09
        %v775 = vsel %vm532, %v774, -inf
        %776 = vmax.xlane.f32.xlu0 %v775
        %v777 = vpop.xlane.xlu0 %776
        %v778 = vsub.f32 %v774, %v777
        %v779 = vmul.f32 %v778, 1.442695
        %v780 = vpow.pop %v779
        %v781 = vsel %vm532, %v780, 0.0
        %782 = vadd.xlane.f32.xlu0 %v781
        %v783 = vpop.xlane.xlu0 %782
        %v784 = vrcp.pop %v783
        %v785 = vmul.f32 %v780, %v784
        %786 = vrot.lane.b32.xlu0 %v521, 56
        %v787 = vpop.permute.xlu0 %786
        %v790 = vsel %vm532, %v785, 0
        %792 = vmatprep.subr.mxu0 0.0
        %793 = vmatpush1.msra.mxu0 %v787
        %794 = vmatprep.subr.mxu0 0.0
        %795 = vmatpush1.msra.mxu0 0.0
        %796 = vmatprep.subr.mxu0 0.0
        %797 = vmatpush1.msra.mxu0 0.0
        %798 = vmatprep.subr.mxu0 0.0
        %799 = vmatpush1.msra.mxu0 0.0
        %800 = vmatprep.subr.mxu0 0.0
        %801 = vmatpush1.msra.mxu0 0.0
        %802 = vmatprep.subr.mxu0 0.0
        %803 = vmatpush1.msra.mxu0 0.0
        %804 = vmatprep.subr.mxu0 0.0
        %805 = vmatpush1.msra.mxu0 0.0
        %806 = vmatprep.subr.mxu0 0.0
        %807 = vmatpush1.msra.mxu0 0.0
        %808 = vmatprep.subr.mxu0 0.0
        %809 = vmatpush1.msra.mxu0 0.0
        %810 = vmatprep.subr.mxu0 0.0
        %811 = vmatpush1.msra.mxu0 0.0
        %812 = vmatprep.subr.mxu0 0.0
        %813 = vmatpush1.msra.mxu0 0.0
        %814 = vmatprep.subr.mxu0 0.0
        %815 = vmatpush1.msra.mxu0 0.0
        %816 = vmatprep.subr.mxu0 0.0
        %817 = vmatpush1.msra.mxu0 0.0
        %818 = vmatprep.subr.mxu0 0.0
        %819 = vmatpush1.msra.mxu0 0.0
        %820 = vmatprep.subr.mxu0 0.0
        %821 = vmatpush1.msra.mxu0 0.0
        %822 = vmatprep.subr.mxu0 0.0
        %823 = vmatpush1.msra.mxu0 0.0
        %824 = vmatprep.subr.mxu0 0.0
        %825 = vmatpush1.msra.mxu0 0.0
        %826 = vmatprep.subr.mxu0 0.0
        %827 = vmatpush1.msra.mxu0 0.0
        %828 = vmatprep.subr.mxu0 0.0
        %829 = vmatpush1.msra.mxu0 0.0
        %830 = vmatprep.subr.mxu0 0.0
        %831 = vmatpush1.msra.mxu0 0.0
        %832 = vmatprep.subr.mxu0 0.0
        %833 = vmatpush1.msra.mxu0 0.0
        %834 = vmatprep.subr.mxu0 0.0
        %835 = vmatpush1.msra.mxu0 0.0
        %836 = vmatprep.subr.mxu0 0.0
        %837 = vmatpush1.msra.mxu0 0.0
        %838 = vmatprep.subr.mxu0 0.0
        %839 = vmatpush1.msra.mxu0 0.0
        %840 = vmatprep.subr.mxu0 0.0
        %841 = vmatpush1.msra.mxu0 0.0
        %842 = vmatprep.subr.mxu0 0.0
        %843 = vmatpush1.msra.mxu0 0.0
        %844 = vmatprep.subr.mxu0 0.0
        %845 = vmatpush1.msra.mxu0 0.0
        %846 = vmatprep.subr.mxu0 0.0
        %847 = vmatpush1.msra.mxu0 0.0
        %848 = vmatprep.subr.mxu0 0.0
        %849 = vmatpush1.msra.mxu0 0.0
        %850 = vmatprep.subr.mxu0 0.0
        %851 = vmatpush1.msra.mxu0 0.0
        %852 = vmatprep.subr.mxu0 0.0
        %853 = vmatpush1.msra.mxu0 0.0
        %854 = vmatprep.subr.mxu0 0.0
        %855 = vmatpush1.msra.mxu0 0.0
        %856 = vmatprep.mubr.f32.mxu0 0.0
        %857 = vmatmul.mubr.f32.gmra.mrb[0].mxu0 %v790
        %v858 = vpop.f32.mrb[0].mxu0
        %v859 = vadd.f32 0.0, %v858
        %v860 = vpop.f32.mrb[0].mxu0
        %861 = vdwg.mxu0
        %863 = vrot.lane.b32.xlu0 %v859, 8
        %v864 = vpop.permute.xlu0 %863
        %vm866 = vcmask 130112
        %867 = vst.msk [vmem:[#allocation2] sm:$0xff] %vm866, %v864
        %868 = vrot.lane.b32.xlu0 %v521, 112
        %v869 = vpop.permute.xlu0 %868
        %870 = vrot.lane.b32.xlu0 %v521, 80
        %v871 = vpop.permute.xlu0 %870
        %v872 = vsel %vm532, %v869, 0
        %v874 = vsel %vm532, %v871, 0
        %876 = vmatprep.subr.mxu0 0.0
        %877 = vmatpush1.xpose.msra.mxu0 %v874
        %878 = vmatprep.subr.mxu0 0.0
        %879 = vmatpush1.xpose.msra.mxu0 0.0
        %880 = vmatprep.subr.mxu0 0.0
        %881 = vmatpush1.xpose.msra.mxu0 0.0
        %882 = vmatprep.subr.mxu0 0.0
        %883 = vmatpush1.xpose.msra.mxu0 0.0
        %884 = vmatprep.subr.mxu0 0.0
        %885 = vmatpush1.xpose.msra.mxu0 0.0
        %886 = vmatprep.subr.mxu0 0.0
        %887 = vmatpush1.xpose.msra.mxu0 0.0
        %888 = vmatprep.subr.mxu0 0.0
        %889 = vmatpush1.xpose.msra.mxu0 0.0
        %890 = vmatprep.subr.mxu0 0.0
        %891 = vmatpush1.xpose.msra.mxu0 0.0
        %892 = vmatprep.subr.mxu0 0.0
        %893 = vmatpush1.xpose.msra.mxu0 0.0
        %894 = vmatprep.subr.mxu0 0.0
        %895 = vmatpush1.xpose.msra.mxu0 0.0
        %896 = vmatprep.subr.mxu0 0.0
        %897 = vmatpush1.xpose.msra.mxu0 0.0
        %898 = vmatprep.subr.mxu0 0.0
        %899 = vmatpush1.xpose.msra.mxu0 0.0
        %900 = vmatprep.subr.mxu0 0.0
        %901 = vmatpush1.xpose.msra.mxu0 0.0
        %902 = vmatprep.subr.mxu0 0.0
        %903 = vmatpush1.xpose.msra.mxu0 0.0
        %904 = vmatprep.subr.mxu0 0.0
        %905 = vmatpush1.xpose.msra.mxu0 0.0
        %906 = vmatprep.subr.mxu0 0.0
        %907 = vmatpush1.xpose.msra.mxu0 0.0
        %908 = vmatprep.subr.mxu0 0.0
        %909 = vmatpush1.xpose.msra.mxu0 0.0
        %910 = vmatprep.subr.mxu0 0.0
        %911 = vmatpush1.xpose.msra.mxu0 0.0
        %912 = vmatprep.subr.mxu0 0.0
        %913 = vmatpush1.xpose.msra.mxu0 0.0
        %914 = vmatprep.subr.mxu0 0.0
        %915 = vmatpush1.xpose.msra.mxu0 0.0
        %916 = vmatprep.subr.mxu0 0.0
        %917 = vmatpush1.xpose.msra.mxu0 0.0
        %918 = vmatprep.subr.mxu0 0.0
        %919 = vmatpush1.xpose.msra.mxu0 0.0
        %920 = vmatprep.subr.mxu0 0.0
        %921 = vmatpush1.xpose.msra.mxu0 0.0
        %922 = vmatprep.subr.mxu0 0.0
        %923 = vmatpush1.xpose.msra.mxu0 0.0
        %924 = vmatprep.subr.mxu0 0.0
        %925 = vmatpush1.xpose.msra.mxu0 0.0
        %926 = vmatprep.subr.mxu0 0.0
        %927 = vmatpush1.xpose.msra.mxu0 0.0
        %928 = vmatprep.subr.mxu0 0.0
        %929 = vmatpush1.xpose.msra.mxu0 0.0
        %930 = vmatprep.subr.mxu0 0.0
        %931 = vmatpush1.xpose.msra.mxu0 0.0
        %932 = vmatprep.subr.mxu0 0.0
        %933 = vmatpush1.xpose.msra.mxu0 0.0
        %934 = vmatprep.subr.mxu0 0.0
        %935 = vmatpush1.xpose.msra.mxu0 0.0
        %936 = vmatprep.subr.mxu0 0.0
        %937 = vmatpush1.xpose.msra.mxu0 0.0
        %938 = vmatprep.subr.mxu0 0.0
        %939 = vmatpush1.xpose.msra.mxu0 0.0
        %940 = vmatprep.mubr.f32.mxu0 0.0
        %941 = vmatmul.mubr.f32.gmra.mrb[0].mxu0 %v872
        %v942 = vpop.f32.mrb[0].mxu0
        %v943 = vadd.f32 0.0, %v942
        %v944 = vpop.f32.mrb[0].mxu0
        %945 = vdwg.mxu0
        %v946 = vsel %vm528, %v943, -1e+09
        %v947 = vsel %vm532, %v946, -inf
        %948 = vmax.xlane.f32.xlu0 %v947
        %v949 = vpop.xlane.xlu0 %948
        %v950 = vsub.f32 %v946, %v949
        %v951 = vmul.f32 %v950, 1.442695
        %v952 = vpow.pop %v951
        %v953 = vsel %vm532, %v952, 0.0
        %954 = vadd.xlane.f32.xlu0 %v953
        %v955 = vpop.xlane.xlu0 %954
        %v956 = vrcp.pop %v955
        %v957 = vmul.f32 %v952, %v956
        %958 = vrot.lane.b32.xlu0 %v521, 48
        %v959 = vpop.permute.xlu0 %958
        %v962 = vsel %vm532, %v957, 0
        %964 = vmatprep.subr.mxu0 0.0
        %965 = vmatpush1.msra.mxu0 %v959
        %966 = vmatprep.subr.mxu0 0.0
        %967 = vmatpush1.msra.mxu0 0.0
        %968 = vmatprep.subr.mxu0 0.0
        %969 = vmatpush1.msra.mxu0 0.0
        %970 = vmatprep.subr.mxu0 0.0
        %971 = vmatpush1.msra.mxu0 0.0
        %972 = vmatprep.subr.mxu0 0.0
        %973 = vmatpush1.msra.mxu0 0.0
        %974 = vmatprep.subr.mxu0 0.0
        %975 = vmatpush1.msra.mxu0 0.0
        %976 = vmatprep.subr.mxu0 0.0
        %977 = vmatpush1.msra.mxu0 0.0
        %978 = vmatprep.subr.mxu0 0.0
        %979 = vmatpush1.msra.mxu0 0.0
        %980 = vmatprep.subr.mxu0 0.0
        %981 = vmatpush1.msra.mxu0 0.0
        %982 = vmatprep.subr.mxu0 0.0
        %983 = vmatpush1.msra.mxu0 0.0
        %984 = vmatprep.subr.mxu0 0.0
        %985 = vmatpush1.msra.mxu0 0.0
        %986 = vmatprep.subr.mxu0 0.0
        %987 = vmatpush1.msra.mxu0 0.0
        %988 = vmatprep.subr.mxu0 0.0
        %989 = vmatpush1.msra.mxu0 0.0
        %990 = vmatprep.subr.mxu0 0.0
        %991 = vmatpush1.msra.mxu0 0.0
        %992 = vmatprep.subr.mxu0 0.0
        %993 = vmatpush1.msra.mxu0 0.0
        %994 = vmatprep.subr.mxu0 0.0
        %995 = vmatpush1.msra.mxu0 0.0
        %996 = vmatprep.subr.mxu0 0.0
        %997 = vmatpush1.msra.mxu0 0.0
        %998 = vmatprep.subr.mxu0 0.0
        %999 = vmatpush1.msra.mxu0 0.0
        %1000 = vmatprep.subr.mxu0 0.0
        %1001 = vmatpush1.msra.mxu0 0.0
        %1002 = vmatprep.subr.mxu0 0.0
        %1003 = vmatpush1.msra.mxu0 0.0
        %1004 = vmatprep.subr.mxu0 0.0
        %1005 = vmatpush1.msra.mxu0 0.0
        %1006 = vmatprep.subr.mxu0 0.0
        %1007 = vmatpush1.msra.mxu0 0.0
        %1008 = vmatprep.subr.mxu0 0.0
        %1009 = vmatpush1.msra.mxu0 0.0
        %1010 = vmatprep.subr.mxu0 0.0
        %1011 = vmatpush1.msra.mxu0 0.0
        %1012 = vmatprep.subr.mxu0 0.0
        %1013 = vmatpush1.msra.mxu0 0.0
        %1014 = vmatprep.subr.mxu0 0.0
        %1015 = vmatpush1.msra.mxu0 0.0
        %1016 = vmatprep.subr.mxu0 0.0
        %1017 = vmatpush1.msra.mxu0 0.0
        %1018 = vmatprep.subr.mxu0 0.0
        %1019 = vmatpush1.msra.mxu0 0.0
        %1020 = vmatprep.subr.mxu0 0.0
        %1021 = vmatpush1.msra.mxu0 0.0
        %1022 = vmatprep.subr.mxu0 0.0
        %1023 = vmatpush1.msra.mxu0 0.0
        %1024 = vmatprep.subr.mxu0 0.0
        %1025 = vmatpush1.msra.mxu0 0.0
        %1026 = vmatprep.subr.mxu0 0.0
        %1027 = vmatpush1.msra.mxu0 0.0
        %1028 = vmatprep.mubr.f32.mxu0 0.0
        %1029 = vmatmul.mubr.f32.gmra.mrb[0].mxu0 %v962
        %v1030 = vpop.f32.mrb[0].mxu0
        %v1031 = vadd.f32 0.0, %v1030
        %v1032 = vpop.f32.mrb[0].mxu0
        %1033 = vdwg.mxu0
        %1035 = vrot.lane.b32.xlu0 %v1031, 16
        %v1036 = vpop.permute.xlu0 %1035
        %vm1038 = vcmask 195712
        %1039 = vst.msk [vmem:[#allocation2] sm:$0xff] %vm1038, %v1036
        %1040 = vrot.lane.b32.xlu0 %v521, 104
        %v1041 = vpop.permute.xlu0 %1040
        %1042 = vrot.lane.b32.xlu0 %v521, 72
        %v1043 = vpop.permute.xlu0 %1042
        %v1044 = vsel %vm532, %v1041, 0
        %v1046 = vsel %vm532, %v1043, 0
        %1048 = vmatprep.subr.mxu0 0.0
        %1049 = vmatpush1.xpose.msra.mxu0 %v1046
        %1050 = vmatprep.subr.mxu0 0.0
        %1051 = vmatpush1.xpose.msra.mxu0 0.0
        %1052 = vmatprep.subr.mxu0 0.0
        %1053 = vmatpush1.xpose.msra.mxu0 0.0
        %1054 = vmatprep.subr.mxu0 0.0
        %1055 = vmatpush1.xpose.msra.mxu0 0.0
        %1056 = vmatprep.subr.mxu0 0.0
        %1057 = vmatpush1.xpose.msra.mxu0 0.0
        %1058 = vmatprep.subr.mxu0 0.0
        %1059 = vmatpush1.xpose.msra.mxu0 0.0
        %1060 = vmatprep.subr.mxu0 0.0
        %1061 = vmatpush1.xpose.msra.mxu0 0.0
        %1062 = vmatprep.subr.mxu0 0.0
        %1063 = vmatpush1.xpose.msra.mxu0 0.0
        %1064 = vmatprep.subr.mxu0 0.0
        %1065 = vmatpush1.xpose.msra.mxu0 0.0
        %1066 = vmatprep.subr.mxu0 0.0
        %1067 = vmatpush1.xpose.msra.mxu0 0.0
        %1068 = vmatprep.subr.mxu0 0.0
        %1069 = vmatpush1.xpose.msra.mxu0 0.0
        %1070 = vmatprep.subr.mxu0 0.0
        %1071 = vmatpush1.xpose.msra.mxu0 0.0
        %1072 = vmatprep.subr.mxu0 0.0
        %1073 = vmatpush1.xpose.msra.mxu0 0.0
        %1074 = vmatprep.subr.mxu0 0.0
        %1075 = vmatpush1.xpose.msra.mxu0 0.0
        %1076 = vmatprep.subr.mxu0 0.0
        %1077 = vmatpush1.xpose.msra.mxu0 0.0
        %1078 = vmatprep.subr.mxu0 0.0
        %1079 = vmatpush1.xpose.msra.mxu0 0.0
        %1080 = vmatprep.subr.mxu0 0.0
        %1081 = vmatpush1.xpose.msra.mxu0 0.0
        %1082 = vmatprep.subr.mxu0 0.0
        %1083 = vmatpush1.xpose.msra.mxu0 0.0
        %1084 = vmatprep.subr.mxu0 0.0
        %1085 = vmatpush1.xpose.msra.mxu0 0.0
        %1086 = vmatprep.subr.mxu0 0.0
        %1087 = vmatpush1.xpose.msra.mxu0 0.0
        %1088 = vmatprep.subr.mxu0 0.0
        %1089 = vmatpush1.xpose.msra.mxu0 0.0
        %1090 = vmatprep.subr.mxu0 0.0
        %1091 = vmatpush1.xpose.msra.mxu0 0.0
        %1092 = vmatprep.subr.mxu0 0.0
        %1093 = vmatpush1.xpose.msra.mxu0 0.0
        %1094 = vmatprep.subr.mxu0 0.0
        %1095 = vmatpush1.xpose.msra.mxu0 0.0
        %1096 = vmatprep.subr.mxu0 0.0
        %1097 = vmatpush1.xpose.msra.mxu0 0.0
        %1098 = vmatprep.subr.mxu0 0.0
        %1099 = vmatpush1.xpose.msra.mxu0 0.0
        %1100 = vmatprep.subr.mxu0 0.0
        %1101 = vmatpush1.xpose.msra.mxu0 0.0
        %1102 = vmatprep.subr.mxu0 0.0
        %1103 = vmatpush1.xpose.msra.mxu0 0.0
        %1104 = vmatprep.subr.mxu0 0.0
        %1105 = vmatpush1.xpose.msra.mxu0 0.0
        %1106 = vmatprep.subr.mxu0 0.0
        %1107 = vmatpush1.xpose.msra.mxu0 0.0
        %1108 = vmatprep.subr.mxu0 0.0
        %1109 = vmatpush1.xpose.msra.mxu0 0.0
        %1110 = vmatprep.subr.mxu0 0.0
        %1111 = vmatpush1.xpose.msra.mxu0 0.0
        %1112 = vmatprep.mubr.f32.mxu0 0.0
        %1113 = vmatmul.mubr.f32.gmra.mrb[0].mxu0 %v1044
        %v1114 = vpop.f32.mrb[0].mxu0
        %v1115 = vadd.f32 0.0, %v1114
        %v1116 = vpop.f32.mrb[0].mxu0
        %1117 = vdwg.mxu0
        %v1118 = vsel %vm528, %v1115, -1e+09
        %v1119 = vsel %vm532, %v1118, -inf
        %1120 = vmax.xlane.f32.xlu0 %v1119
        %v1121 = vpop.xlane.xlu0 %1120
        %v1122 = vsub.f32 %v1118, %v1121
        %v1123 = vmul.f32 %v1122, 1.442695
        %v1124 = vpow.pop %v1123
        %v1125 = vsel %vm532, %v1124, 0.0
        %1126 = vadd.xlane.f32.xlu0 %v1125
        %v1127 = vpop.xlane.xlu0 %1126
        %v1128 = vrcp.pop %v1127
        %v1129 = vmul.f32 %v1124, %v1128
        %1130 = vrot.lane.b32.xlu0 %v521, 40
        %v1131 = vpop.permute.xlu0 %1130
        %v1134 = vsel %vm532, %v1129, 0
        %1136 = vmatprep.subr.mxu0 0.0
        %1137 = vmatpush1.msra.mxu0 %v1131
        %1138 = vmatprep.subr.mxu0 0.0
        %1139 = vmatpush1.msra.mxu0 0.0
        %1140 = vmatprep.subr.mxu0 0.0
        %1141 = vmatpush1.msra.mxu0 0.0
        %1142 = vmatprep.subr.mxu0 0.0
        %1143 = vmatpush1.msra.mxu0 0.0
        %1144 = vmatprep.subr.mxu0 0.0
        %1145 = vmatpush1.msra.mxu0 0.0
        %1146 = vmatprep.subr.mxu0 0.0
        %1147 = vmatpush1.msra.mxu0 0.0
        %1148 = vmatprep.subr.mxu0 0.0
        %1149 = vmatpush1.msra.mxu0 0.0
        %1150 = vmatprep.subr.mxu0 0.0
        %1151 = vmatpush1.msra.mxu0 0.0
        %1152 = vmatprep.subr.mxu0 0.0
        %1153 = vmatpush1.msra.mxu0 0.0
        %1154 = vmatprep.subr.mxu0 0.0
        %1155 = vmatpush1.msra.mxu0 0.0
        %1156 = vmatprep.subr.mxu0 0.0
        %1157 = vmatpush1.msra.mxu0 0.0
        %1158 = vmatprep.subr.mxu0 0.0
        %1159 = vmatpush1.msra.mxu0 0.0
        %1160 = vmatprep.subr.mxu0 0.0
        %1161 = vmatpush1.msra.mxu0 0.0
        %1162 = vmatprep.subr.mxu0 0.0
        %1163 = vmatpush1.msra.mxu0 0.0
        %1164 = vmatprep.subr.mxu0 0.0
        %1165 = vmatpush1.msra.mxu0 0.0
        %1166 = vmatprep.subr.mxu0 0.0
        %1167 = vmatpush1.msra.mxu0 0.0
        %1168 = vmatprep.subr.mxu0 0.0
        %1169 = vmatpush1.msra.mxu0 0.0
        %1170 = vmatprep.subr.mxu0 0.0
        %1171 = vmatpush1.msra.mxu0 0.0
        %1172 = vmatprep.subr.mxu0 0.0
        %1173 = vmatpush1.msra.mxu0 0.0
        %1174 = vmatprep.subr.mxu0 0.0
        %1175 = vmatpush1.msra.mxu0 0.0
        %1176 = vmatprep.subr.mxu0 0.0
        %1177 = vmatpush1.msra.mxu0 0.0
        %1178 = vmatprep.subr.mxu0 0.0
        %1179 = vmatpush1.msra.mxu0 0.0
        %1180 = vmatprep.subr.mxu0 0.0
        %1181 = vmatpush1.msra.mxu0 0.0
        %1182 = vmatprep.subr.mxu0 0.0
        %1183 = vmatpush1.msra.mxu0 0.0
        %1184 = vmatprep.subr.mxu0 0.0
        %1185 = vmatpush1.msra.mxu0 0.0
        %1186 = vmatprep.subr.mxu0 0.0
        %1187 = vmatpush1.msra.mxu0 0.0
        %1188 = vmatprep.subr.mxu0 0.0
        %1189 = vmatpush1.msra.mxu0 0.0
        %1190 = vmatprep.subr.mxu0 0.0
        %1191 = vmatpush1.msra.mxu0 0.0
        %1192 = vmatprep.subr.mxu0 0.0
        %1193 = vmatpush1.msra.mxu0 0.0
        %1194 = vmatprep.subr.mxu0 0.0
        %1195 = vmatpush1.msra.mxu0 0.0
        %1196 = vmatprep.subr.mxu0 0.0
        %1197 = vmatpush1.msra.mxu0 0.0
        %1198 = vmatprep.subr.mxu0 0.0
        %1199 = vmatpush1.msra.mxu0 0.0
        %1200 = vmatprep.mubr.f32.mxu0 0.0
        %1201 = vmatmul.mubr.f32.gmra.mrb[0].mxu0 %v1134
        %v1202 = vpop.f32.mrb[0].mxu0
        %v1203 = vadd.f32 0.0, %v1202
        %v1204 = vpop.f32.mrb[0].mxu0
        %1205 = vdwg.mxu0
        %1207 = vrot.lane.b32.xlu0 %v1203, 24
        %v1208 = vpop.permute.xlu0 %1207
        %vm1210 = vcmask 261312
        %1211 = vst.msk [vmem:[#allocation2] sm:$0xff] %vm1210, %v1208
        %v1212 = vld [vmem:[#allocation2] sm:$0xff]
        %v1213 = vld [vmem:[%s4] sm:$0xff]
        %v1214 = vld [vmem:[%s4 + $0x8] sm:$0xff]
        %v1215 = vld [vmem:[%s4 + $0x10] sm:$0xff]
        %v1216 = vld [vmem:[%s4 + $0x18] sm:$0xff]
        %v1217 = vld [vmem:[%s5] sm:$0x1]
        %v1219 = vlaneseq
        %v1220 = vshrl.u32 %v1219, 7
        %v1221 = vsub.s32 0, %v1220
        %v1222 = vrot.slane %v1217, %v1221
        %v1225 = vsel %vm412, %v1212, 0
        %1227 = vmatprep.subr.mxu0 0.0
        %1228 = vmatpush1.msra.mxu0 %v1213
        %1229 = vmatprep.subr.mxu0 0.0
        %1230 = vmatpush1.msra.mxu0 %v1214
        %1231 = vmatprep.subr.mxu0 0.0
        %1232 = vmatpush1.msra.mxu0 %v1215
        %1233 = vmatprep.subr.mxu0 0.0
        %1234 = vmatpush1.msra.mxu0 %v1216
        %1235 = vmatprep.subr.mxu0 0.0
        %1236 = vmatpush1.msra.mxu0 0.0
        %1237 = vmatprep.subr.mxu0 0.0
        %1238 = vmatpush1.msra.mxu0 0.0
        %1239 = vmatprep.subr.mxu0 0.0
        %1240 = vmatpush1.msra.mxu0 0.0
        %1241 = vmatprep.subr.mxu0 0.0
        %1242 = vmatpush1.msra.mxu0 0.0
        %1243 = vmatprep.subr.mxu0 0.0
        %1244 = vmatpush1.msra.mxu0 0.0
        %1245 = vmatprep.subr.mxu0 0.0
        %1246 = vmatpush1.msra.mxu0 0.0
        %1247 = vmatprep.subr.mxu0 0.0
        %1248 = vmatpush1.msra.mxu0 0.0
        %1249 = vmatprep.subr.mxu0 0.0
        %1250 = vmatpush1.msra.mxu0 0.0
        %1251 = vmatprep.subr.mxu0 0.0
        %1252 = vmatpush1.msra.mxu0 0.0
        %1253 = vmatprep.subr.mxu0 0.0
        %1254 = vmatpush1.msra.mxu0 0.0
        %1255 = vmatprep.subr.mxu0 0.0
        %1256 = vmatpush1.msra.mxu0 0.0
        %1257 = vmatprep.subr.mxu0 0.0
        %1258 = vmatpush1.msra.mxu0 0.0
        %1259 = vmatprep.subr.mxu0 0.0
        %1260 = vmatpush1.msra.mxu0 0.0
        %1261 = vmatprep.subr.mxu0 0.0
        %1262 = vmatpush1.msra.mxu0 0.0
        %1263 = vmatprep.subr.mxu0 0.0
        %1264 = vmatpush1.msra.mxu0 0.0
        %1265 = vmatprep.subr.mxu0 0.0
        %1266 = vmatpush1.msra.mxu0 0.0
        %1267 = vmatprep.subr.mxu0 0.0
        %1268 = vmatpush1.msra.mxu0 0.0
        %1269 = vmatprep.subr.mxu0 0.0
        %1270 = vmatpush1.msra.mxu0 0.0
        %1271 = vmatprep.subr.mxu0 0.0
        %1272 = vmatpush1.msra.mxu0 0.0
        %1273 = vmatprep.subr.mxu0 0.0
        %1274 = vmatpush1.msra.mxu0 0.0
        %1275 = vmatprep.subr.mxu0 0.0
        %1276 = vmatpush1.msra.mxu0 0.0
        %1277 = vmatprep.subr.mxu0 0.0
        %1278 = vmatpush1.msra.mxu0 0.0
        %1279 = vmatprep.subr.mxu0 0.0
        %1280 = vmatpush1.msra.mxu0 0.0
        %1281 = vmatprep.subr.mxu0 0.0
        %1282 = vmatpush1.msra.mxu0 0.0
        %1283 = vmatprep.subr.mxu0 0.0
        %1284 = vmatpush1.msra.mxu0 0.0
        %1285 = vmatprep.subr.mxu0 0.0
        %1286 = vmatpush1.msra.mxu0 0.0
        %1287 = vmatprep.subr.mxu0 0.0
        %1288 = vmatpush1.msra.mxu0 0.0
        %1289 = vmatprep.subr.mxu0 0.0
        %1290 = vmatpush1.msra.mxu0 0.0
        %1291 = vmatprep.mubr.f32.mxu0 0.0
        %1292 = vmatmul.mubr.f32.gmra.mrb[0].mxu0 %v1225
        %v1293 = vpop.f32.mrb[0].mxu0
        %v1294 = vadd.f32 %v1222, %v1293
        %v1295 = vpop.f32.mrb[0].mxu0
        %1296 = vdwg.mxu0
        %v1297 = vadd.f32 %v409, %v1294
        %v1298 = vld [vmem:[%s6] sm:$0x1]
        %v1299 = vld [vmem:[%s7] sm:$0x1]
        %v1300 = vsel %vm412, %v1297, 0.0
        %1301 = vadd.xlane.f32.xlu0 %v1300
        %v1302 = vpop.xlane.xlu0 %1301
        %v1303 = vmul.f32 %v1302, 0.03125
        %v1304 = vsub.f32 %v1297, %v1303
        %v1305 = vmul.f32 %v1304, %v1304
        %v1306 = vsel %vm412, %v1305, 0.0
        %1307 = vadd.xlane.f32.xlu0 %v1306
        %v1308 = vpop.xlane.xlu0 %1307
        %v1309 = vmul.f32 %v1308, 0.032258064
        %v1310 = vrsqrt.pop %v1309
        %v1311 = vmul.f32 %v1309, %v1310
        %vm1312 = vcmp.eq.f32.partialorder %v1309, inf
        %v1313 = vsel %vm1312, %v1309, %v1311
        %vm1314 = vcmp.eq.f32.partialorder %v1309, 0.0
        %v1315 = vand.u32 %v1309, 2147483648
        %v1316 = vsel %vm1314, %v1315, %v1313
        %v1317 = vadd.f32 %v1316, 1e-06
        %v1318 = vrsqrt.pop %v1317
        %v1319 = vmul.f32 %v1304, %v1318
        %v1321 = vlaneseq
        %v1322 = vshrl.u32 %v1321, 7
        %v1323 = vsub.s32 0, %v1322
        %v1324 = vrot.slane %v1298, %v1323
        %v1326 = vmul.f32 %v1324, %v1319
        %v1328 = vlaneseq
        %v1329 = vshrl.u32 %v1328, 7
        %v1330 = vsub.s32 0, %v1329
        %v1331 = vrot.slane %v1299, %v1330
        %v1333 = vadd.f32 %v1326, %v1331
        %v1334 = vld [vmem:[%s8] sm:$0xff]
        %v1335 = vld [vmem:[%s8 + $0x8] sm:$0xff]
        %v1336 = vld [vmem:[%s8 + $0x10] sm:$0xff]
        %v1337 = vld [vmem:[%s8 + $0x18] sm:$0xff]
        %v1338 = vld [vmem:[%s9] sm:$0x1]
        %v1340 = vlaneseq
        %v1341 = vshrl.u32 %v1340, 7
        %v1342 = vsub.s32 0, %v1341
        %v1343 = vrot.slane %v1338, %v1342
        %v1346 = vsel %vm412, %v1333, 0
        %1348 = vmatprep.subr.mxu0 0.0
        %1349 = vmatpush1.msra.mxu0 %v1334
        %1350 = vmatprep.subr.mxu0 0.0
        %1351 = vmatpush1.msra.mxu0 %v1335
        %1352 = vmatprep.subr.mxu0 0.0
        %1353 = vmatpush1.msra.mxu0 %v1336
        %1354 = vmatprep.subr.mxu0 0.0
        %1355 = vmatpush1.msra.mxu0 %v1337
        %1356 = vmatprep.subr.mxu0 0.0
        %1357 = vmatpush1.msra.mxu0 0.0
        %1358 = vmatprep.subr.mxu0 0.0
        %1359 = vmatpush1.msra.mxu0 0.0
        %1360 = vmatprep.subr.mxu0 0.0
        %1361 = vmatpush1.msra.mxu0 0.0
        %1362 = vmatprep.subr.mxu0 0.0
        %1363 = vmatpush1.msra.mxu0 0.0
        %1364 = vmatprep.subr.mxu0 0.0
        %1365 = vmatpush1.msra.mxu0 0.0
        %1366 = vmatprep.subr.mxu0 0.0
        %1367 = vmatpush1.msra.mxu0 0.0
        %1368 = vmatprep.subr.mxu0 0.0
        %1369 = vmatpush1.msra.mxu0 0.0
        %1370 = vmatprep.subr.mxu0 0.0
        %1371 = vmatpush1.msra.mxu0 0.0
        %1372 = vmatprep.subr.mxu0 0.0
        %1373 = vmatpush1.msra.mxu0 0.0
        %1374 = vmatprep.subr.mxu0 0.0
        %1375 = vmatpush1.msra.mxu0 0.0
        %1376 = vmatprep.subr.mxu0 0.0
        %1377 = vmatpush1.msra.mxu0 0.0
        %1378 = vmatprep.subr.mxu0 0.0
        %1379 = vmatpush1.msra.mxu0 0.0
        %1380 = vmatprep.subr.mxu0 0.0
        %1381 = vmatpush1.msra.mxu0 0.0
        %1382 = vmatprep.subr.mxu0 0.0
        %1383 = vmatpush1.msra.mxu0 0.0
        %1384 = vmatprep.subr.mxu0 0.0
        %1385 = vmatpush1.msra.mxu0 0.0
        %1386 = vmatprep.subr.mxu0 0.0
        %1387 = vmatpush1.msra.mxu0 0.0
        %1388 = vmatprep.subr.mxu0 0.0
        %1389 = vmatpush1.msra.mxu0 0.0
        %1390 = vmatprep.subr.mxu0 0.0
        %1391 = vmatpush1.msra.mxu0 0.0
        %1392 = vmatprep.subr.mxu0 0.0
        %1393 = vmatpush1.msra.mxu0 0.0
        %1394 = vmatprep.subr.mxu0 0.0
        %1395 = vmatpush1.msra.mxu0 0.0
        %1396 = vmatprep.subr.mxu0 0.0
        %1397 = vmatpush1.msra.mxu0 0.0
        %1398 = vmatprep.subr.mxu0 0.0
        %1399 = vmatpush1.msra.mxu0 0.0
        %1400 = vmatprep.subr.mxu0 0.0
        %1401 = vmatpush1.msra.mxu0 0.0
        %1402 = vmatprep.subr.mxu0 0.0
        %1403 = vmatpush1.msra.mxu0 0.0
        %1404 = vmatprep.subr.mxu0 0.0
        %1405 = vmatpush1.msra.mxu0 0.0
        %1406 = vmatprep.subr.mxu0 0.0
        %1407 = vmatpush1.msra.mxu0 0.0
        %1408 = vmatprep.subr.mxu0 0.0
        %1409 = vmatpush1.msra.mxu0 0.0
        %1410 = vmatprep.subr.mxu0 0.0
        %1411 = vmatpush1.msra.mxu0 0.0
        %1412 = vmatprep.mubr.f32.mxu0 0.0
        %1413 = vmatmul.mubr.f32.gmra.mrb[0].mxu0 %v1346
        %v1414 = vpop.f32.mrb[0].mxu0
        %v1415 = vadd.f32 %v1343, %v1414
        %v1416 = vpop.f32.mrb[0].mxu0
        %1417 = vdwg.mxu0
        %v1418 = vmax.f32 %v1415, 0.0
        %v1419 = vld [vmem:[%s10] sm:$0xff]
        %v1420 = vld [vmem:[%s10 + $0x8] sm:$0xff]
        %v1421 = vld [vmem:[%s10 + $0x10] sm:$0xff]
        %v1422 = vld [vmem:[%s10 + $0x18] sm:$0xff]
        %v1423 = vld [vmem:[%s10 + $0x20] sm:$0xff]
        %v1424 = vld [vmem:[%s10 + $0x28] sm:$0xff]
        %v1425 = vld [vmem:[%s10 + $0x30] sm:$0xff]
        %v1426 = vld [vmem:[%s10 + $0x38] sm:$0xff]
        %v1427 = vld [vmem:[%s10 + $0x40] sm:$0xff]
        %v1428 = vld [vmem:[%s10 + $0x48] sm:$0xff]
        %v1429 = vld [vmem:[%s10 + $0x50] sm:$0xff]
        %v1430 = vld [vmem:[%s10 + $0x58] sm:$0xff]
        %v1431 = vld [vmem:[%s10 + $0x60] sm:$0xff]
        %v1432 = vld [vmem:[%s10 + $0x68] sm:$0xff]
        %v1433 = vld [vmem:[%s10 + $0x70] sm:$0xff]
        %v1434 = vld [vmem:[%s10 + $0x78] sm:$0xff]
        %v1435 = vld [vmem:[%s11] sm:$0x1]
        %v1437 = vlaneseq
        %v1438 = vshrl.u32 %v1437, 7
        %v1439 = vsub.s32 0, %v1438
        %v1440 = vrot.slane %v1435, %v1439
        %1442 = vmatprep.subr.mxu0 0.0
        %1443 = vmatpush1.msra.mxu0 %v1419
        %1444 = vmatprep.subr.mxu0 0.0
        %1445 = vmatpush1.msra.mxu0 %v1420
        %1446 = vmatprep.subr.mxu0 0.0
        %1447 = vmatpush1.msra.mxu0 %v1421
        %1448 = vmatprep.subr.mxu0 0.0
        %1449 = vmatpush1.msra.mxu0 %v1422
        %1450 = vmatprep.subr.mxu0 0.0
        %1451 = vmatpush1.msra.mxu0 %v1423
        %1452 = vmatprep.subr.mxu0 0.0
        %1453 = vmatpush1.msra.mxu0 %v1424
        %1454 = vmatprep.subr.mxu0 0.0
        %1455 = vmatpush1.msra.mxu0 %v1425
        %1456 = vmatprep.subr.mxu0 0.0
        %1457 = vmatpush1.msra.mxu0 %v1426
        %1458 = vmatprep.subr.mxu0 0.0
        %1459 = vmatpush1.msra.mxu0 %v1427
        %1460 = vmatprep.subr.mxu0 0.0
        %1461 = vmatpush1.msra.mxu0 %v1428
        %1462 = vmatprep.subr.mxu0 0.0
        %1463 = vmatpush1.msra.mxu0 %v1429
        %1464 = vmatprep.subr.mxu0 0.0
        %1465 = vmatpush1.msra.mxu0 %v1430
        %1466 = vmatprep.subr.mxu0 0.0
        %1467 = vmatpush1.msra.mxu0 %v1431
        %1468 = vmatprep.subr.mxu0 0.0
        %1469 = vmatpush1.msra.mxu0 %v1432
        %1470 = vmatprep.subr.mxu0 0.0
        %1471 = vmatpush1.msra.mxu0 %v1433
        %1472 = vmatprep.subr.mxu0 0.0
        %1473 = vmatpush1.msra.mxu0 %v1434
        %1474 = vmatprep.subr.mxu0 0.0
        %1475 = vmatpush1.msra.mxu0 0.0
        %1476 = vmatprep.subr.mxu0 0.0
        %1477 = vmatpush1.msra.mxu0 0.0
        %1478 = vmatprep.subr.mxu0 0.0
        %1479 = vmatpush1.msra.mxu0 0.0
        %1480 = vmatprep.subr.mxu0 0.0
        %1481 = vmatpush1.msra.mxu0 0.0
        %1482 = vmatprep.subr.mxu0 0.0
        %1483 = vmatpush1.msra.mxu0 0.0
        %1484 = vmatprep.subr.mxu0 0.0
        %1485 = vmatpush1.msra.mxu0 0.0
        %1486 = vmatprep.subr.mxu0 0.0
        %1487 = vmatpush1.msra.mxu0 0.0
        %1488 = vmatprep.subr.mxu0 0.0
        %1489 = vmatpush1.msra.mxu0 0.0
        %1490 = vmatprep.subr.mxu0 0.0
        %1491 = vmatpush1.msra.mxu0 0.0
        %1492 = vmatprep.subr.mxu0 0.0
        %1493 = vmatpush1.msra.mxu0 0.0
        %1494 = vmatprep.subr.mxu0 0.0
        %1495 = vmatpush1.msra.mxu0 0.0
        %1496 = vmatprep.subr.mxu0 0.0
        %1497 = vmatpush1.msra.mxu0 0.0
        %1498 = vmatprep.subr.mxu0 0.0
        %1499 = vmatpush1.msra.mxu0 0.0
        %1500 = vmatprep.subr.mxu0 0.0
        %1501 = vmatpush1.msra.mxu0 0.0
        %1502 = vmatprep.subr.mxu0 0.0
        %1503 = vmatpush1.msra.mxu0 0.0
        %1504 = vmatprep.subr.mxu0 0.0
        %1505 = vmatpush1.msra.mxu0 0.0
        %1506 = vmatprep.mubr.f32.mxu0 0.0
        %1507 = vmatmul.mubr.f32.gmra.mrb[0].mxu0 %v1418
        %v1508 = vpop.f32.mrb[0].mxu0
        %v1509 = vadd.f32 %v1440, %v1508
        %v1510 = vpop.f32.mrb[0].mxu0
        %1511 = vdwg.mxu0
        %v1512 = vadd.f32 %v1297, %v1509
        %1513 = vst.msk [vmem:[%s404] sm:$0xff] %vm412, %v1512
        %s1514 = sand.u32 %s291, 1
        %s1515 = scalar_lea.sflag [#allocation4], %s1514
        %s1516 = sand.u32 %s291, 1
        %s1517 = smul.addr %s1516, 8
        %s1518 = scalar_lea.vmem [#allocation3], %s1517
        // Predicated region
        $region69: #{tpu_custom_call.1} parent=67 // pred_check
          %p1519 = pneg %p301
        $region70: #{tpu_custom_call.1} parent=67 // pred_check_branch
          %1521 = sbr.rel (%p1519) target = $region72
        $region71: #{tpu_custom_call.1} parent=67 // pred_region
          %s1523 = ssub.s32 128, 128
          %1524 = vsyncadd %s1515, %s1523
          %s1525 = smul.addr %s26, 128
          %s1526 = scalar_lea.hbm %s12, %s1525
          %s1528 = sshll.u32 %s1518, 4
          %s1529 = int_to_ptr.vmem [resolvable:$true] %s1528
          %1531 = dma.vmem_to_hbm [thread:$0]  %s1529, 128, %s1526, %s1515
        $region72: #{tpu_custom_call.1} parent=67 // pred_fallthru
          _
      $region68: #{tpu_custom_call.1} parent=5 // pred_fallthru
        _
      %p1532 = scmp.le.s32.totalorder 2, %s21
      // Predicated region
      $region73: #{tpu_custom_call.1} parent=5 // pred_check
        %p1533 = pneg %p1532
      $region74: #{tpu_custom_call.1} parent=5 // pred_check_branch
        %1535 = sbr.rel (%p1533) target = $region76
      $region75: #{tpu_custom_call.1} parent=5 // pred_region
        %s1536 = ssub.s32 %s21, 2
        // Predicated region
        $region77: #{tpu_custom_call.1} parent=75 // pred_check
          %p1537 = pneg %p307
        $region78: #{tpu_custom_call.1} parent=75 // pred_check_branch
          %1539 = sbr.rel (%p1537) target = $region80
        $region79: #{tpu_custom_call.1} parent=75 // pred_region
          %s1540 = sand.u32 %s292, 1
          %s1541 = scalar_lea.sflag [#allocation4], %s1540
          %s1542 = sand.u32 %s292, 1
          %s1543 = smul.addr %s1542, 8
          %s1544 = scalar_lea.vmem [#allocation3], %s1543
          %1545 = dma.done %s1541, 128
        $region80: #{tpu_custom_call.1} parent=75 // pred_fallthru
          _
      $region76: #{tpu_custom_call.1} parent=5 // pred_fallthru
        _
    $region6: #{tpu_custom_call.1} parent=1 // loop_footer
      %s25 = sadd.s32 1, %s21
    $region7: #{tpu_custom_call.1} parent=1 // loop_footer_branch
      %20 = sbr.rel target = $region3
    $region8: #{tpu_custom_call.1} parent=1 // loop_exit
      _
    %1546 = vsyncpa [#allocation4], 1
    %s1547 = scalar_lea.sflag [#allocation4], 1
    %1548 = vsyncpa %s1547, 1

// kernel: tpu_custom_call.1
$region0: #{tpu_custom_call.1}
  #allocation0 [shape = 'u32[]', space=smem, size = 0x4, offset = 0x4, fixed_abs, tag = 'smem constant byte address 0x4 - core index']
  #allocation1 [shape = 'u32[144,128]{1,0:T(1,128)}', space=vmem, size = 0x12000, scoped, tag = 'internal scratch']
  #allocation2 [shape = 'f32[1,8,32]{2,1,0:T(8,128)}', space=vmem, size = 0x1000, scoped, tag = 'scratch operand']
  %s0 = inlined_call_operand.vmem [shape: f32[2,8,32], index: 0, kind: input, shape index: {}]
  %s1 = inlined_call_operand.vmem [shape: f32[1,32], index: 1, kind: input, shape index: {}]
  %s2 = inlined_call_operand.vmem [shape: f32[1,32], index: 2, kind: input, shape index: {}]
  %s3 = inlined_call_operand.vmem [shape: f32[32,96], index: 3, kind: input, shape index: {}]
  %s4 = inlined_call_operand.vmem [shape: f32[32,32], index: 4, kind: input, shape index: {}]
  %s5 = inlined_call_operand.vmem [shape: f32[1,32], index: 5, kind: input, shape index: {}]
  %s6 = inlined_call_operand.vmem [shape: f32[1,32], index: 6, kind: input, shape index: {}]
  %s7 = inlined_call_operand.vmem [shape: f32[1,32], index: 7, kind: input, shape index: {}]
  %s8 = inlined_call_operand.vmem [shape: f32[32,128], index: 8, kind: input, shape index: {}]
  %s9 = inlined_call_operand.vmem [shape: f32[1,128], index: 9, kind: input, shape index: {}]
  %s10 = inlined_call_operand.vmem [shape: f32[128,32], index: 10, kind: input, shape index: {}]
  %s11 = inlined_call_operand.vmem [shape: f32[1,32], index: 11, kind: input, shape index: {}]
  %s12 = inlined_call_operand.hbm [shape: f32[2,8,32], index: 12, kind: output, shape index: {}]
  %s13 = sld [smem:[#allocation0]]
  $region81: #{tpu_custom_call.1} parent=0
    _
  %s15 = ssub.s32 1, %s13
  %s16 = scalar_select 0, %s15, %s13
  $region1: #{tpu_custom_call.1} parent=0
    #allocation3 [shape = 'u8[8192]{0}', space=vmem, size = 0x2000, scoped, tag = 'output window, operand 0']
    #allocation4 [shape = 's32[2]{0}', space=sflag, size = 0x8, scoped, tag = 'scoped memory for tpu_custom_call.1']
    %17 = vsyncpa [#allocation4], 0
    %s18 = scalar_lea.sflag [#allocation4], 1
    %19 = vsyncpa %s18, 0
    loop: start=0, step=1, limit=4
    $region2: #{tpu_custom_call.1} parent=1 // loop_pre_header
      _
    $region3: #{tpu_custom_call.1} parent=1 // loop_header
      %s21 = sphi 0, %s25
      %p22 = scmp.ge.s32.totalorder %s21, 4
      %s31 = sphi 0, %s33
      %s34 = sphi 0, %s31
      %s35 = sphi 0, %s34
      %s51 = sphi 0, %s35
      %s55 = sphi 0, %s55
      %s57 = sphi 0, %s55
      %s58 = sphi 0, %s57
      %s72 = sphi 0, %s58
      %s76 = sphi 0, %s76
      %s78 = sphi 0, %s76
      %s79 = sphi 0, %s78
      %s93 = sphi 0, %s79
      %s97 = sphi 0, %s97
      %s99 = sphi 0, %s97
      %s100 = sphi 0, %s99
      %s114 = sphi 0, %s100
      %s118 = sphi 0, %s118
      %s120 = sphi 0, %s118
      %s121 = sphi 0, %s120
      %s135 = sphi 0, %s121
      %s139 = sphi 0, %s139
      %s141 = sphi 0, %s139
      %s142 = sphi 0, %s141
      %s156 = sphi 0, %s142
      %s160 = sphi 0, %s160
      %s162 = sphi 0, %s160
      %s163 = sphi 0, %s162
      %s177 = sphi 0, %s163
      %s181 = sphi 0, %s181
      %s183 = sphi 0, %s181
      %s184 = sphi 0, %s183
      %s198 = sphi 0, %s184
      %s202 = sphi 0, %s202
      %s204 = sphi 0, %s202
      %s205 = sphi 0, %s204
      %s219 = sphi 0, %s205
      %s223 = sphi 0, %s223
      %s225 = sphi 0, %s223
      %s226 = sphi 0, %s225
      %s240 = sphi 0, %s226
      %s244 = sphi 0, %s244
      %s246 = sphi 0, %s244
      %s247 = sphi 0, %s246
      %s261 = sphi 0, %s247
      %s265 = sphi 0, %s265
      %s267 = sphi 0, %s265
      %s268 = sphi 0, %s267
      %s282 = sphi 0, %s268
      %s288 = sphi 0, %s290
      %s291 = sphi 0, %s288
      %s292 = sphi 0, %s291
      %s308 = sphi 0, %s292
    $region4: #{tpu_custom_call.1} parent=1 // loop_header_branch
      %24 = sbr.rel (%p22) target = $region8
    $region5: #{tpu_custom_call.1} parent=1 // loop_body
      %s26 = ssub.s32 %s21, 1
      %s27 = ssub.s32 %s21, 2
      %s28 = sadd.s32 %s21, 1
      %s29 = ssub.s32 %s21, %s28
      %p30 = scmp.eq.s32.totalorder %s29, 0
      %s32 = sadd.s32 %s31, 1
      %s33 = scalar_select %p30, %s31, %s32
      %p36 = pneg %p30
      %p37 = scmp.eq.s32.totalorder %s21, 1
      %p38 = por %p36, %p37
      %p39 = scmp.ne.s32.totalorder %s31, %s34
      %p40 = scmp.eq.s32.totalorder %s21, 0
      %p41 = por %p39, %p40
      %p42 = scmp.ne.s32.totalorder %s31, %s34
      %p43 = scmp.eq.s32.totalorder %s26, 1
      %p44 = por %p42, %p43
      %p45 = scmp.ne.s32.totalorder %s34, %s35
      %p46 = scmp.eq.s32.totalorder %s26, 0
      %p47 = por %p45, %p46
      %p48 = scmp.ne.s32.totalorder %s34, %s35
      %p49 = scmp.eq.s32.totalorder %s27, 1
      %p50 = por %p48, %p49
      %p52 = scmp.ne.s32.totalorder %s35, %s51
      %p53 = scmp.eq.s32.totalorder %s27, 0
      %p54 = por %p52, %p53
      %s56 = sadd.s32 %s55, 1
      %p59 = scmp.eq.s32.totalorder %s21, 1
      %p60 = scmp.ne.s32.totalorder %s55, %s57
      %p61 = scmp.eq.s32.totalorder %s21, 0
      %p62 = por %p60, %p61
      %p63 = scmp.ne.s32.totalorder %s55, %s57
      %p64 = scmp.eq.s32.totalorder %s26, 1
      %p65 = por %p63, %p64
      %p66 = scmp.ne.s32.totalorder %s57, %s58
      %p67 = scmp.eq.s32.totalorder %s26, 0
      %p68 = por %p66, %p67
      %p69 = scmp.ne.s32.totalorder %s57, %s58
      %p70 = scmp.eq.s32.totalorder %s27, 1
      %p71 = por %p69, %p70
      %p73 = scmp.ne.s32.totalorder %s58, %s72
      %p74 = scmp.eq.s32.totalorder %s27, 0
      %p75 = por %p73, %p74
      %s77 = sadd.s32 %s76, 1
      %p80 = scmp.eq.s32.totalorder %s21, 1
      %p81 = scmp.ne.s32.totalorder %s76, %s78
      %p82 = scmp.eq.s32.totalorder %s21, 0
      %p83 = por %p81, %p82
      %p84 = scmp.ne.s32.totalorder %s76, %s78
      %p85 = scmp.eq.s32.totalorder %s26, 1
      %p86 = por %p84, %p85
      %p87 = scmp.ne.s32.totalorder %s78, %s79
      %p88 = scmp.eq.s32.totalorder %s26, 0
      %p89 = por %p87, %p88
      %p90 = scmp.ne.s32.totalorder %s78, %s79
      %p91 = scmp.eq.s32.totalorder %s27, 1
      %p92 = por %p90, %p91
      %p94 = scmp.ne.s32.totalorder %s79, %s93
      %p95 = scmp.eq.s32.totalorder %s27, 0
      %p96 = por %p94, %p95
      %s98 = sadd.s32 %s97, 1
      %p101 = scmp.eq.s32.totalorder %s21, 1
      %p102 = scmp.ne.s32.totalorder %s97, %s99
      %p103 = scmp.eq.s32.totalorder %s21, 0
      %p104 = por %p102, %p103
      %p105 = scmp.ne.s32.totalorder %s97, %s99
      %p106 = scmp.eq.s32.totalorder %s26, 1
      %p107 = por %p105, %p106
      %p108 = scmp.ne.s32.totalorder %s99, %s100
      %p109 = scmp.eq.s32.totalorder %s26, 0
      %p110 = por %p108, %p109
      %p111 = scmp.ne.s32.totalorder %s99, %s100
      %p112 = scmp.eq.s32.totalorder %s27, 1
      %p113 = por %p111, %p112
      %p115 = scmp.ne.s32.totalorder %s100, %s114
      %p116 = scmp.eq.s32.totalorder %s27, 0
      %p117 = por %p115, %p116
      %s119 = sadd.s32 %s118, 1
      %p122 = scmp.eq.s32.totalorder %s21, 1
      %p123 = scmp.ne.s32.totalorder %s118, %s120
      %p124 = scmp.eq.s32.totalorder %s21, 0
      %p125 = por %p123, %p124
      %p126 = scmp.ne.s32.totalorder %s118, %s120
      %p127 = scmp.eq.s32.totalorder %s26, 1
      %p128 = por %p126, %p127
      %p129 = scmp.ne.s32.totalorder %s120, %s121
      %p130 = scmp.eq.s32.totalorder %s26, 0
      %p131 = por %p129, %p130
      %p132 = scmp.ne.s32.totalorder %s120, %s121
      %p133 = scmp.eq.s32.totalorder %s27, 1
      %p134 = por %p132, %p133
      %p136 = scmp.ne.s32.totalorder %s121, %s135
      %p137 = scmp.eq.s32.totalorder %s27, 0
      %p138 = por %p136, %p137
      %s140 = sadd.s32 %s139, 1
      %p143 = scmp.eq.s32.totalorder %s21, 1
      %p144 = scmp.ne.s32.totalorder %s139, %s141
      %p145 = scmp.eq.s32.totalorder %s21, 0
      %p146 = por %p144, %p145
      %p147 = scmp.ne.s32.totalorder %s139, %s141
      %p148 = scmp.eq.s32.totalorder %s26, 1
      %p149 = por %p147, %p148
      %p150 = scmp.ne.s32.totalorder %s141, %s142
      %p151 = scmp.eq.s32.totalorder %s26, 0
      %p152 = por %p150, %p151
      %p153 = scmp.ne.s32.totalorder %s141, %s142
      %p154 = scmp.eq.s32.totalorder %s27, 1
      %p155 = por %p153, %p154
      %p157 = scmp.ne.s32.totalorder %s142, %s156
      %p158 = scmp.eq.s32.totalorder %s27, 0
      %p159 = por %p157, %p158
      %s161 = sadd.s32 %s160, 1
      %p164 = scmp.eq.s32.totalorder %s21, 1
      %p165 = scmp.ne.s32.totalorder %s160, %s162
      %p166 = scmp.eq.s32.totalorder %s21, 0
      %p167 = por %p165, %p166
      %p168 = scmp.ne.s32.totalorder %s160, %s162
      %p169 = scmp.eq.s32.totalorder %s26, 1
      %p170 = por %p168, %p169
      %p171 = scmp.ne.s32.totalorder %s162, %s163
      %p172 = scmp.eq.s32.totalorder %s26, 0
      %p173 = por %p171, %p172
      %p174 = scmp.ne.s32.totalorder %s162, %s163
      %p175 = scmp.eq.s32.totalorder %s27, 1
      %p176 = por %p174, %p175
      %p178 = scmp.ne.s32.totalorder %s163, %s177
      %p179 = scmp.eq.s32.totalorder %s27, 0
      %p180 = por %p178, %p179
      %s182 = sadd.s32 %s181, 1
      %p185 = scmp.eq.s32.totalorder %s21, 1
      %p186 = scmp.ne.s32.totalorder %s181, %s183
      %p187 = scmp.eq.s32.totalorder %s21, 0
      %p188 = por %p186, %p187
      %p189 = scmp.ne.s32.totalorder %s181, %s183
      %p190 = scmp.eq.s32.totalorder %s26, 1
      %p191 = por %p189, %p190
      %p192 = scmp.ne.s32.totalorder %s183, %s184
      %p193 = scmp.eq.s32.totalorder %s26, 0
      %p194 = por %p192, %p193
      %p195 = scmp.ne.s32.totalorder %s183, %s184
      %p196 = scmp.eq.s32.totalorder %s27, 1
      %p197 = por %p195, %p196
      %p199 = scmp.ne.s32.totalorder %s184, %s198
      %p200 = scmp.eq.s32.totalorder %s27, 0
      %p201 = por %p199, %p200
      %s203 = sadd.s32 %s202, 1
      %p206 = scmp.eq.s32.totalorder %s21, 1
      %p207 = scmp.ne.s32.totalorder %s202, %s204
      %p208 = scmp.eq.s32.totalorder %s21, 0
      %p209 = por %p207, %p208
      %p210 = scmp.ne.s32.totalorder %s202, %s204
      %p211 = scmp.eq.s32.totalorder %s26, 1
      %p212 = por %p210, %p211
      %p213 = scmp.ne.s32.totalorder %s204, %s205
      %p214 = scmp.eq.s32.totalorder %s26, 0
      %p215 = por %p213, %p214
      %p216 = scmp.ne.s32.totalorder %s204, %s205
      %p217 = scmp.eq.s32.totalorder %s27, 1
      %p218 = por %p216, %p217
      %p220 = scmp.ne.s32.totalorder %s205, %s219
      %p221 = scmp.eq.s32.totalorder %s27, 0
      %p222 = por %p220, %p221
      %s224 = sadd.s32 %s223, 1
      %p227 = scmp.eq.s32.totalorder %s21, 1
      %p228 = scmp.ne.s32.totalorder %s223, %s225
      %p229 = scmp.eq.s32.totalorder %s21, 0
      %p230 = por %p228, %p229
      %p231 = scmp.ne.s32.totalorder %s223, %s225
      %p232 = scmp.eq.s32.totalorder %s26, 1
      %p233 = por %p231, %p232
      %p234 = scmp.ne.s32.totalorder %s225, %s226
      %p235 = scmp.eq.s32.totalorder %s26, 0
      %p236 = por %p234, %p235
      %p237 = scmp.ne.s32.totalorder %s225, %s226
      %p238 = scmp.eq.s32.totalorder %s27, 1
      %p239 = por %p237, %p238
      %p241 = scmp.ne.s32.totalorder %s226, %s240
      %p242 = scmp.eq.s32.totalorder %s27, 0
      %p243 = por %p241, %p242
      %s245 = sadd.s32 %s244, 1
      %p248 = scmp.eq.s32.totalorder %s21, 1
      %p249 = scmp.ne.s32.totalorder %s244, %s246
      %p250 = scmp.eq.s32.totalorder %s21, 0
      %p251 = por %p249, %p250
      %p252 = scmp.ne.s32.totalorder %s244, %s246
      %p253 = scmp.eq.s32.totalorder %s26, 1
      %p254 = por %p252, %p253
      %p255 = scmp.ne.s32.totalorder %s246, %s247
      %p256 = scmp.eq.s32.totalorder %s26, 0
      %p257 = por %p255, %p256
      %p258 = scmp.ne.s32.totalorder %s246, %s247
      %p259 = scmp.eq.s32.totalorder %s27, 1
      %p260 = por %p258, %p259
      %p262 = scmp.ne.s32.totalorder %s247, %s261
      %p263 = scmp.eq.s32.totalorder %s27, 0
      %p264 = por %p262, %p263
      %s266 = sadd.s32 %s265, 1
      %p269 = scmp.eq.s32.totalorder %s21, 1
      %p270 = scmp.ne.s32.totalorder %s265, %s267
      %p271 = scmp.eq.s32.totalorder %s21, 0
      %p272 = por %p270, %p271
      %p273 = scmp.ne.s32.totalorder %s265, %s267
      %p274 = scmp.eq.s32.totalorder %s26, 1
      %p275 = por %p273, %p274
      %p276 = scmp.ne.s32.totalorder %s267, %s268
      %p277 = scmp.eq.s32.totalorder %s26, 0
      %p278 = por %p276, %p277
      %p279 = scmp.ne.s32.totalorder %s267, %s268
      %p280 = scmp.eq.s32.totalorder %s27, 1
      %p281 = por %p279, %p280
      %p283 = scmp.ne.s32.totalorder %s268, %s282
      %p284 = scmp.eq.s32.totalorder %s27, 0
      %p285 = por %p283, %p284
      %s286 = ssub.s32 %s21, %s28
      %p287 = scmp.eq.s32.totalorder %s286, 0
      %s289 = sadd.s32 %s288, 1
      %s290 = scalar_select %p287, %s288, %s289
      %p293 = pneg %p287
      %p294 = scmp.eq.s32.totalorder %s21, 1
      %p295 = por %p293, %p294
      %p296 = scmp.ne.s32.totalorder %s288, %s291
      %p297 = scmp.eq.s32.totalorder %s21, 0
      %p298 = por %p296, %p297
      %p299 = scmp.ne.s32.totalorder %s288, %s291
      %p300 = scmp.eq.s32.totalorder %s26, 1
      %p301 = por %p299, %p300
      %p302 = scmp.ne.s32.totalorder %s291, %s292
      %p303 = scmp.eq.s32.totalorder %s26, 0
      %p304 = por %p302, %p303
      %p305 = scmp.ne.s32.totalorder %s291, %s292
      %p306 = scmp.eq.s32.totalorder %s27, 1
      %p307 = por %p305, %p306
      %p309 = scmp.ne.s32.totalorder %s292, %s308
      %p310 = scmp.eq.s32.totalorder %s27, 0
      %p311 = por %p309, %p310
      %p312 = scmp.le.s32.totalorder 1, %s21
      %p313 = scmp.lt.s32.totalorder %s21, 3
      %p314 = pnand %p312, %p313
      %p315 = pneg %p314
      // Predicated region
      $region9: #{tpu_custom_call.1} parent=5 // pred_check
        _
      $region10: #{tpu_custom_call.1} parent=5 // pred_check_branch
        %317 = sbr.rel (%p314) target = $region12
      $region11: #{tpu_custom_call.1} parent=5 // pred_region
        %s318 = ssub.s32 %s21, 1
        // Predicated region
        $region13: #{tpu_custom_call.1} parent=11 // pred_check
          %p319 = pneg %p68
        $region14: #{tpu_custom_call.1} parent=11 // pred_check_branch
          %321 = sbr.rel (%p319) target = $region16
        $region15: #{tpu_custom_call.1} parent=11 // pred_region
          _
        $region16: #{tpu_custom_call.1} parent=11 // pred_fallthru
          _
        // Predicated region
        $region17: #{tpu_custom_call.1} parent=11 // pred_check
          %p322 = pneg %p89
        $region18: #{tpu_custom_call.1} parent=11 // pred_check_branch
          %324 = sbr.rel (%p322) target = $region20
        $region19: #{tpu_custom_call.1} parent=11 // pred_region
          _
        $region20: #{tpu_custom_call.1} parent=11 // pred_fallthru
          _
        // Predicated region
        $region21: #{tpu_custom_call.1} parent=11 // pred_check
          %p325 = pneg %p110
        $region22: #{tpu_custom_call.1} parent=11 // pred_check_branch
          %327 = sbr.rel (%p325) target = $region24
        $region23: #{tpu_custom_call.1} parent=11 // pred_region
          _
        $region24: #{tpu_custom_call.1} parent=11 // pred_fallthru
          _
        // Predicated region
        $region25: #{tpu_custom_call.1} parent=11 // pred_check
          %p328 = pneg %p131
        $region26: #{tpu_custom_call.1} parent=11 // pred_check_branch
          %330 = sbr.rel (%p328) target = $region28
        $region27: #{tpu_custom_call.1} parent=11 // pred_region
          _
        $region28: #{tpu_custom_call.1} parent=11 // pred_fallthru
          _
        // Predicated region
        $region29: #{tpu_custom_call.1} parent=11 // pred_check
          %p331 = pneg %p152
        $region30: #{tpu_custom_call.1} parent=11 // pred_check_branch
          %333 = sbr.rel (%p331) target = $region32
        $region31: #{tpu_custom_call.1} parent=11 // pred_region
          _
        $region32: #{tpu_custom_call.1} parent=11 // pred_fallthru
          _
        // Predicated region
        $region33: #{tpu_custom_call.1} parent=11 // pred_check
          %p334 = pneg %p173
        $region34: #{tpu_custom_call.1} parent=11 // pred_check_branch
          %336 = sbr.rel (%p334) target = $region36
        $region35: #{tpu_custom_call.1} parent=11 // pred_region
          _
        $region36: #{tpu_custom_call.1} parent=11 // pred_fallthru
          _
        // Predicated region
        $region37: #{tpu_custom_call.1} parent=11 // pred_check
          %p337 = pneg %p194
        $region38: #{tpu_custom_call.1} parent=11 // pred_check_branch
          %339 = sbr.rel (%p337) target = $region40
        $region39: #{tpu_custom_call.1} parent=11 // pred_region
          _
        $region40: #{tpu_custom_call.1} parent=11 // pred_fallthru
          _
        // Predicated region
        $region41: #{tpu_custom_call.1} parent=11 // pred_check
          %p340 = pneg %p215
        $region42: #{tpu_custom_call.1} parent=11 // pred_check_branch
          %342 = sbr.rel (%p340) target = $region44
        $region43: #{tpu_custom_call.1} parent=11 // pred_region
          _
        $region44: #{tpu_custom_call.1} parent=11 // pred_fallthru
          _
        // Predicated region
        $region45: #{tpu_custom_call.1} parent=11 // pred_check
          %p343 = pneg %p236
        $region46: #{tpu_custom_call.1} parent=11 // pred_check_branch
          %345 = sbr.rel (%p343) target = $region48
        $region47: #{tpu_custom_call.1} parent=11 // pred_region
          _
        $region48: #{tpu_custom_call.1} parent=11 // pred_fallthru
          _
        // Predicated region
        $region49: #{tpu_custom_call.1} parent=11 // pred_check
          %p346 = pneg %p257
        $region50: #{tpu_custom_call.1} parent=11 // pred_check_branch
          %348 = sbr.rel (%p346) target = $region52
        $region51: #{tpu_custom_call.1} parent=11 // pred_region
          _
        $region52: #{tpu_custom_call.1} parent=11 // pred_fallthru
          _
        // Predicated region
        $region53: #{tpu_custom_call.1} parent=11 // pred_check
          %p349 = pneg %p278
        $region54: #{tpu_custom_call.1} parent=11 // pred_check_branch
          %351 = sbr.rel (%p349) target = $region56
        $region55: #{tpu_custom_call.1} parent=11 // pred_region
          _
        $region56: #{tpu_custom_call.1} parent=11 // pred_fallthru
          _
      $region12: #{tpu_custom_call.1} parent=5 // pred_fallthru
        _
      %p352 = scmp.lt.s32.totalorder %s21, 2
      // Predicated region
      $region57: #{tpu_custom_call.1} parent=5 // pred_check
        %p353 = pneg %p352
      $region58: #{tpu_custom_call.1} parent=5 // pred_check_branch
        %355 = sbr.rel (%p353) target = $region60
      $region59: #{tpu_custom_call.1} parent=5 // pred_region
        // Predicated region
        $region61: #{tpu_custom_call.1} parent=59 // pred_check
          %p356 = pneg %p41
        $region62: #{tpu_custom_call.1} parent=59 // pred_check_branch
          %358 = sbr.rel (%p356) target = $region64
        $region63: #{tpu_custom_call.1} parent=59 // pred_region
          %p359 = scmp.lt.s32.totalorder %s21, 1
          %s360 = scalar_select %p359, %s21, 1
          %s361 = smul.addr %s360, 8
          %s362 = scalar_lea.vmem %s0, %s361
        $region64: #{tpu_custom_call.1} parent=59 // pred_fallthru
          _
      $region60: #{tpu_custom_call.1} parent=5 // pred_fallthru
        _
      %p363 = scmp.le.s32.totalorder 1, %s21
      %p364 = scmp.lt.s32.totalorder %s21, 3
      %p365 = pnand %p363, %p364
      %p366 = pneg %p365
      // Predicated region
      $region65: #{tpu_custom_call.1} parent=5 // pred_check
        _
      $region66: #{tpu_custom_call.1} parent=5 // pred_check_branch
        %368 = sbr.rel (%p365) target = $region68
      $region67: #{tpu_custom_call.1} parent=5 // pred_region
        %s369 = ssub.s32 %s21, 1
        %p370 = scmp.lt.s32.totalorder %s26, 1
        %s371 = scalar_select %p370, %s26, 1
        %s372 = smul.addr %s371, 8
        %s373 = scalar_lea.vmem %s0, %s372
        %p374 = pneg %p47
        %p375 = pneg %p44
        %p376 = pneg %p68
        %p377 = pneg %p65
        %p378 = pneg %p89
        %p379 = pneg %p86
        %p380 = pneg %p110
        %p381 = pneg %p107
        %p382 = pneg %p131
        %p383 = pneg %p128
        %p384 = pneg %p152
        %p385 = pneg %p149
        %p386 = pneg %p173
        %p387 = pneg %p170
        %p388 = pneg %p194
        %p389 = pneg %p191
        %p390 = pneg %p215
        %p391 = pneg %p212
        %p392 = pneg %p236
        %p393 = pneg %p233
        %p394 = pneg %p257
        %p395 = pneg %p254
        %p396 = pneg %p278
        %p397 = pneg %p275
        %p398 = pneg %p304
        %p399 = pneg %p301
        %s400 = sand.u32 %s291, 1
        %s401 = scalar_lea.sflag [#allocation4], %s400
        %s402 = sand.u32 %s291, 1
        %s403 = smul.addr %s402, 8
        %s404 = scalar_lea.vmem [#allocation3], %s403
        %p405 = scmp.lt.s32.totalorder %s26, 1
        %s406 = scalar_select %p405, %s26, 1
        %s407 = smul.addr %s406, 8
        %s408 = scalar_lea.vmem %s0, %s407
        %v409 = vld [vmem:[%s408] sm:$0xff]
        %v410 = vld [vmem:[%s1] sm:$0x1]
        %v411 = vld [vmem:[%s2] sm:$0x1]
        %vm412 = vcmask 261120
        %v413 = vsel %vm412, %v409, 0.0
        %414 = vadd.xlane.f32.xlu0 %v413
        %v415 = vpop.xlane.xlu0 %414
        %v416 = vmul.f32 %v415, 0.03125
        %v417 = vsub.f32 %v409, %v416
        %v418 = vmul.f32 %v417, %v417
        %v419 = vsel %vm412, %v418, 0.0
        %420 = vadd.xlane.f32.xlu0 %v419
        %v421 = vpop.xlane.xlu0 %420
        %v422 = vmul.f32 %v421, 0.032258064
        %v423 = vrsqrt.pop %v422
        %v424 = vmul.f32 %v422, %v423
        %vm425 = vcmp.eq.f32.partialorder %v422, inf
        %v426 = vsel %vm425, %v422, %v424
        %vm427 = vcmp.eq.f32.partialorder %v422, 0.0
        %v428 = vand.u32 %v422, 2147483648
        %v429 = vsel %vm427, %v428, %v426
        %v430 = vadd.f32 %v429, 1e-06
        %v431 = vrsqrt.pop %v430
        %v432 = vmul.f32 %v417, %v431
        %v434 = vlaneseq
        %v435 = vshrl.u32 %v434, 7
        %v436 = vsub.s32 0, %v435
        %v437 = vrot.slane %v410, %v436
        %v439 = vmul.f32 %v437, %v432
        %v441 = vlaneseq
        %v442 = vshrl.u32 %v441, 7
        %v443 = vsub.s32 0, %v442
        %v444 = vrot.slane %v411, %v443
        %v446 = vadd.f32 %v439, %v444
        %v447 = vld [vmem:[%s3] sm:$0xff]
        %v448 = vld [vmem:[%s3 + $0x8] sm:$0xff]
        %v449 = vld [vmem:[%s3 + $0x10] sm:$0xff]
        %v450 = vld [vmem:[%s3 + $0x18] sm:$0xff]
        %v452 = vsel %vm412, %v446, 0
        %454 = vmatprep.subr.mxu0 0.0
        %455 = vmatpush1.msra.mxu0 %v447
        %456 = vmatprep.subr.mxu0 0.0
        %457 = vmatpush1.msra.mxu0 %v448
        %458 = vmatprep.subr.mxu0 0.0
        %459 = vmatpush1.msra.mxu0 %v449
        %460 = vmatprep.subr.mxu0 0.0
        %461 = vmatpush1.msra.mxu0 %v450
        %462 = vmatprep.subr.mxu0 0.0
        %463 = vmatpush1.msra.mxu0 0.0
        %464 = vmatprep.subr.mxu0 0.0
        %465 = vmatpush1.msra.mxu0 0.0
        %466 = vmatprep.subr.mxu0 0.0
        %467 = vmatpush1.msra.mxu0 0.0
        %468 = vmatprep.subr.mxu0 0.0
        %469 = vmatpush1.msra.mxu0 0.0
        %470 = vmatprep.subr.mxu0 0.0
        %471 = vmatpush1.msra.mxu0 0.0
        %472 = vmatprep.subr.mxu0 0.0
        %473 = vmatpush1.msra.mxu0 0.0
        %474 = vmatprep.subr.mxu0 0.0
        %475 = vmatpush1.msra.mxu0 0.0
        %476 = vmatprep.subr.mxu0 0.0
        %477 = vmatpush1.msra.mxu0 0.0
        %478 = vmatprep.subr.mxu0 0.0
        %479 = vmatpush1.msra.mxu0 0.0
        %480 = vmatprep.subr.mxu0 0.0
        %481 = vmatpush1.msra.mxu0 0.0
        %482 = vmatprep.subr.mxu0 0.0
        %483 = vmatpush1.msra.mxu0 0.0
        %484 = vmatprep.subr.mxu0 0.0
        %485 = vmatpush1.msra.mxu0 0.0
        %486 = vmatprep.subr.mxu0 0.0
        %487 = vmatpush1.msra.mxu0 0.0
        %488 = vmatprep.subr.mxu0 0.0
        %489 = vmatpush1.msra.mxu0 0.0
        %490 = vmatprep.subr.mxu0 0.0
        %491 = vmatpush1.msra.mxu0 0.0
        %492 = vmatprep.subr.mxu0 0.0
        %493 = vmatpush1.msra.mxu0 0.0
        %494 = vmatprep.subr.mxu0 0.0
        %495 = vmatpush1.msra.mxu0 0.0
        %496 = vmatprep.subr.mxu0 0.0
        %497 = vmatpush1.msra.mxu0 0.0
        %498 = vmatprep.subr.mxu0 0.0
        %499 = vmatpush1.msra.mxu0 0.0
        %500 = vmatprep.subr.mxu0 0.0
        %501 = vmatpush1.msra.mxu0 0.0
        %502 = vmatprep.subr.mxu0 0.0
        %503 = vmatpush1.msra.mxu0 0.0
        %504 = vmatprep.subr.mxu0 0.0
        %505 = vmatpush1.msra.mxu0 0.0
        %506 = vmatprep.subr.mxu0 0.0
        %507 = vmatpush1.msra.mxu0 0.0
        %508 = vmatprep.subr.mxu0 0.0
        %509 = vmatpush1.msra.mxu0 0.0
        %510 = vmatprep.subr.mxu0 0.0
        %511 = vmatpush1.msra.mxu0 0.0
        %512 = vmatprep.subr.mxu0 0.0
        %513 = vmatpush1.msra.mxu0 0.0
        %514 = vmatprep.subr.mxu0 0.0
        %515 = vmatpush1.msra.mxu0 0.0
        %516 = vmatprep.subr.mxu0 0.0
        %517 = vmatpush1.msra.mxu0 0.0
        %518 = vmatprep.mubr.f32.mxu0 0.0
        %519 = vmatmul.mubr.f32.gmra.mrb[0].mxu0 %v452
        %v520 = vpop.f32.mrb[0].mxu0
        %v521 = vadd.f32 0.0, %v520
        %v522 = vpop.f32.mrb[0].mxu0
        %523 = vdwg.mxu0
        %v524 = vlaneseq
        %v525 = vshrl.u32 %v524, 7
        %v526 = vlaneseq
        %v527 = vand.u32 %v526, 127
        %vm528 = vcmp.le.s32.totalorder %v527, %v525
        %530 = vrot.lane.b32.xlu0 %v521, 96
        %v531 = vpop.permute.xlu0 %530
        %vm532 = vcmask 64512
        %v533 = vsel %vm532, %v521, 0
        %v535 = vsel %vm532, %v531, 0
        %537 = vmatprep.subr.mxu0 0.0
        %538 = vmatpush1.xpose.msra.mxu0 %v535
        %539 = vmatprep.subr.mxu0 0.0
        %540 = vmatpush1.xpose.msra.mxu0 0.0
        %541 = vmatprep.subr.mxu0 0.0
        %542 = vmatpush1.xpose.msra.mxu0 0.0
        %543 = vmatprep.subr.mxu0 0.0
        %544 = vmatpush1.xpose.msra.mxu0 0.0
        %545 = vmatprep.subr.mxu0 0.0
        %546 = vmatpush1.xpose.msra.mxu0 0.0
        %547 = vmatprep.subr.mxu0 0.0
        %548 = vmatpush1.xpose.msra.mxu0 0.0
        %549 = vmatprep.subr.mxu0 0.0
        %550 = vmatpush1.xpose.msra.mxu0 0.0
        %551 = vmatprep.subr.mxu0 0.0
        %552 = vmatpush1.xpose.msra.mxu0 0.0
        %553 = vmatprep.subr.mxu0 0.0
        %554 = vmatpush1.xpose.msra.mxu0 0.0
        %555 = vmatprep.subr.mxu0 0.0
        %556 = vmatpush1.xpose.msra.mxu0 0.0
        %557 = vmatprep.subr.mxu0 0.0
        %558 = vmatpush1.xpose.msra.mxu0 0.0
        %559 = vmatprep.subr.mxu0 0.0
        %560 = vmatpush1.xpose.msra.mxu0 0.0
        %561 = vmatprep.subr.mxu0 0.0
        %562 = vmatpush1.xpose.msra.mxu0 0.0
        %563 = vmatprep.subr.mxu0 0.0
        %564 = vmatpush1.xpose.msra.mxu0 0.0
        %565 = vmatprep.subr.mxu0 0.0
        %566 = vmatpush1.xpose.msra.mxu0 0.0
        %567 = vmatprep.subr.mxu0 0.0
        %568 = vmatpush1.xpose.msra.mxu0 0.0
        %569 = vmatprep.subr.mxu0 0.0
        %570 = vmatpush1.xpose.msra.mxu0 0.0
        %571 = vmatprep.subr.mxu0 0.0
        %572 = vmatpush1.xpose.msra.mxu0 0.0
        %573 = vmatprep.subr.mxu0 0.0
        %574 = vmatpush1.xpose.msra.mxu0 0.0
        %575 = vmatprep.subr.mxu0 0.0
        %576 = vmatpush1.xpose.msra.mxu0 0.0
        %577 = vmatprep.subr.mxu0 0.0
        %578 = vmatpush1.xpose.msra.mxu0 0.0
        %579 = vmatprep.subr.mxu0 0.0
        %580 = vmatpush1.xpose.msra.mxu0 0.0
        %581 = vmatprep.subr.mxu0 0.0
        %582 = vmatpush1.xpose.msra.mxu0 0.0
        %583 = vmatprep.subr.mxu0 0.0
        %584 = vmatpush1.xpose.msra.mxu0 0.0
        %585 = vmatprep.subr.mxu0 0.0
        %586 = vmatpush1.xpose.msra.mxu0 0.0
        %587 = vmatprep.subr.mxu0 0.0
        %588 = vmatpush1.xpose.msra.mxu0 0.0
        %589 = vmatprep.subr.mxu0 0.0
        %590 = vmatpush1.xpose.msra.mxu0 0.0
        %591 = vmatprep.subr.mxu0 0.0
        %592 = vmatpush1.xpose.msra.mxu0 0.0
        %593 = vmatprep.subr.mxu0 0.0
        %594 = vmatpush1.xpose.msra.mxu0 0.0
        %595 = vmatprep.subr.mxu0 0.0
        %596 = vmatpush1.xpose.msra.mxu0 0.0
        %597 = vmatprep.subr.mxu0 0.0
        %598 = vmatpush1.xpose.msra.mxu0 0.0
        %599 = vmatprep.subr.mxu0 0.0
        %600 = vmatpush1.xpose.msra.mxu0 0.0
        %601 = vmatprep.mubr.f32.mxu0 0.0
        %602 = vmatmul.mubr.f32.gmra.mrb[0].mxu0 %v533
        %v603 = vpop.f32.mrb[0].mxu0
        %v604 = vadd.f32 0.0, %v603
        %v605 = vpop.f32.mrb[0].mxu0
        %606 = vdwg.mxu0
        %v607 = vsel %vm528, %v604, -1e+09
        %v608 = vsel %vm532, %v607, -inf
        %609 = vmax.xlane.f32.xlu0 %v608
        %v610 = vpop.xlane.xlu0 %609
        %v611 = vsub.f32 %v607, %v610
        %v612 = vmul.f32 %v611, 1.442695
        %v613 = vpow.pop %v612
        %v614 = vsel %vm532, %v613, 0.0
        %615 = vadd.xlane.f32.xlu0 %v614
        %v616 = vpop.xlane.xlu0 %615
        %v617 = vrcp.pop %v616
        %v618 = vmul.f32 %v613, %v617
        %619 = vrot.lane.b32.xlu0 %v521, 64
        %v620 = vpop.permute.xlu0 %619
        %v623 = vsel %vm532, %v618, 0
        %625 = vmatprep.subr.mxu0 0.0
        %626 = vmatpush1.msra.mxu0 %v620
        %627 = vmatprep.subr.mxu0 0.0
        %628 = vmatpush1.msra.mxu0 0.0
        %629 = vmatprep.subr.mxu0 0.0
        %630 = vmatpush1.msra.mxu0 0.0
        %631 = vmatprep.subr.mxu0 0.0
        %632 = vmatpush1.msra.mxu0 0.0
        %633 = vmatprep.subr.mxu0 0.0
        %634 = vmatpush1.msra.mxu0 0.0
        %635 = vmatprep.subr.mxu0 0.0
        %636 = vmatpush1.msra.mxu0 0.0
        %637 = vmatprep.subr.mxu0 0.0
        %638 = vmatpush1.msra.mxu0 0.0
        %639 = vmatprep.subr.mxu0 0.0
        %640 = vmatpush1.msra.mxu0 0.0
        %641 = vmatprep.subr.mxu0 0.0
        %642 = vmatpush1.msra.mxu0 0.0
        %643 = vmatprep.subr.mxu0 0.0
        %644 = vmatpush1.msra.mxu0 0.0
        %645 = vmatprep.subr.mxu0 0.0
        %646 = vmatpush1.msra.mxu0 0.0
        %647 = vmatprep.subr.mxu0 0.0
        %648 = vmatpush1.msra.mxu0 0.0
        %649 = vmatprep.subr.mxu0 0.0
        %650 = vmatpush1.msra.mxu0 0.0
        %651 = vmatprep.subr.mxu0 0.0
        %652 = vmatpush1.msra.mxu0 0.0
        %653 = vmatprep.subr.mxu0 0.0
        %654 = vmatpush1.msra.mxu0 0.0
        %655 = vmatprep.subr.mxu0 0.0
        %656 = vmatpush1.msra.mxu0 0.0
        %657 = vmatprep.subr.mxu0 0.0
        %658 = vmatpush1.msra.mxu0 0.0
        %659 = vmatprep.subr.mxu0 0.0
        %660 = vmatpush1.msra.mxu0 0.0
        %661 = vmatprep.subr.mxu0 0.0
        %662 = vmatpush1.msra.mxu0 0.0
        %663 = vmatprep.subr.mxu0 0.0
        %664 = vmatpush1.msra.mxu0 0.0
        %665 = vmatprep.subr.mxu0 0.0
        %666 = vmatpush1.msra.mxu0 0.0
        %667 = vmatprep.subr.mxu0 0.0
        %668 = vmatpush1.msra.mxu0 0.0
        %669 = vmatprep.subr.mxu0 0.0
        %670 = vmatpush1.msra.mxu0 0.0
        %671 = vmatprep.subr.mxu0 0.0
        %672 = vmatpush1.msra.mxu0 0.0
        %673 = vmatprep.subr.mxu0 0.0
        %674 = vmatpush1.msra.mxu0 0.0
        %675 = vmatprep.subr.mxu0 0.0
        %676 = vmatpush1.msra.mxu0 0.0
        %677 = vmatprep.subr.mxu0 0.0
        %678 = vmatpush1.msra.mxu0 0.0
        %679 = vmatprep.subr.mxu0 0.0
        %680 = vmatpush1.msra.mxu0 0.0
        %681 = vmatprep.subr.mxu0 0.0
        %682 = vmatpush1.msra.mxu0 0.0
        %683 = vmatprep.subr.mxu0 0.0
        %684 = vmatpush1.msra.mxu0 0.0
        %685 = vmatprep.subr.mxu0 0.0
        %686 = vmatpush1.msra.mxu0 0.0
        %687 = vmatprep.subr.mxu0 0.0
        %688 = vmatpush1.msra.mxu0 0.0
        %689 = vmatprep.mubr.f32.mxu0 0.0
        %690 = vmatmul.mubr.f32.gmra.mrb[0].mxu0 %v623
        %v691 = vpop.f32.mrb[0].mxu0
        %v692 = vadd.f32 0.0, %v691
        %v693 = vpop.f32.mrb[0].mxu0
        %694 = vdwg.mxu0
        %695 = vst.msk [vmem:[#allocation2] sm:$0xff] %vm532, %v692
        %696 = vrot.lane.b32.xlu0 %v521, 120
        %v697 = vpop.permute.xlu0 %696
        %698 = vrot.lane.b32.xlu0 %v521, 88
        %v699 = vpop.permute.xlu0 %698
        %v700 = vsel %vm532, %v697, 0
        %v702 = vsel %vm532, %v699, 0
        %704 = vmatprep.subr.mxu0 0.0
        %705 = vmatpush1.xpose.msra.mxu0 %v702
        %706 = vmatprep.subr.mxu0 0.0
        %707 = vmatpush1.xpose.msra.mxu0 0.0
        %708 = vmatprep.subr.mxu0 0.0
        %709 = vmatpush1.xpose.msra.mxu0 0.0
        %710 = vmatprep.subr.mxu0 0.0
        %711 = vmatpush1.xpose.msra.mxu0 0.0
        %712 = vmatprep.subr.mxu0 0.0
        %713 = vmatpush1.xpose.msra.mxu0 0.0
        %714 = vmatprep.subr.mxu0 0.0
        %715 = vmatpush1.xpose.msra.mxu0 0.0
        %716 = vmatprep.subr.mxu0 0.0
        %717 = vmatpush1.xpose.msra.mxu0 0.0
        %718 = vmatprep.subr.mxu0 0.0
        %719 = vmatpush1.xpose.msra.mxu0 0.0
        %720 = vmatprep.subr.mxu0 0.0
        %721 = vmatpush1.xpose.msra.mxu0 0.0
        %722 = vmatprep.subr.mxu0 0.0
        %723 = vmatpush1.xpose.msra.mxu0 0.0
        %724 = vmatprep.subr.mxu0 0.0
        %725 = vmatpush1.xpose.msra.mxu0 0.0
        %726 = vmatprep.subr.mxu0 0.0
        %727 = vmatpush1.xpose.msra.mxu0 0.0
        %728 = vmatprep.subr.mxu0 0.0
        %729 = vmatpush1.xpose.msra.mxu0 0.0
        %730 = vmatprep.subr.mxu0 0.0
        %731 = vmatpush1.xpose.msra.mxu0 0.0
        %732 = vmatprep.subr.mxu0 0.0
        %733 = vmatpush1.xpose.msra.mxu0 0.0
        %734 = vmatprep.subr.mxu0 0.0
        %735 = vmatpush1.xpose.msra.mxu0 0.0
        %736 = vmatprep.subr.mxu0 0.0
        %737 = vmatpush1.xpose.msra.mxu0 0.0
        %738 = vmatprep.subr.mxu0 0.0
        %739 = vmatpush1.xpose.msra.mxu0 0.0
        %740 = vmatprep.subr.mxu0 0.0
        %741 = vmatpush1.xpose.msra.mxu0 0.0
        %742 = vmatprep.subr.mxu0 0.0
        %743 = vmatpush1.xpose.msra.mxu0 0.0
        %744 = vmatprep.subr.mxu0 0.0
        %745 = vmatpush1.xpose.msra.mxu0 0.0
        %746 = vmatprep.subr.mxu0 0.0
        %747 = vmatpush1.xpose.msra.mxu0 0.0
        %748 = vmatprep.subr.mxu0 0.0
        %749 = vmatpush1.xpose.msra.mxu0 0.0
        %750 = vmatprep.subr.mxu0 0.0
        %751 = vmatpush1.xpose.msra.mxu0 0.0
        %752 = vmatprep.subr.mxu0 0.0
        %753 = vmatpush1.xpose.msra.mxu0 0.0
        %754 = vmatprep.subr.mxu0 0.0
        %755 = vmatpush1.xpose.msra.mxu0 0.0
        %756 = vmatprep.subr.mxu0 0.0
        %757 = vmatpush1.xpose.msra.mxu0 0.0
        %758 = vmatprep.subr.mxu0 0.0
        %759 = vmatpush1.xpose.msra.mxu0 0.0
        %760 = vmatprep.subr.mxu0 0.0
        %761 = vmatpush1.xpose.msra.mxu0 0.0
        %762 = vmatprep.subr.mxu0 0.0
        %763 = vmatpush1.xpose.msra.mxu0 0.0
        %764 = vmatprep.subr.mxu0 0.0
        %765 = vmatpush1.xpose.msra.mxu0 0.0
        %766 = vmatprep.subr.mxu0 0.0
        %767 = vmatpush1.xpose.msra.mxu0 0.0
        %768 = vmatprep.mubr.f32.mxu0 0.0
        %769 = vmatmul.mubr.f32.gmra.mrb[0].mxu0 %v700
        %v770 = vpop.f32.mrb[0].mxu0
        %v771 = vadd.f32 0.0, %v770
        %v772 = vpop.f32.mrb[0].mxu0
        %773 = vdwg.mxu0
        %v774 = vsel %vm528, %v771, -1e+09
        %v775 = vsel %vm532, %v774, -inf
        %776 = vmax.xlane.f32.xlu0 %v775
        %v777 = vpop.xlane.xlu0 %776
        %v778 = vsub.f32 %v774, %v777
        %v779 = vmul.f32 %v778, 1.442695
        %v780 = vpow.pop %v779
        %v781 = vsel %vm532, %v780, 0.0
        %782 = vadd.xlane.f32.xlu0 %v781
        %v783 = vpop.xlane.xlu0 %782
        %v784 = vrcp.pop %v783
        %v785 = vmul.f32 %v780, %v784
        %786 = vrot.lane.b32.xlu0 %v521, 56
        %v787 = vpop.permute.xlu0 %786
        %v790 = vsel %vm532, %v785, 0
        %792 = vmatprep.subr.mxu0 0.0
        %793 = vmatpush1.msra.mxu0 %v787
        %794 = vmatprep.subr.mxu0 0.0
        %795 = vmatpush1.msra.mxu0 0.0
        %796 = vmatprep.subr.mxu0 0.0
        %797 = vmatpush1.msra.mxu0 0.0
        %798 = vmatprep.subr.mxu0 0.0
        %799 = vmatpush1.msra.mxu0 0.0
        %800 = vmatprep.subr.mxu0 0.0
        %801 = vmatpush1.msra.mxu0 0.0
        %802 = vmatprep.subr.mxu0 0.0
        %803 = vmatpush1.msra.mxu0 0.0
        %804 = vmatprep.subr.mxu0 0.0
        %805 = vmatpush1.msra.mxu0 0.0
        %806 = vmatprep.subr.mxu0 0.0
        %807 = vmatpush1.msra.mxu0 0.0
        %808 = vmatprep.subr.mxu0 0.0
        %809 = vmatpush1.msra.mxu0 0.0
        %810 = vmatprep.subr.mxu0 0.0
        %811 = vmatpush1.msra.mxu0 0.0
        %812 = vmatprep.subr.mxu0 0.0
        %813 = vmatpush1.msra.mxu0 0.0
        %814 = vmatprep.subr.mxu0 0.0
        %815 = vmatpush1.msra.mxu0 0.0
        %816 = vmatprep.subr.mxu0 0.0
        %817 = vmatpush1.msra.mxu0 0.0
        %818 = vmatprep.subr.mxu0 0.0
        %819 = vmatpush1.msra.mxu0 0.0
        %820 = vmatprep.subr.mxu0 0.0
        %821 = vmatpush1.msra.mxu0 0.0
        %822 = vmatprep.subr.mxu0 0.0
        %823 = vmatpush1.msra.mxu0 0.0
        %824 = vmatprep.subr.mxu0 0.0
        %825 = vmatpush1.msra.mxu0 0.0
        %826 = vmatprep.subr.mxu0 0.0
        %827 = vmatpush1.msra.mxu0 0.0
        %828 = vmatprep.subr.mxu0 0.0
        %829 = vmatpush1.msra.mxu0 0.0
        %830 = vmatprep.subr.mxu0 0.0
        %831 = vmatpush1.msra.mxu0 0.0
        %832 = vmatprep.subr.mxu0 0.0
        %833 = vmatpush1.msra.mxu0 0.0
        %834 = vmatprep.subr.mxu0 0.0
        %835 = vmatpush1.msra.mxu0 0.0
        %836 = vmatprep.subr.mxu0 0.0
        %837 = vmatpush1.msra.mxu0 0.0
        %838 = vmatprep.subr.mxu0 0.0
        %839 = vmatpush1.msra.mxu0 0.0
        %840 = vmatprep.subr.mxu0 0.0
        %841 = vmatpush1.msra.mxu0 0.0
        %842 = vmatprep.subr.mxu0 0.0
        %843 = vmatpush1.msra.mxu0 0.0
        %844 = vmatprep.subr.mxu0 0.0
        %845 = vmatpush1.msra.mxu0 0.0
        %846 = vmatprep.subr.mxu0 0.0
        %847 = vmatpush1.msra.mxu0 0.0
        %848 = vmatprep.subr.mxu0 0.0
        %849 = vmatpush1.msra.mxu0 0.0
        %850 = vmatprep.subr.mxu0 0.0
        %851 = vmatpush1.msra.mxu0 0.0
        %852 = vmatprep.subr.mxu0 0.0
        %853 = vmatpush1.msra.mxu0 0.0
        %854 = vmatprep.subr.mxu0 0.0
        %855 = vmatpush1.msra.mxu0 0.0
        %856 = vmatprep.mubr.f32.mxu0 0.0
        %857 = vmatmul.mubr.f32.gmra.mrb[0].mxu0 %v790
        %v858 = vpop.f32.mrb[0].mxu0
        %v859 = vadd.f32 0.0, %v858
        %v860 = vpop.f32.mrb[0].mxu0
        %861 = vdwg.mxu0
        %863 = vrot.lane.b32.xlu0 %v859, 8
        %v864 = vpop.permute.xlu0 %863
        %vm866 = vcmask 130112
        %867 = vst.msk [vmem:[#allocation2] sm:$0xff] %vm866, %v864
        %868 = vrot.lane.b32.xlu0 %v521, 112
        %v869 = vpop.permute.xlu0 %868
        %870 = vrot.lane.b32.xlu0 %v521, 80
        %v871 = vpop.permute.xlu0 %870
        %v872 = vsel %vm532, %v869, 0
        %v874 = vsel %vm532, %v871, 0
        %876 = vmatprep.subr.mxu0 0.0
        %877 = vmatpush1.xpose.msra.mxu0 %v874
        %878 = vmatprep.subr.mxu0 0.0
        %879 = vmatpush1.xpose.msra.mxu0 0.0
        %880 = vmatprep.subr.mxu0 0.0
        %881 = vmatpush1.xpose.msra.mxu0 0.0
        %882 = vmatprep.subr.mxu0 0.0
        %883 = vmatpush1.xpose.msra.mxu0 0.0
        %884 = vmatprep.subr.mxu0 0.0
        %885 = vmatpush1.xpose.msra.mxu0 0.0
        %886 = vmatprep.subr.mxu0 0.0
        %887 = vmatpush1.xpose.msra.mxu0 0.0
        %888 = vmatprep.subr.mxu0 0.0
        %889 = vmatpush1.xpose.msra.mxu0 0.0
        %890 = vmatprep.subr.mxu0 0.0
        %891 = vmatpush1.xpose.msra.mxu0 0.0
        %892 = vmatprep.subr.mxu0 0.0
        %893 = vmatpush1.xpose.msra.mxu0 0.0
        %894 = vmatprep.subr.mxu0 0.0
        %895 = vmatpush1.xpose.msra.mxu0 0.0
        %896 = vmatprep.subr.mxu0 0.0
        %897 = vmatpush1.xpose.msra.mxu0 0.0
        %898 = vmatprep.subr.mxu0 0.0
        %899 = vmatpush1.xpose.msra.mxu0 0.0
        %900 = vmatprep.subr.mxu0 0.0
        %901 = vmatpush1.xpose.msra.mxu0 0.0
        %902 = vmatprep.subr.mxu0 0.0
        %903 = vmatpush1.xpose.msra.mxu0 0.0
        %904 = vmatprep.subr.mxu0 0.0
        %905 = vmatpush1.xpose.msra.mxu0 0.0
        %906 = vmatprep.subr.mxu0 0.0
        %907 = vmatpush1.xpose.msra.mxu0 0.0
        %908 = vmatprep.subr.mxu0 0.0
        %909 = vmatpush1.xpose.msra.mxu0 0.0
        %910 = vmatprep.subr.mxu0 0.0
        %911 = vmatpush1.xpose.msra.mxu0 0.0
        %912 = vmatprep.subr.mxu0 0.0
        %913 = vmatpush1.xpose.msra.mxu0 0.0
        %914 = vmatprep.subr.mxu0 0.0
        %915 = vmatpush1.xpose.msra.mxu0 0.0
        %916 = vmatprep.subr.mxu0 0.0
        %917 = vmatpush1.xpose.msra.mxu0 0.0
        %918 = vmatprep.subr.mxu0 0.0
        %919 = vmatpush1.xpose.msra.mxu0 0.0
        %920 = vmatprep.subr.mxu0 0.0
        %921 = vmatpush1.xpose.msra.mxu0 0.0
        %922 = vmatprep.subr.mxu0 0.0
        %923 = vmatpush1.xpose.msra.mxu0 0.0
        %924 = vmatprep.subr.mxu0 0.0
        %925 = vmatpush1.xpose.msra.mxu0 0.0
        %926 = vmatprep.subr.mxu0 0.0
        %927 = vmatpush1.xpose.msra.mxu0 0.0
        %928 = vmatprep.subr.mxu0 0.0
        %929 = vmatpush1.xpose.msra.mxu0 0.0
        %930 = vmatprep.subr.mxu0 0.0
        %931 = vmatpush1.xpose.msra.mxu0 0.0
        %932 = vmatprep.subr.mxu0 0.0
        %933 = vmatpush1.xpose.msra.mxu0 0.0
        %934 = vmatprep.subr.mxu0 0.0
        %935 = vmatpush1.xpose.msra.mxu0 0.0
        %936 = vmatprep.subr.mxu0 0.0
        %937 = vmatpush1.xpose.msra.mxu0 0.0
        %938 = vmatprep.subr.mxu0 0.0
        %939 = vmatpush1.xpose.msra.mxu0 0.0
        %940 = vmatprep.mubr.f32.mxu0 0.0
        %941 = vmatmul.mubr.f32.gmra.mrb[0].mxu0 %v872
        %v942 = vpop.f32.mrb[0].mxu0
        %v943 = vadd.f32 0.0, %v942
        %v944 = vpop.f32.mrb[0].mxu0
        %945 = vdwg.mxu0
        %v946 = vsel %vm528, %v943, -1e+09
        %v947 = vsel %vm532, %v946, -inf
        %948 = vmax.xlane.f32.xlu0 %v947
        %v949 = vpop.xlane.xlu0 %948
        %v950 = vsub.f32 %v946, %v949
        %v951 = vmul.f32 %v950, 1.442695
        %v952 = vpow.pop %v951
        %v953 = vsel %vm532, %v952, 0.0
        %954 = vadd.xlane.f32.xlu0 %v953
        %v955 = vpop.xlane.xlu0 %954
        %v956 = vrcp.pop %v955
        %v957 = vmul.f32 %v952, %v956
        %958 = vrot.lane.b32.xlu0 %v521, 48
        %v959 = vpop.permute.xlu0 %958
        %v962 = vsel %vm532, %v957, 0
        %964 = vmatprep.subr.mxu0 0.0
        %965 = vmatpush1.msra.mxu0 %v959
        %966 = vmatprep.subr.mxu0 0.0
        %967 = vmatpush1.msra.mxu0 0.0
        %968 = vmatprep.subr.mxu0 0.0
        %969 = vmatpush1.msra.mxu0 0.0
        %970 = vmatprep.subr.mxu0 0.0
        %971 = vmatpush1.msra.mxu0 0.0
        %972 = vmatprep.subr.mxu0 0.0
        %973 = vmatpush1.msra.mxu0 0.0
        %974 = vmatprep.subr.mxu0 0.0
        %975 = vmatpush1.msra.mxu0 0.0
        %976 = vmatprep.subr.mxu0 0.0
        %977 = vmatpush1.msra.mxu0 0.0
        %978 = vmatprep.subr.mxu0 0.0
        %979 = vmatpush1.msra.mxu0 0.0
        %980 = vmatprep.subr.mxu0 0.0
        %981 = vmatpush1.msra.mxu0 0.0
        %982 = vmatprep.subr.mxu0 0.0
        %983 = vmatpush1.msra.mxu0 0.0
        %984 = vmatprep.subr.mxu0 0.0
        %985 = vmatpush1.msra.mxu0 0.0
        %986 = vmatprep.subr.mxu0 0.0
        %987 = vmatpush1.msra.mxu0 0.0
        %988 = vmatprep.subr.mxu0 0.0
        %989 = vmatpush1.msra.mxu0 0.0
        %990 = vmatprep.subr.mxu0 0.0
        %991 = vmatpush1.msra.mxu0 0.0
        %992 = vmatprep.subr.mxu0 0.0
        %993 = vmatpush1.msra.mxu0 0.0
        %994 = vmatprep.subr.mxu0 0.0
        %995 = vmatpush1.msra.mxu0 0.0
        %996 = vmatprep.subr.mxu0 0.0
        %997 = vmatpush1.msra.mxu0 0.0
        %998 = vmatprep.subr.mxu0 0.0
        %999 = vmatpush1.msra.mxu0 0.0
        %1000 = vmatprep.subr.mxu0 0.0
        %1001 = vmatpush1.msra.mxu0 0.0
        %1002 = vmatprep.subr.mxu0 0.0
        %1003 = vmatpush1.msra.mxu0 0.0
        %1004 = vmatprep.subr.mxu0 0.0
        %1005 = vmatpush1.msra.mxu0 0.0
        %1006 = vmatprep.subr.mxu0 0.0
        %1007 = vmatpush1.msra.mxu0 0.0
        %1008 = vmatprep.subr.mxu0 0.0
        %1009 = vmatpush1.msra.mxu0 0.0
        %1010 = vmatprep.subr.mxu0 0.0
        %1011 = vmatpush1.msra.mxu0 0.0
        %1012 = vmatprep.subr.mxu0 0.0
        %1013 = vmatpush1.msra.mxu0 0.0
        %1014 = vmatprep.subr.mxu0 0.0
        %1015 = vmatpush1.msra.mxu0 0.0
        %1016 = vmatprep.subr.mxu0 0.0
        %1017 = vmatpush1.msra.mxu0 0.0
        %1018 = vmatprep.subr.mxu0 0.0
        %1019 = vmatpush1.msra.mxu0 0.0
        %1020 = vmatprep.subr.mxu0 0.0
        %1021 = vmatpush1.msra.mxu0 0.0
        %1022 = vmatprep.subr.mxu0 0.0
        %1023 = vmatpush1.msra.mxu0 0.0
        %1024 = vmatprep.subr.mxu0 0.0
        %1025 = vmatpush1.msra.mxu0 0.0
        %1026 = vmatprep.subr.mxu0 0.0
        %1027 = vmatpush1.msra.mxu0 0.0
        %1028 = vmatprep.mubr.f32.mxu0 0.0
        %1029 = vmatmul.mubr.f32.gmra.mrb[0].mxu0 %v962
        %v1030 = vpop.f32.mrb[0].mxu0
        %v1031 = vadd.f32 0.0, %v1030
        %v1032 = vpop.f32.mrb[0].mxu0
        %1033 = vdwg.mxu0
        %1035 = vrot.lane.b32.xlu0 %v1031, 16
        %v1036 = vpop.permute.xlu0 %1035
        %vm1038 = vcmask 195712
        %1039 = vst.msk [vmem:[#allocation2] sm:$0xff] %vm1038, %v1036
        %1040 = vrot.lane.b32.xlu0 %v521, 104
        %v1041 = vpop.permute.xlu0 %1040
        %1042 = vrot.lane.b32.xlu0 %v521, 72
        %v1043 = vpop.permute.xlu0 %1042
        %v1044 = vsel %vm532, %v1041, 0
        %v1046 = vsel %vm532, %v1043, 0
        %1048 = vmatprep.subr.mxu0 0.0
        %1049 = vmatpush1.xpose.msra.mxu0 %v1046
        %1050 = vmatprep.subr.mxu0 0.0
        %1051 = vmatpush1.xpose.msra.mxu0 0.0
        %1052 = vmatprep.subr.mxu0 0.0
        %1053 = vmatpush1.xpose.msra.mxu0 0.0
        %1054 = vmatprep.subr.mxu0 0.0
        %1055 = vmatpush1.xpose.msra.mxu0 0.0
        %1056 = vmatprep.subr.mxu0 0.0
        %1057 = vmatpush1.xpose.msra.mxu0 0.0
        %1058 = vmatprep.subr.mxu0 0.0
        %1059 = vmatpush1.xpose.msra.mxu0 0.0
        %1060 = vmatprep.subr.mxu0 0.0
        %1061 = vmatpush1.xpose.msra.mxu0 0.0
        %1062 = vmatprep.subr.mxu0 0.0
        %1063 = vmatpush1.xpose.msra.mxu0 0.0
        %1064 = vmatprep.subr.mxu0 0.0
        %1065 = vmatpush1.xpose.msra.mxu0 0.0
        %1066 = vmatprep.subr.mxu0 0.0
        %1067 = vmatpush1.xpose.msra.mxu0 0.0
        %1068 = vmatprep.subr.mxu0 0.0
        %1069 = vmatpush1.xpose.msra.mxu0 0.0
        %1070 = vmatprep.subr.mxu0 0.0
        %1071 = vmatpush1.xpose.msra.mxu0 0.0
        %1072 = vmatprep.subr.mxu0 0.0
        %1073 = vmatpush1.xpose.msra.mxu0 0.0
        %1074 = vmatprep.subr.mxu0 0.0
        %1075 = vmatpush1.xpose.msra.mxu0 0.0
        %1076 = vmatprep.subr.mxu0 0.0
        %1077 = vmatpush1.xpose.msra.mxu0 0.0
        %1078 = vmatprep.subr.mxu0 0.0
        %1079 = vmatpush1.xpose.msra.mxu0 0.0
        %1080 = vmatprep.subr.mxu0 0.0
        %1081 = vmatpush1.xpose.msra.mxu0 0.0
        %1082 = vmatprep.subr.mxu0 0.0
        %1083 = vmatpush1.xpose.msra.mxu0 0.0
        %1084 = vmatprep.subr.mxu0 0.0
        %1085 = vmatpush1.xpose.msra.mxu0 0.0
        %1086 = vmatprep.subr.mxu0 0.0
        %1087 = vmatpush1.xpose.msra.mxu0 0.0
        %1088 = vmatprep.subr.mxu0 0.0
        %1089 = vmatpush1.xpose.msra.mxu0 0.0
        %1090 = vmatprep.subr.mxu0 0.0
        %1091 = vmatpush1.xpose.msra.mxu0 0.0
        %1092 = vmatprep.subr.mxu0 0.0
        %1093 = vmatpush1.xpose.msra.mxu0 0.0
        %1094 = vmatprep.subr.mxu0 0.0
        %1095 = vmatpush1.xpose.msra.mxu0 0.0
        %1096 = vmatprep.subr.mxu0 0.0
        %1097 = vmatpush1.xpose.msra.mxu0 0.0
        %1098 = vmatprep.subr.mxu0 0.0
        %1099 = vmatpush1.xpose.msra.mxu0 0.0
        %1100 = vmatprep.subr.mxu0 0.0
        %1101 = vmatpush1.xpose.msra.mxu0 0.0
        %1102 = vmatprep.subr.mxu0 0.0
        %1103 = vmatpush1.xpose.msra.mxu0 0.0
        %1104 = vmatprep.subr.mxu0 0.0
        %1105 = vmatpush1.xpose.msra.mxu0 0.0
        %1106 = vmatprep.subr.mxu0 0.0
        %1107 = vmatpush1.xpose.msra.mxu0 0.0
        %1108 = vmatprep.subr.mxu0 0.0
        %1109 = vmatpush1.xpose.msra.mxu0 0.0
        %1110 = vmatprep.subr.mxu0 0.0
        %1111 = vmatpush1.xpose.msra.mxu0 0.0
        %1112 = vmatprep.mubr.f32.mxu0 0.0
        %1113 = vmatmul.mubr.f32.gmra.mrb[0].mxu0 %v1044
        %v1114 = vpop.f32.mrb[0].mxu0
        %v1115 = vadd.f32 0.0, %v1114
        %v1116 = vpop.f32.mrb[0].mxu0
        %1117 = vdwg.mxu0
        %v1118 = vsel %vm528, %v1115, -1e+09
        %v1119 = vsel %vm532, %v1118, -inf
        %1120 = vmax.xlane.f32.xlu0 %v1119
        %v1121 = vpop.xlane.xlu0 %1120
        %v1122 = vsub.f32 %v1118, %v1121
        %v1123 = vmul.f32 %v1122, 1.442695
        %v1124 = vpow.pop %v1123
        %v1125 = vsel %vm532, %v1124, 0.0
        %1126 = vadd.xlane.f32.xlu0 %v1125
        %v1127 = vpop.xlane.xlu0 %1126
        %v1128 = vrcp.pop %v1127
        %v1129 = vmul.f32 %v1124, %v1128
        %1130 = vrot.lane.b32.xlu0 %v521, 40
        %v1131 = vpop.permute.xlu0 %1130
        %v1134 = vsel %vm532, %v1129, 0
        %1136 = vmatprep.subr.mxu0 0.0
        %1137 = vmatpush1.msra.mxu0 %v1131
        %1138 = vmatprep.subr.mxu0 0.0
        %1139 = vmatpush1.msra.mxu0 0.0
        %1140 = vmatprep.subr.mxu0 0.0
        %1141 = vmatpush1.msra.mxu0 0.0
        %1142 = vmatprep.subr.mxu0 0.0
        %1143 = vmatpush1.msra.mxu0 0.0
        %1144 = vmatprep.subr.mxu0 0.0
        %1145 = vmatpush1.msra.mxu0 0.0
        %1146 = vmatprep.subr.mxu0 0.0
        %1147 = vmatpush1.msra.mxu0 0.0
        %1148 = vmatprep.subr.mxu0 0.0
        %1149 = vmatpush1.msra.mxu0 0.0
        %1150 = vmatprep.subr.mxu0 0.0
        %1151 = vmatpush1.msra.mxu0 0.0
        %1152 = vmatprep.subr.mxu0 0.0
        %1153 = vmatpush1.msra.mxu0 0.0
        %1154 = vmatprep.subr.mxu0 0.0
        %1155 = vmatpush1.msra.mxu0 0.0
        %1156 = vmatprep.subr.mxu0 0.0
        %1157 = vmatpush1.msra.mxu0 0.0
        %1158 = vmatprep.subr.mxu0 0.0
        %1159 = vmatpush1.msra.mxu0 0.0
        %1160 = vmatprep.subr.mxu0 0.0
        %1161 = vmatpush1.msra.mxu0 0.0
        %1162 = vmatprep.subr.mxu0 0.0
        %1163 = vmatpush1.msra.mxu0 0.0
        %1164 = vmatprep.subr.mxu0 0.0
        %1165 = vmatpush1.msra.mxu0 0.0
        %1166 = vmatprep.subr.mxu0 0.0
        %1167 = vmatpush1.msra.mxu0 0.0
        %1168 = vmatprep.subr.mxu0 0.0
        %1169 = vmatpush1.msra.mxu0 0.0
        %1170 = vmatprep.subr.mxu0 0.0
        %1171 = vmatpush1.msra.mxu0 0.0
        %1172 = vmatprep.subr.mxu0 0.0
        %1173 = vmatpush1.msra.mxu0 0.0
        %1174 = vmatprep.subr.mxu0 0.0
        %1175 = vmatpush1.msra.mxu0 0.0
        %1176 = vmatprep.subr.mxu0 0.0
        %1177 = vmatpush1.msra.mxu0 0.0
        %1178 = vmatprep.subr.mxu0 0.0
        %1179 = vmatpush1.msra.mxu0 0.0
        %1180 = vmatprep.subr.mxu0 0.0
        %1181 = vmatpush1.msra.mxu0 0.0
        %1182 = vmatprep.subr.mxu0 0.0
        %1183 = vmatpush1.msra.mxu0 0.0
        %1184 = vmatprep.subr.mxu0 0.0
        %1185 = vmatpush1.msra.mxu0 0.0
        %1186 = vmatprep.subr.mxu0 0.0
        %1187 = vmatpush1.msra.mxu0 0.0
        %1188 = vmatprep.subr.mxu0 0.0
        %1189 = vmatpush1.msra.mxu0 0.0
        %1190 = vmatprep.subr.mxu0 0.0
        %1191 = vmatpush1.msra.mxu0 0.0
        %1192 = vmatprep.subr.mxu0 0.0
        %1193 = vmatpush1.msra.mxu0 0.0
        %1194 = vmatprep.subr.mxu0 0.0
        %1195 = vmatpush1.msra.mxu0 0.0
        %1196 = vmatprep.subr.mxu0 0.0
        %1197 = vmatpush1.msra.mxu0 0.0
        %1198 = vmatprep.subr.mxu0 0.0
        %1199 = vmatpush1.msra.mxu0 0.0
        %1200 = vmatprep.mubr.f32.mxu0 0.0
        %1201 = vmatmul.mubr.f32.gmra.mrb[0].mxu0 %v1134
        %v1202 = vpop.f32.mrb[0].mxu0
        %v1203 = vadd.f32 0.0, %v1202
        %v1204 = vpop.f32.mrb[0].mxu0
        %1205 = vdwg.mxu0
        %1207 = vrot.lane.b32.xlu0 %v1203, 24
        %v1208 = vpop.permute.xlu0 %1207
        %vm1210 = vcmask 261312
        %1211 = vst.msk [vmem:[#allocation2] sm:$0xff] %vm1210, %v1208
        %v1212 = vld [vmem:[#allocation2] sm:$0xff]
        %v1213 = vld [vmem:[%s4] sm:$0xff]
        %v1214 = vld [vmem:[%s4 + $0x8] sm:$0xff]
        %v1215 = vld [vmem:[%s4 + $0x10] sm:$0xff]
        %v1216 = vld [vmem:[%s4 + $0x18] sm:$0xff]
        %v1217 = vld [vmem:[%s5] sm:$0x1]
        %v1219 = vlaneseq
        %v1220 = vshrl.u32 %v1219, 7
        %v1221 = vsub.s32 0, %v1220
        %v1222 = vrot.slane %v1217, %v1221
        %v1225 = vsel %vm412, %v1212, 0
        %1227 = vmatprep.subr.mxu0 0.0
        %1228 = vmatpush1.msra.mxu0 %v1213
        %1229 = vmatprep.subr.mxu0 0.0
        %1230 = vmatpush1.msra.mxu0 %v1214
        %1231 = vmatprep.subr.mxu0 0.0
        %1232 = vmatpush1.msra.mxu0 %v1215
        %1233 = vmatprep.subr.mxu0 0.0
        %1234 = vmatpush1.msra.mxu0 %v1216
        %1235 = vmatprep.subr.mxu0 0.0
        %1236 = vmatpush1.msra.mxu0 0.0
        %1237 = vmatprep.subr.mxu0 0.0
        %1238 = vmatpush1.msra.mxu0 0.0
        %1239 = vmatprep.subr.mxu0 0.0
        %1240 = vmatpush1.msra.mxu0 0.0
        %1241 = vmatprep.subr.mxu0 0.0
        %1242 = vmatpush1.msra.mxu0 0.0
        %1243 = vmatprep.subr.mxu0 0.0
        %1244 = vmatpush1.msra.mxu0 0.0
        %1245 = vmatprep.subr.mxu0 0.0
        %1246 = vmatpush1.msra.mxu0 0.0
        %1247 = vmatprep.subr.mxu0 0.0
        %1248 = vmatpush1.msra.mxu0 0.0
        %1249 = vmatprep.subr.mxu0 0.0
        %1250 = vmatpush1.msra.mxu0 0.0
        %1251 = vmatprep.subr.mxu0 0.0
        %1252 = vmatpush1.msra.mxu0 0.0
        %1253 = vmatprep.subr.mxu0 0.0
        %1254 = vmatpush1.msra.mxu0 0.0
        %1255 = vmatprep.subr.mxu0 0.0
        %1256 = vmatpush1.msra.mxu0 0.0
        %1257 = vmatprep.subr.mxu0 0.0
        %1258 = vmatpush1.msra.mxu0 0.0
        %1259 = vmatprep.subr.mxu0 0.0
        %1260 = vmatpush1.msra.mxu0 0.0
        %1261 = vmatprep.subr.mxu0 0.0
        %1262 = vmatpush1.msra.mxu0 0.0
        %1263 = vmatprep.subr.mxu0 0.0
        %1264 = vmatpush1.msra.mxu0 0.0
        %1265 = vmatprep.subr.mxu0 0.0
        %1266 = vmatpush1.msra.mxu0 0.0
        %1267 = vmatprep.subr.mxu0 0.0
        %1268 = vmatpush1.msra.mxu0 0.0
        %1269 = vmatprep.subr.mxu0 0.0
        %1270 = vmatpush1.msra.mxu0 0.0
        %1271 = vmatprep.subr.mxu0 0.0
        %1272 = vmatpush1.msra.mxu0 0.0
        %1273 = vmatprep.subr.mxu0 0.0
        %1274 = vmatpush1.msra.mxu0 0.0
        %1275 = vmatprep.subr.mxu0 0.0
        %1276 = vmatpush1.msra.mxu0 0.0
        %1277 = vmatprep.subr.mxu0 0.0
        %1278 = vmatpush1.msra.mxu0 0.0
        %1279 = vmatprep.subr.mxu0 0.0
        %1280 = vmatpush1.msra.mxu0 0.0
        %1281 = vmatprep.subr.mxu0 0.0
        %1282 = vmatpush1.msra.mxu0 0.0
        %1283 = vmatprep.subr.mxu0 0.0
        %1284 = vmatpush1.msra.mxu0 0.0
        %1285 = vmatprep.subr.mxu0 0.0
        %1286 = vmatpush1.msra.mxu0 0.0
        %1287 = vmatprep.subr.mxu0 0.0
        %1288 = vmatpush1.msra.mxu0 0.0
        %1289 = vmatprep.subr.mxu0 0.0
        %1290 = vmatpush1.msra.mxu0 0.0
        %1291 = vmatprep.mubr.f32.mxu0 0.0
        %1292 = vmatmul.mubr.f32.gmra.mrb[0].mxu0 %v1225
        %v1293 = vpop.f32.mrb[0].mxu0
        %v1294 = vadd.f32 %v1222, %v1293
        %v1295 = vpop.f32.mrb[0].mxu0
        %1296 = vdwg.mxu0
        %v1297 = vadd.f32 %v409, %v1294
        %v1298 = vld [vmem:[%s6] sm:$0x1]
        %v1299 = vld [vmem:[%s7] sm:$0x1]
        %v1300 = vsel %vm412, %v1297, 0.0
        %1301 = vadd.xlane.f32.xlu0 %v1300
        %v1302 = vpop.xlane.xlu0 %1301
        %v1303 = vmul.f32 %v1302, 0.03125
        %v1304 = vsub.f32 %v1297, %v1303
        %v1305 = vmul.f32 %v1304, %v1304
        %v1306 = vsel %vm412, %v1305, 0.0
        %1307 = vadd.xlane.f32.xlu0 %v1306
        %v1308 = vpop.xlane.xlu0 %1307
        %v1309 = vmul.f32 %v1308, 0.032258064
        %v1310 = vrsqrt.pop %v1309
        %v1311 = vmul.f32 %v1309, %v1310
        %vm1312 = vcmp.eq.f32.partialorder %v1309, inf
        %v1313 = vsel %vm1312, %v1309, %v1311
        %vm1314 = vcmp.eq.f32.partialorder %v1309, 0.0
        %v1315 = vand.u32 %v1309, 2147483648
        %v1316 = vsel %vm1314, %v1315, %v1313
        %v1317 = vadd.f32 %v1316, 1e-06
        %v1318 = vrsqrt.pop %v1317
        %v1319 = vmul.f32 %v1304, %v1318
        %v1321 = vlaneseq
        %v1322 = vshrl.u32 %v1321, 7
        %v1323 = vsub.s32 0, %v1322
        %v1324 = vrot.slane %v1298, %v1323
        %v1326 = vmul.f32 %v1324, %v1319
        %v1328 = vlaneseq
        %v1329 = vshrl.u32 %v1328, 7
        %v1330 = vsub.s32 0, %v1329
        %v1331 = vrot.slane %v1299, %v1330
        %v1333 = vadd.f32 %v1326, %v1331
        %v1334 = vld [vmem:[%s8] sm:$0xff]
        %v1335 = vld [vmem:[%s8 + $0x8] sm:$0xff]
        %v1336 = vld [vmem:[%s8 + $0x10] sm:$0xff]
        %v1337 = vld [vmem:[%s8 + $0x18] sm:$0xff]
        %v1338 = vld [vmem:[%s9] sm:$0x1]
        %v1340 = vlaneseq
        %v1341 = vshrl.u32 %v1340, 7
        %v1342 = vsub.s32 0, %v1341
        %v1343 = vrot.slane %v1338, %v1342
        %v1346 = vsel %vm412, %v1333, 0
        %1348 = vmatprep.subr.mxu0 0.0
        %1349 = vmatpush1.msra.mxu0 %v1334
        %1350 = vmatprep.subr.mxu0 0.0
        %1351 = vmatpush1.msra.mxu0 %v1335
        %1352 = vmatprep.subr.mxu0 0.0
        %1353 = vmatpush1.msra.mxu0 %v1336
        %1354 = vmatprep.subr.mxu0 0.0
        %1355 = vmatpush1.msra.mxu0 %v1337
        %1356 = vmatprep.subr.mxu0 0.0
        %1357 = vmatpush1.msra.mxu0 0.0
        %1358 = vmatprep.subr.mxu0 0.0
        %1359 = vmatpush1.msra.mxu0 0.0
        %1360 = vmatprep.subr.mxu0 0.0
        %1361 = vmatpush1.msra.mxu0 0.0
        %1362 = vmatprep.subr.mxu0 0.0
        %1363 = vmatpush1.msra.mxu0 0.0
        %1364 = vmatprep.subr.mxu0 0.0
        %1365 = vmatpush1.msra.mxu0 0.0
        %1366 = vmatprep.subr.mxu0 0.0
        %1367 = vmatpush1.msra.mxu0 0.0
        %1368 = vmatprep.subr.mxu0 0.0
        %1369 = vmatpush1.msra.mxu0 0.0
        %1370 = vmatprep.subr.mxu0 0.0
        %1371 = vmatpush1.msra.mxu0 0.0
        %1372 = vmatprep.subr.mxu0 0.0
        %1373 = vmatpush1.msra.mxu0 0.0
        %1374 = vmatprep.subr.mxu0 0.0
        %1375 = vmatpush1.msra.mxu0 0.0
        %1376 = vmatprep.subr.mxu0 0.0
        %1377 = vmatpush1.msra.mxu0 0.0
        %1378 = vmatprep.subr.mxu0 0.0
        %1379 = vmatpush1.msra.mxu0 0.0
        %1380 = vmatprep.subr.mxu0 0.0
        %1381 = vmatpush1.msra.mxu0 0.0
        %1382 = vmatprep.subr.mxu0 0.0
        %1383 = vmatpush1.msra.mxu0 0.0
        %1384 = vmatprep.subr.mxu0 0.0
        %1385 = vmatpush1.msra.mxu0 0.0
        %1386 = vmatprep.subr.mxu0 0.0
        %1387 = vmatpush1.msra.mxu0 0.0
        %1388 = vmatprep.subr.mxu0 0.0
        %1389 = vmatpush1.msra.mxu0 0.0
        %1390 = vmatprep.subr.mxu0 0.0
        %1391 = vmatpush1.msra.mxu0 0.0
        %1392 = vmatprep.subr.mxu0 0.0
        %1393 = vmatpush1.msra.mxu0 0.0
        %1394 = vmatprep.subr.mxu0 0.0
        %1395 = vmatpush1.msra.mxu0 0.0
        %1396 = vmatprep.subr.mxu0 0.0
        %1397 = vmatpush1.msra.mxu0 0.0
        %1398 = vmatprep.subr.mxu0 0.0
        %1399 = vmatpush1.msra.mxu0 0.0
        %1400 = vmatprep.subr.mxu0 0.0
        %1401 = vmatpush1.msra.mxu0 0.0
        %1402 = vmatprep.subr.mxu0 0.0
        %1403 = vmatpush1.msra.mxu0 0.0
        %1404 = vmatprep.subr.mxu0 0.0
        %1405 = vmatpush1.msra.mxu0 0.0
        %1406 = vmatprep.subr.mxu0 0.0
        %1407 = vmatpush1.msra.mxu0 0.0
        %1408 = vmatprep.subr.mxu0 0.0
        %1409 = vmatpush1.msra.mxu0 0.0
        %1410 = vmatprep.subr.mxu0 0.0
        %1411 = vmatpush1.msra.mxu0 0.0
        %1412 = vmatprep.mubr.f32.mxu0 0.0
        %1413 = vmatmul.mubr.f32.gmra.mrb[0].mxu0 %v1346
        %v1414 = vpop.f32.mrb[0].mxu0
        %v1415 = vadd.f32 %v1343, %v1414
        %v1416 = vpop.f32.mrb[0].mxu0
        %1417 = vdwg.mxu0
        %v1418 = vmax.f32 %v1415, 0.0
        %v1419 = vld [vmem:[%s10] sm:$0xff]
        %v1420 = vld [vmem:[%s10 + $0x8] sm:$0xff]
        %v1421 = vld [vmem:[%s10 + $0x10] sm:$0xff]
        %v1422 = vld [vmem:[%s10 + $0x18] sm:$0xff]
        %v1423 = vld [vmem:[%s10 + $0x20] sm:$0xff]
        %v1424 = vld [vmem:[%s10 + $0x28] sm:$0xff]
        %v1425 = vld [vmem:[%s10 + $0x30] sm:$0xff]
        %v1426 = vld [vmem:[%s10 + $0x38] sm:$0xff]
        %v1427 = vld [vmem:[%s10 + $0x40] sm:$0xff]
        %v1428 = vld [vmem:[%s10 + $0x48] sm:$0xff]
        %v1429 = vld [vmem:[%s10 + $0x50] sm:$0xff]
        %v1430 = vld [vmem:[%s10 + $0x58] sm:$0xff]
        %v1431 = vld [vmem:[%s10 + $0x60] sm:$0xff]
        %v1432 = vld [vmem:[%s10 + $0x68] sm:$0xff]
        %v1433 = vld [vmem:[%s10 + $0x70] sm:$0xff]
        %v1434 = vld [vmem:[%s10 + $0x78] sm:$0xff]
        %v1435 = vld [vmem:[%s11] sm:$0x1]
        %v1437 = vlaneseq
        %v1438 = vshrl.u32 %v1437, 7
        %v1439 = vsub.s32 0, %v1438
        %v1440 = vrot.slane %v1435, %v1439
        %1442 = vmatprep.subr.mxu0 0.0
        %1443 = vmatpush1.msra.mxu0 %v1419
        %1444 = vmatprep.subr.mxu0 0.0
        %1445 = vmatpush1.msra.mxu0 %v1420
        %1446 = vmatprep.subr.mxu0 0.0
        %1447 = vmatpush1.msra.mxu0 %v1421
        %1448 = vmatprep.subr.mxu0 0.0
        %1449 = vmatpush1.msra.mxu0 %v1422
        %1450 = vmatprep.subr.mxu0 0.0
        %1451 = vmatpush1.msra.mxu0 %v1423
        %1452 = vmatprep.subr.mxu0 0.0
        %1453 = vmatpush1.msra.mxu0 %v1424
        %1454 = vmatprep.subr.mxu0 0.0
        %1455 = vmatpush1.msra.mxu0 %v1425
        %1456 = vmatprep.subr.mxu0 0.0
        %1457 = vmatpush1.msra.mxu0 %v1426
        %1458 = vmatprep.subr.mxu0 0.0
        %1459 = vmatpush1.msra.mxu0 %v1427
        %1460 = vmatprep.subr.mxu0 0.0
        %1461 = vmatpush1.msra.mxu0 %v1428
        %1462 = vmatprep.subr.mxu0 0.0
        %1463 = vmatpush1.msra.mxu0 %v1429
        %1464 = vmatprep.subr.mxu0 0.0
        %1465 = vmatpush1.msra.mxu0 %v1430
        %1466 = vmatprep.subr.mxu0 0.0
        %1467 = vmatpush1.msra.mxu0 %v1431
        %1468 = vmatprep.subr.mxu0 0.0
        %1469 = vmatpush1.msra.mxu0 %v1432
        %1470 = vmatprep.subr.mxu0 0.0
        %1471 = vmatpush1.msra.mxu0 %v1433
        %1472 = vmatprep.subr.mxu0 0.0
        %1473 = vmatpush1.msra.mxu0 %v1434
        %1474 = vmatprep.subr.mxu0 0.0
        %1475 = vmatpush1.msra.mxu0 0.0
        %1476 = vmatprep.subr.mxu0 0.0
        %1477 = vmatpush1.msra.mxu0 0.0
        %1478 = vmatprep.subr.mxu0 0.0
        %1479 = vmatpush1.msra.mxu0 0.0
        %1480 = vmatprep.subr.mxu0 0.0
        %1481 = vmatpush1.msra.mxu0 0.0
        %1482 = vmatprep.subr.mxu0 0.0
        %1483 = vmatpush1.msra.mxu0 0.0
        %1484 = vmatprep.subr.mxu0 0.0
        %1485 = vmatpush1.msra.mxu0 0.0
        %1486 = vmatprep.subr.mxu0 0.0
        %1487 = vmatpush1.msra.mxu0 0.0
        %1488 = vmatprep.subr.mxu0 0.0
        %1489 = vmatpush1.msra.mxu0 0.0
        %1490 = vmatprep.subr.mxu0 0.0
        %1491 = vmatpush1.msra.mxu0 0.0
        %1492 = vmatprep.subr.mxu0 0.0
        %1493 = vmatpush1.msra.mxu0 0.0
        %1494 = vmatprep.subr.mxu0 0.0
        %1495 = vmatpush1.msra.mxu0 0.0
        %1496 = vmatprep.subr.mxu0 0.0
        %1497 = vmatpush1.msra.mxu0 0.0
        %1498 = vmatprep.subr.mxu0 0.0
        %1499 = vmatpush1.msra.mxu0 0.0
        %1500 = vmatprep.subr.mxu0 0.0
        %1501 = vmatpush1.msra.mxu0 0.0
        %1502 = vmatprep.subr.mxu0 0.0
        %1503 = vmatpush1.msra.mxu0 0.0
        %1504 = vmatprep.subr.mxu0 0.0
        %1505 = vmatpush1.msra.mxu0 0.0
        %1506 = vmatprep.mubr.f32.mxu0 0.0
        %1507 = vmatmul.mubr.f32.gmra.mrb[0].mxu0 %v1418
        %v1508 = vpop.f32.mrb[0].mxu0
        %v1509 = vadd.f32 %v1440, %v1508
        %v1510 = vpop.f32.mrb[0].mxu0
        %1511 = vdwg.mxu0
        %v1512 = vadd.f32 %v1297, %v1509
        %1513 = vst.msk [vmem:[%s404] sm:$0xff] %vm412, %v1512
        %s1514 = sand.u32 %s291, 1
        %s1515 = scalar_lea.sflag [#allocation4], %s1514
        %s1516 = sand.u32 %s291, 1
        %s1517 = smul.addr %s1516, 8
        %s1518 = scalar_lea.vmem [#allocation3], %s1517
        // Predicated region
        $region69: #{tpu_custom_call.1} parent=67 // pred_check
          %p1519 = pneg %p301
        $region70: #{tpu_custom_call.1} parent=67 // pred_check_branch
          %1521 = sbr.rel (%p1519) target = $region72
        $region71: #{tpu_custom_call.1} parent=67 // pred_region
          %s1523 = ssub.s32 128, 128
          %1524 = vsyncadd %s1515, %s1523
          %s1525 = smul.addr %s26, 128
          %s1526 = scalar_lea.hbm %s12, %s1525
          %s1528 = sshll.u32 %s1518, 4
          %s1529 = int_to_ptr.vmem [resolvable:$true] %s1528
          %1531 = dma.vmem_to_hbm [thread:$0]  %s1529, 128, %s1526, %s1515
        $region72: #{tpu_custom_call.1} parent=67 // pred_fallthru
          _
      $region68: #{tpu_custom_call.1} parent=5 // pred_fallthru
        _
      %p1532 = scmp.le.s32.totalorder 2, %s21
      // Predicated region
      $region73: #{tpu_custom_call.1} parent=5 // pred_check
        %p1533 = pneg %p1532
      $region74: #{tpu_custom_call.1} parent=5 // pred_check_branch
        %1535 = sbr.rel (%p1533) target = $region76
      $region75: #{tpu_custom_call.1} parent=5 // pred_region
        %s1536 = ssub.s32 %s21, 2
        // Predicated region
        $region77: #{tpu_custom_call.1} parent=75 // pred_check
          %p1537 = pneg %p307
        $region78: #{tpu_custom_call.1} parent=75 // pred_check_branch
          %1539 = sbr.rel (%p1537) target = $region80
        $region79: #{tpu_custom_call.1} parent=75 // pred_region
          %s1540 = sand.u32 %s292, 1
          %s1541 = scalar_lea.sflag [#allocation4], %s1540
          %s1542 = sand.u32 %s292, 1
          %s1543 = smul.addr %s1542, 8
          %s1544 = scalar_lea.vmem [#allocation3], %s1543
          %1545 = dma.done %s1541, 128
        $region80: #{tpu_custom_call.1} parent=75 // pred_fallthru
          _
      $region76: #{tpu_custom_call.1} parent=5 // pred_fallthru
        _
    $region6: #{tpu_custom_call.1} parent=1 // loop_footer
      %s25 = sadd.s32 1, %s21
    $region7: #{tpu_custom_call.1} parent=1 // loop_footer_branch
      %20 = sbr.rel target = $region3
    $region8: #{tpu_custom_call.1} parent=1 // loop_exit
      _
    %1546 = vsyncpa [#allocation4], 1
    %s1547 = scalar_lea.sflag [#allocation4], 1
    %1548 = vsyncpa %s1547, 1

</llo_original>
